<compile_context>
chip_gen: v6e
topology: v6e:2x2x1
jax: 0.10.0
libtpu: 0.0.40
codegen_flags: <defaults>
</compile_context>

<pallas_src>
import functools
import math

import jax
import jax.numpy as jnp
from jax.experimental import pallas as pl
from jax.experimental.pallas import tpu as pltpu


def _pick_spatial_tile(hw, n, c, target_bytes=4 * 1024 * 1024):
    """Largest multiple-of-128 divisor of hw whose (n, c, tile) f32 block <= target."""
    cap = max(128, (target_bytes // max(1, n * c * 4)) // 128 * 128)
    t = min(cap, (hw // 128) * 128)
    while t >= 128:
        if hw % t == 0:
            return t
        t -= 128
    return hw  # fall back to the full (untiled) spatial extent


@functools.lru_cache(maxsize=None)
def _build_aspp_pool(n, c, cout, hw):
    tile = _pick_spatial_tile(hw, n, c)
    inv_hw = 1.0 / float(hw)

    def kernel(x_ref, w_ref, b_ref, o_ref, acc_ref):
        t = pl.program_id(0)

        @pl.when(t == 0)
        def _init():
            acc_ref[...] = jnp.zeros_like(acc_ref)

        # Partial global-average-pool: sum this spatial tile (lane-axis reduce).
        acc_ref[...] += jnp.sum(x_ref[...], axis=-1)

        @pl.when(t == pl.num_programs(0) - 1)
        def _finalize():
            pooled = (acc_ref[...] * inv_hw).astype(jnp.bfloat16)      # (n, c)
            y = jnp.dot(pooled, w_ref[...],                             # (n, cout)
                        preferred_element_type=jnp.float32)
            o_ref[...] = jnp.maximum(y + b_ref[...], 0.0)               # BN bias + ReLU

    grid = (hw // tile,)
    return pl.pallas_call(
        kernel,
        out_shape=jax.ShapeDtypeStruct((n, cout), jnp.float32),
        grid_spec=pltpu.PrefetchScalarGridSpec(
            num_scalar_prefetch=0,
            grid=grid,
            in_specs=[
                pl.BlockSpec((n, c, tile), lambda i: (0, 0, i)),   # activation tiles
                pl.BlockSpec((c, cout), lambda i: (0, 0)),          # folded bf16 weight
                pl.BlockSpec((1, cout), lambda i: (0, 0)),          # folded f32 bias
            ],
            out_specs=pl.BlockSpec((n, cout), lambda i: (0, 0)),
            scratch_shapes=[pltpu.VMEM((n, c), jnp.float32)],
        ),
        compiler_params=pltpu.CompilerParams(
            dimension_semantics=("arbitrary",)),   # spatial axis is a reduction
    )


def aspp_pooling(x_nchw, conv_weight, bn_gamma, bn_beta, bn_mean, bn_var, eps=1e-5):
    """Matches ASPPPooling.forward; returns (N, Cout, 1, 1) float32."""
    # TODO(synk): training-mode BatchNorm batch statistics are not implemented;
    #             BN is applied in eval mode (running stats folded into the conv).
    n, c, h, w = x_nchw.shape
    cout = conv_weight.shape[0]

    scale = bn_gamma / jnp.sqrt(bn_var + eps)                        # (cout,)
    w_mat = conv_weight.reshape(cout, c).T                           # (cin, cout)
    w_folded = (w_mat * scale[None, :]).astype(jnp.bfloat16)
    b_folded = (bn_beta - bn_mean * scale).reshape(1, cout).astype(jnp.float32)

    x_flat = x_nchw.astype(jnp.float32).reshape(n, c, h * w)         # NCHW, no transpose
    out2d = _build_aspp_pool(n, c, cout, h * w)(x_flat, w_folded, b_folded)
    return out2d.reshape(n, cout, 1, 1)


if __name__ == "__main__":
    N, CIN, COUT, H, W = 2, 256, 256, 16, 16
    key = jax.random.PRNGKey(0)
    kx, kw, kg, kb, km, kv = jax.random.split(key, 6)
    x = jax.random.normal(kx, (N, CIN, H, W), jnp.float32)
    conv_w = jax.random.normal(kw, (COUT, CIN, 1, 1), jnp.float32) / math.sqrt(CIN)
    gamma = 1.0 + 0.1 * jax.random.normal(kg, (COUT,), jnp.float32)
    beta = 0.1 * jax.random.normal(kb, (COUT,), jnp.float32)
    rmean = 0.05 * jax.random.normal(km, (COUT,), jnp.float32)
    rvar = 1.0 + 0.2 * jax.random.uniform(kv, (COUT,), jnp.float32)

    fwd = jax.jit(aspp_pooling)
    out = jax.block_until_ready(fwd(x, conv_w, gamma, beta, rmean, rvar))
    assert out.shape == (N, COUT, 1, 1), out.shape

    # Pure-JAX f32 reference (kernel uses bf16 matmul operands -> loose tolerance).
    pooled = jnp.mean(x, axis=(2, 3))
    scale = gamma / jnp.sqrt(rvar + 1e-5)
    ref_lin = (pooled @ conv_w.reshape(COUT, CIN).T) * scale + (beta - rmean * scale)
    ref = jnp.maximum(ref_lin, 0.0).reshape(N, COUT, 1, 1)

    assert bool(jnp.all(jnp.isfinite(out)))
    assert bool(jnp.allclose(out, ref, rtol=1e-2, atol=1e-2)), \
        float(jnp.max(jnp.abs(out - ref)))
    print("KERNEL_OK")
</pallas_src>

<mosaic_0001>
module attributes {stable_mosaic.version = 11 : i64} {
  func.func @kernel(%arg0: i32, %arg1: memref<2x256x256xf32, #tpu.memory_space<vmem>>, %arg2: memref<256x256xbf16, #tpu.memory_space<vmem>>, %arg3: memref<1x256xf32, #tpu.memory_space<vmem>>, %arg4: memref<2x256xf32, #tpu.memory_space<vmem>>, %arg5: memref<2x256xf32, #tpu.memory_space<vmem>>) attributes {dimension_semantics = [#tpu.dimension_semantics<arbitrary>], iteration_bounds = array<i64: 1>, scalar_prefetch = 0 : i64, scratch_operands = 1 : i64, tpu.core_type = #tpu.core_type<tc>, window_params = [{transform_indices = @transform_0, window_bounds = array<i64: 2, 256, 256>}, {pipeline_mode = #tpu.pipeline_mode<synchronous>, transform_indices = @transform_1, window_bounds = array<i64: 256, 256>}, {pipeline_mode = #tpu.pipeline_mode<synchronous>, transform_indices = @transform_2, window_bounds = array<i64: 1, 256>}, {pipeline_mode = #tpu.pipeline_mode<synchronous>, transform_indices = @transform_3, window_bounds = array<i64: 2, 256>}]} {
    %c0_i32 = arith.constant 0 : i32
    %0 = arith.cmpi eq, %arg0, %c0_i32 : i32
    %1 = arith.extui %0 : i1 to i32
    %c0_i32_0 = arith.constant 0 : i32
    %2 = arith.cmpi ne, %1, %c0_i32_0 : i32
    scf.if %2 {
      %cst_9 = arith.constant 0.000000e+00 : f32
      %11 = vector.broadcast %cst_9 : f32 to vector<2x256xf32>
      %c0_10 = arith.constant 0 : index
      %c0_11 = arith.constant 0 : index
      %12 = vector.load %arg5[%c0_10, %c0_11] : memref<2x256xf32, #tpu.memory_space<vmem>>, vector<2x256xf32>
      tpu.vector_store %arg5[%c0_10, %c0_11], %11 {strides = array<i32>} : memref<2x256xf32, #tpu.memory_space<vmem>>, vector<2x256xf32>,
    } else {
    }
    %c0 = arith.constant 0 : index
    %c0_1 = arith.constant 0 : index
    %3 = vector.load %arg5[%c0, %c0_1] : memref<2x256xf32, #tpu.memory_space<vmem>>, vector<2x256xf32>
    %c0_2 = arith.constant 0 : index
    %c0_3 = arith.constant 0 : index
    %c0_4 = arith.constant 0 : index
    %4 = vector.load %arg1[%c0_2, %c0_3, %c0_4] : memref<2x256x256xf32, #tpu.memory_space<vmem>>, vector<2x256x256xf32>
    %cst = arith.constant dense<0.000000e+00> : vector<2x256xf32>
    %5 = vector.multi_reduction <add>, %4, %cst [2] : vector<2x256x256xf32> to vector<2x256xf32>
    %6 = arith.addf %3, %5 : vector<2x256xf32>
    %c0_5 = arith.constant 0 : index
    %c0_6 = arith.constant 0 : index
    %7 = vector.load %arg5[%c0_5, %c0_6] : memref<2x256xf32, #tpu.memory_space<vmem>>, vector<2x256xf32>
    tpu.vector_store %arg5[%c0_5, %c0_6], %6 {strides = array<i32>} : memref<2x256xf32, #tpu.memory_space<vmem>>, vector<2x256xf32>,
    %c0_i32_7 = arith.constant 0 : i32
    %8 = arith.cmpi eq, %arg0, %c0_i32_7 : i32
    %9 = arith.extui %8 : i1 to i32
    %c0_i32_8 = arith.constant 0 : i32
    %10 = arith.cmpi ne, %9, %c0_i32_8 : i32
    scf.if %10 {
      %c0_9 = arith.constant 0 : index
      %c0_10 = arith.constant 0 : index
      %11 = vector.load %arg5[%c0_9, %c0_10] : memref<2x256xf32, #tpu.memory_space<vmem>>, vector<2x256xf32>
      %cst_11 = arith.constant 3.906250e-03 : f32
      %12 = vector.broadcast %cst_11 : f32 to vector<2x256xf32>
      %13 = arith.mulf %11, %12 : vector<2x256xf32>
      %14 = arith.truncf %13 : vector<2x256xf32> to vector<2x256xbf16>
      %c0_12 = arith.constant 0 : index
      %c0_13 = arith.constant 0 : index
      %15 = vector.load %arg2[%c0_12, %c0_13] : memref<256x256xbf16, #tpu.memory_space<vmem>>, vector<256x256xbf16>
      %cst_14 = arith.constant dense<0.000000e+00> : vector<2x256xf32>
      %16 = tpu.matmul %14, %15, %cst_14 {dimension_numbers = #tpu.dot_dimension_numbers<[1], [0], [0], [1], [0, 0, 1, 1], [], []>} : vector<2x256xbf16>, vector<256x256xbf16>, vector<2x256xf32> -> vector<2x256xf32>
      %c0_15 = arith.constant 0 : index
      %c0_16 = arith.constant 0 : index
      %17 = vector.load %arg3[%c0_15, %c0_16] : memref<1x256xf32, #tpu.memory_space<vmem>>, vector<1x256xf32>
      %18 = vector.broadcast %17 : vector<1x256xf32> to vector<2x256xf32>
      %19 = arith.addf %16, %18 : vector<2x256xf32>
      %cst_17 = arith.constant 0.000000e+00 : f32
      %20 = vector.broadcast %cst_17 : f32 to vector<2x256xf32>
      %21 = arith.maximumf %19, %20 : vector<2x256xf32>
      %c0_18 = arith.constant 0 : index
      %c0_19 = arith.constant 0 : index
      %22 = vector.load %arg4[%c0_18, %c0_19] : memref<2x256xf32, #tpu.memory_space<vmem>>, vector<2x256xf32>
      tpu.vector_store %arg4[%c0_18, %c0_19], %21 {strides = array<i32>} : memref<2x256xf32, #tpu.memory_space<vmem>>, vector<2x256xf32>,
    } else {
    }
    return
  }
  func.func @transform_0(%arg0: i32) -> (i32, i32, i32) {
    %c0_i32 = arith.constant 0 : i32
    %c0_i32_0 = arith.constant 0 : i32
    %c0_i32_1 = arith.constant 0 : i32
    return %c0_i32, %c0_i32_0, %arg0 : i32, i32, i32
  }
  func.func @transform_1(%arg0: i32) -> (i32, i32) {
    %c0_i32 = arith.constant 0 : i32
    %c0_i32_0 = arith.constant 0 : i32
    %c0_i32_1 = arith.constant 0 : i32
    return %c0_i32, %c0_i32_0 : i32, i32
  }
  func.func @transform_2(%arg0: i32) -> (i32, i32) {
    %c0_i32 = arith.constant 0 : i32
    %c0_i32_0 = arith.constant 0 : i32
    %c0_i32_1 = arith.constant 0 : i32
    return %c0_i32, %c0_i32_0 : i32, i32
  }
  func.func @transform_3(%arg0: i32) -> (i32, i32) {
    %c0_i32 = arith.constant 0 : i32
    %c0_i32_0 = arith.constant 0 : i32
    %c0_i32_1 = arith.constant 0 : i32
    return %c0_i32, %c0_i32_0 : i32, i32
  }
}

</mosaic_0001>

<llo_original>
// kernel: aspp_pooling.1
$region0: #{aspp_pooling.1}
  #allocation0 [shape = 'u32[]', space=smem, size = 0x4, offset = 0x4, fixed_abs, tag = 'smem constant byte address 0x4 - core index']
  #allocation1 [shape = 'u32[144,128]{1,0:T(1,128)}', space=vmem, size = 0x12000, scoped, tag = 'internal scratch']
  #allocation2 [shape = 'f32[2,256]{1,0:T(2,128)}', space=vmem, size = 0x800, scoped, tag = 'scratch operand']
  %s0 = inlined_call_operand.vmem [shape: f32[2,256,256], index: 0, kind: input, shape index: {}]
  %s1 = inlined_call_operand.vmem [shape: bf16[256,256], index: 1, kind: input, shape index: {}]
  %s2 = inlined_call_operand.vmem [shape: f32[1,256], index: 2, kind: input, shape index: {}]
  %s3 = inlined_call_operand.vmem [shape: f32[2,256], index: 3, kind: output, shape index: {}]
  %s4 = sld [smem:[#allocation0]]
  $region30: #{aspp_pooling.1} parent=0
    _
  %s6 = ssub.s32 1, %s4
  %s7 = scalar_select 0, %s6, %s4
  // Predicated region
  $region2: #{aspp_pooling.1} parent=0 // pred_check
    _
  $region3: #{aspp_pooling.1} parent=0 // pred_check_branch
    %9 = sbr.rel (0) target = $region5
  $region4: #{aspp_pooling.1} parent=0 // pred_region
    _
  $region5: #{aspp_pooling.1} parent=0 // pred_fallthru
    _
  // Predicated region
  $region6: #{aspp_pooling.1} parent=0 // pred_check
    _
  $region7: #{aspp_pooling.1} parent=0 // pred_check_branch
    %11 = sbr.rel (0) target = $region9
  $region8: #{aspp_pooling.1} parent=0 // pred_region
    _
  $region9: #{aspp_pooling.1} parent=0 // pred_fallthru
    _
  // Predicated region
  $region10: #{aspp_pooling.1} parent=0 // pred_check
    _
  $region11: #{aspp_pooling.1} parent=0 // pred_check_branch
    %13 = sbr.rel (0) target = $region13
  $region12: #{aspp_pooling.1} parent=0 // pred_region
    _
  $region13: #{aspp_pooling.1} parent=0 // pred_fallthru
    _
  %p14 = scmp.eq.s32.totalorder 0, 0
  // Predicated region
  $region14: #{aspp_pooling.1} parent=0 // pred_check
    %p15 = pneg %p14
  $region15: #{aspp_pooling.1} parent=0 // pred_check_branch
    %17 = sbr.rel (%p15) target = $region17
  $region16: #{aspp_pooling.1} parent=0 // pred_region
    %18 = vst [vmem:[#allocation2] sm:$0xf] 0.0
  $region17: #{aspp_pooling.1} parent=0 // pred_fallthru
    _
  %v19 = vld [vmem:[#allocation2] sm:$0xf]
  %v20 = vld [vmem:[%s0] sm:$0xff]
  %v21 = vld [vmem:[%s0 + $0x8] sm:$0xff]
  %v22 = vld [vmem:[%s0 + $0x10] sm:$0xff]
  %v23 = vld [vmem:[%s0 + $0x18] sm:$0xff]
  %v24 = vld [vmem:[%s0 + $0x20] sm:$0xff]
  %v25 = vld [vmem:[%s0 + $0x28] sm:$0xff]
  %v26 = vld [vmem:[%s0 + $0x30] sm:$0xff]
  %v27 = vld [vmem:[%s0 + $0x38] sm:$0xff]
  %v28 = vld [vmem:[%s0 + $0x40] sm:$0xff]
  %v29 = vld [vmem:[%s0 + $0x48] sm:$0xff]
  %v30 = vld [vmem:[%s0 + $0x50] sm:$0xff]
  %v31 = vld [vmem:[%s0 + $0x58] sm:$0xff]
  %v32 = vld [vmem:[%s0 + $0x60] sm:$0xff]
  %v33 = vld [vmem:[%s0 + $0x68] sm:$0xff]
  %v34 = vld [vmem:[%s0 + $0x70] sm:$0xff]
  %v35 = vld [vmem:[%s0 + $0x78] sm:$0xff]
  %v36 = vld [vmem:[%s0 + $0x80] sm:$0xff]
  %v37 = vld [vmem:[%s0 + $0x88] sm:$0xff]
  %v38 = vld [vmem:[%s0 + $0x90] sm:$0xff]
  %v39 = vld [vmem:[%s0 + $0x98] sm:$0xff]
  %v40 = vld [vmem:[%s0 + $0xa0] sm:$0xff]
  %v41 = vld [vmem:[%s0 + $0xa8] sm:$0xff]
  %v42 = vld [vmem:[%s0 + $0xb0] sm:$0xff]
  %v43 = vld [vmem:[%s0 + $0xb8] sm:$0xff]
  %v44 = vld [vmem:[%s0 + $0xc0] sm:$0xff]
  %v45 = vld [vmem:[%s0 + $0xc8] sm:$0xff]
  %v46 = vld [vmem:[%s0 + $0xd0] sm:$0xff]
  %v47 = vld [vmem:[%s0 + $0xd8] sm:$0xff]
  %v48 = vld [vmem:[%s0 + $0xe0] sm:$0xff]
  %v49 = vld [vmem:[%s0 + $0xe8] sm:$0xff]
  %v50 = vld [vmem:[%s0 + $0xf0] sm:$0xff]
  %v51 = vld [vmem:[%s0 + $0xf8] sm:$0xff]
  %v52 = vld [vmem:[%s0 + $0x100] sm:$0xff]
  %v53 = vld [vmem:[%s0 + $0x108] sm:$0xff]
  %v54 = vld [vmem:[%s0 + $0x110] sm:$0xff]
  %v55 = vld [vmem:[%s0 + $0x118] sm:$0xff]
  %v56 = vld [vmem:[%s0 + $0x120] sm:$0xff]
  %v57 = vld [vmem:[%s0 + $0x128] sm:$0xff]
  %v58 = vld [vmem:[%s0 + $0x130] sm:$0xff]
  %v59 = vld [vmem:[%s0 + $0x138] sm:$0xff]
  %v60 = vld [vmem:[%s0 + $0x140] sm:$0xff]
  %v61 = vld [vmem:[%s0 + $0x148] sm:$0xff]
  %v62 = vld [vmem:[%s0 + $0x150] sm:$0xff]
  %v63 = vld [vmem:[%s0 + $0x158] sm:$0xff]
  %v64 = vld [vmem:[%s0 + $0x160] sm:$0xff]
  %v65 = vld [vmem:[%s0 + $0x168] sm:$0xff]
  %v66 = vld [vmem:[%s0 + $0x170] sm:$0xff]
  %v67 = vld [vmem:[%s0 + $0x178] sm:$0xff]
  %v68 = vld [vmem:[%s0 + $0x180] sm:$0xff]
  %v69 = vld [vmem:[%s0 + $0x188] sm:$0xff]
  %v70 = vld [vmem:[%s0 + $0x190] sm:$0xff]
  %v71 = vld [vmem:[%s0 + $0x198] sm:$0xff]
  %v72 = vld [vmem:[%s0 + $0x1a0] sm:$0xff]
  %v73 = vld [vmem:[%s0 + $0x1a8] sm:$0xff]
  %v74 = vld [vmem:[%s0 + $0x1b0] sm:$0xff]
  %v75 = vld [vmem:[%s0 + $0x1b8] sm:$0xff]
  %v76 = vld [vmem:[%s0 + $0x1c0] sm:$0xff]
  %v77 = vld [vmem:[%s0 + $0x1c8] sm:$0xff]
  %v78 = vld [vmem:[%s0 + $0x1d0] sm:$0xff]
  %v79 = vld [vmem:[%s0 + $0x1d8] sm:$0xff]
  %v80 = vld [vmem:[%s0 + $0x1e0] sm:$0xff]
  %v81 = vld [vmem:[%s0 + $0x1e8] sm:$0xff]
  %v82 = vld [vmem:[%s0 + $0x1f0] sm:$0xff]
  %v83 = vld [vmem:[%s0 + $0x1f8] sm:$0xff]
  %v84 = vld [vmem:[%s0 + $0x200] sm:$0xff]
  %v85 = vld [vmem:[%s0 + $0x208] sm:$0xff]
  %v86 = vld [vmem:[%s0 + $0x210] sm:$0xff]
  %v87 = vld [vmem:[%s0 + $0x218] sm:$0xff]
  %v88 = vld [vmem:[%s0 + $0x220] sm:$0xff]
  %v89 = vld [vmem:[%s0 + $0x228] sm:$0xff]
  %v90 = vld [vmem:[%s0 + $0x230] sm:$0xff]
  %v91 = vld [vmem:[%s0 + $0x238] sm:$0xff]
  %v92 = vld [vmem:[%s0 + $0x240] sm:$0xff]
  %v93 = vld [vmem:[%s0 + $0x248] sm:$0xff]
  %v94 = vld [vmem:[%s0 + $0x250] sm:$0xff]
  %v95 = vld [vmem:[%s0 + $0x258] sm:$0xff]
  %v96 = vld [vmem:[%s0 + $0x260] sm:$0xff]
  %v97 = vld [vmem:[%s0 + $0x268] sm:$0xff]
  %v98 = vld [vmem:[%s0 + $0x270] sm:$0xff]
  %v99 = vld [vmem:[%s0 + $0x278] sm:$0xff]
  %v100 = vld [vmem:[%s0 + $0x280] sm:$0xff]
  %v101 = vld [vmem:[%s0 + $0x288] sm:$0xff]
  %v102 = vld [vmem:[%s0 + $0x290] sm:$0xff]
  %v103 = vld [vmem:[%s0 + $0x298] sm:$0xff]
  %v104 = vld [vmem:[%s0 + $0x2a0] sm:$0xff]
  %v105 = vld [vmem:[%s0 + $0x2a8] sm:$0xff]
  %v106 = vld [vmem:[%s0 + $0x2b0] sm:$0xff]
  %v107 = vld [vmem:[%s0 + $0x2b8] sm:$0xff]
  %v108 = vld [vmem:[%s0 + $0x2c0] sm:$0xff]
  %v109 = vld [vmem:[%s0 + $0x2c8] sm:$0xff]
  %v110 = vld [vmem:[%s0 + $0x2d0] sm:$0xff]
  %v111 = vld [vmem:[%s0 + $0x2d8] sm:$0xff]
  %v112 = vld [vmem:[%s0 + $0x2e0] sm:$0xff]
  %v113 = vld [vmem:[%s0 + $0x2e8] sm:$0xff]
  %v114 = vld [vmem:[%s0 + $0x2f0] sm:$0xff]
  %v115 = vld [vmem:[%s0 + $0x2f8] sm:$0xff]
  %v116 = vld [vmem:[%s0 + $0x300] sm:$0xff]
  %v117 = vld [vmem:[%s0 + $0x308] sm:$0xff]
  %v118 = vld [vmem:[%s0 + $0x310] sm:$0xff]
  %v119 = vld [vmem:[%s0 + $0x318] sm:$0xff]
  %v120 = vld [vmem:[%s0 + $0x320] sm:$0xff]
  %v121 = vld [vmem:[%s0 + $0x328] sm:$0xff]
  %v122 = vld [vmem:[%s0 + $0x330] sm:$0xff]
  %v123 = vld [vmem:[%s0 + $0x338] sm:$0xff]
  %v124 = vld [vmem:[%s0 + $0x340] sm:$0xff]
  %v125 = vld [vmem:[%s0 + $0x348] sm:$0xff]
  %v126 = vld [vmem:[%s0 + $0x350] sm:$0xff]
  %v127 = vld [vmem:[%s0 + $0x358] sm:$0xff]
  %v128 = vld [vmem:[%s0 + $0x360] sm:$0xff]
  %v129 = vld [vmem:[%s0 + $0x368] sm:$0xff]
  %v130 = vld [vmem:[%s0 + $0x370] sm:$0xff]
  %v131 = vld [vmem:[%s0 + $0x378] sm:$0xff]
  %v132 = vld [vmem:[%s0 + $0x380] sm:$0xff]
  %v133 = vld [vmem:[%s0 + $0x388] sm:$0xff]
  %v134 = vld [vmem:[%s0 + $0x390] sm:$0xff]
  %v135 = vld [vmem:[%s0 + $0x398] sm:$0xff]
  %v136 = vld [vmem:[%s0 + $0x3a0] sm:$0xff]
  %v137 = vld [vmem:[%s0 + $0x3a8] sm:$0xff]
  %v138 = vld [vmem:[%s0 + $0x3b0] sm:$0xff]
  %v139 = vld [vmem:[%s0 + $0x3b8] sm:$0xff]
  %v140 = vld [vmem:[%s0 + $0x3c0] sm:$0xff]
  %v141 = vld [vmem:[%s0 + $0x3c8] sm:$0xff]
  %v142 = vld [vmem:[%s0 + $0x3d0] sm:$0xff]
  %v143 = vld [vmem:[%s0 + $0x3d8] sm:$0xff]
  %v144 = vld [vmem:[%s0 + $0x3e0] sm:$0xff]
  %v145 = vld [vmem:[%s0 + $0x3e8] sm:$0xff]
  %v146 = vld [vmem:[%s0 + $0x3f0] sm:$0xff]
  %v147 = vld [vmem:[%s0 + $0x3f8] sm:$0xff]
  %v148 = vadd.f32 %v20, %v21
  %149 = vadd.xlane.f32.xlu0 %v148
  %v150 = vpop.xlane.xlu0 %149
  %v151 = vadd.f32 %v22, %v23
  %152 = vadd.xlane.f32.xlu0 %v151
  %v153 = vpop.xlane.xlu0 %152
  %v154 = vadd.f32 %v24, %v25
  %155 = vadd.xlane.f32.xlu0 %v154
  %v156 = vpop.xlane.xlu0 %155
  %v157 = vadd.f32 %v26, %v27
  %158 = vadd.xlane.f32.xlu0 %v157
  %v159 = vpop.xlane.xlu0 %158
  %v160 = vadd.f32 %v28, %v29
  %161 = vadd.xlane.f32.xlu0 %v160
  %v162 = vpop.xlane.xlu0 %161
  %v163 = vadd.f32 %v30, %v31
  %164 = vadd.xlane.f32.xlu0 %v163
  %v165 = vpop.xlane.xlu0 %164
  %v166 = vadd.f32 %v32, %v33
  %167 = vadd.xlane.f32.xlu0 %v166
  %v168 = vpop.xlane.xlu0 %167
  %v169 = vadd.f32 %v34, %v35
  %170 = vadd.xlane.f32.xlu0 %v169
  %v171 = vpop.xlane.xlu0 %170
  %v172 = vadd.f32 %v36, %v37
  %173 = vadd.xlane.f32.xlu0 %v172
  %v174 = vpop.xlane.xlu0 %173
  %v175 = vadd.f32 %v38, %v39
  %176 = vadd.xlane.f32.xlu0 %v175
  %v177 = vpop.xlane.xlu0 %176
  %v178 = vadd.f32 %v40, %v41
  %179 = vadd.xlane.f32.xlu0 %v178
  %v180 = vpop.xlane.xlu0 %179
  %v181 = vadd.f32 %v42, %v43
  %182 = vadd.xlane.f32.xlu0 %v181
  %v183 = vpop.xlane.xlu0 %182
  %v184 = vadd.f32 %v44, %v45
  %185 = vadd.xlane.f32.xlu0 %v184
  %v186 = vpop.xlane.xlu0 %185
  %v187 = vadd.f32 %v46, %v47
  %188 = vadd.xlane.f32.xlu0 %v187
  %v189 = vpop.xlane.xlu0 %188
  %v190 = vadd.f32 %v48, %v49
  %191 = vadd.xlane.f32.xlu0 %v190
  %v192 = vpop.xlane.xlu0 %191
  %v193 = vadd.f32 %v50, %v51
  %194 = vadd.xlane.f32.xlu0 %v193
  %v195 = vpop.xlane.xlu0 %194
  %v196 = vadd.f32 %v52, %v53
  %197 = vadd.xlane.f32.xlu0 %v196
  %v198 = vpop.xlane.xlu0 %197
  %v199 = vadd.f32 %v54, %v55
  %200 = vadd.xlane.f32.xlu0 %v199
  %v201 = vpop.xlane.xlu0 %200
  %v202 = vadd.f32 %v56, %v57
  %203 = vadd.xlane.f32.xlu0 %v202
  %v204 = vpop.xlane.xlu0 %203
  %v205 = vadd.f32 %v58, %v59
  %206 = vadd.xlane.f32.xlu0 %v205
  %v207 = vpop.xlane.xlu0 %206
  %v208 = vadd.f32 %v60, %v61
  %209 = vadd.xlane.f32.xlu0 %v208
  %v210 = vpop.xlane.xlu0 %209
  %v211 = vadd.f32 %v62, %v63
  %212 = vadd.xlane.f32.xlu0 %v211
  %v213 = vpop.xlane.xlu0 %212
  %v214 = vadd.f32 %v64, %v65
  %215 = vadd.xlane.f32.xlu0 %v214
  %v216 = vpop.xlane.xlu0 %215
  %v217 = vadd.f32 %v66, %v67
  %218 = vadd.xlane.f32.xlu0 %v217
  %v219 = vpop.xlane.xlu0 %218
  %v220 = vadd.f32 %v68, %v69
  %221 = vadd.xlane.f32.xlu0 %v220
  %v222 = vpop.xlane.xlu0 %221
  %v223 = vadd.f32 %v70, %v71
  %224 = vadd.xlane.f32.xlu0 %v223
  %v225 = vpop.xlane.xlu0 %224
  %v226 = vadd.f32 %v72, %v73
  %227 = vadd.xlane.f32.xlu0 %v226
  %v228 = vpop.xlane.xlu0 %227
  %v229 = vadd.f32 %v74, %v75
  %230 = vadd.xlane.f32.xlu0 %v229
  %v231 = vpop.xlane.xlu0 %230
  %v232 = vadd.f32 %v76, %v77
  %233 = vadd.xlane.f32.xlu0 %v232
  %v234 = vpop.xlane.xlu0 %233
  %v235 = vadd.f32 %v78, %v79
  %236 = vadd.xlane.f32.xlu0 %v235
  %v237 = vpop.xlane.xlu0 %236
  %v238 = vadd.f32 %v80, %v81
  %239 = vadd.xlane.f32.xlu0 %v238
  %v240 = vpop.xlane.xlu0 %239
  %v241 = vadd.f32 %v82, %v83
  %242 = vadd.xlane.f32.xlu0 %v241
  %v243 = vpop.xlane.xlu0 %242
  %v244 = vadd.f32 %v84, %v85
  %245 = vadd.xlane.f32.xlu0 %v244
  %v246 = vpop.xlane.xlu0 %245
  %v247 = vadd.f32 %v86, %v87
  %248 = vadd.xlane.f32.xlu0 %v247
  %v249 = vpop.xlane.xlu0 %248
  %v250 = vadd.f32 %v88, %v89
  %251 = vadd.xlane.f32.xlu0 %v250
  %v252 = vpop.xlane.xlu0 %251
  %v253 = vadd.f32 %v90, %v91
  %254 = vadd.xlane.f32.xlu0 %v253
  %v255 = vpop.xlane.xlu0 %254
  %v256 = vadd.f32 %v92, %v93
  %257 = vadd.xlane.f32.xlu0 %v256
  %v258 = vpop.xlane.xlu0 %257
  %v259 = vadd.f32 %v94, %v95
  %260 = vadd.xlane.f32.xlu0 %v259
  %v261 = vpop.xlane.xlu0 %260
  %v262 = vadd.f32 %v96, %v97
  %263 = vadd.xlane.f32.xlu0 %v262
  %v264 = vpop.xlane.xlu0 %263
  %v265 = vadd.f32 %v98, %v99
  %266 = vadd.xlane.f32.xlu0 %v265
  %v267 = vpop.xlane.xlu0 %266
  %v268 = vadd.f32 %v100, %v101
  %269 = vadd.xlane.f32.xlu0 %v268
  %v270 = vpop.xlane.xlu0 %269
  %v271 = vadd.f32 %v102, %v103
  %272 = vadd.xlane.f32.xlu0 %v271
  %v273 = vpop.xlane.xlu0 %272
  %v274 = vadd.f32 %v104, %v105
  %275 = vadd.xlane.f32.xlu0 %v274
  %v276 = vpop.xlane.xlu0 %275
  %v277 = vadd.f32 %v106, %v107
  %278 = vadd.xlane.f32.xlu0 %v277
  %v279 = vpop.xlane.xlu0 %278
  %v280 = vadd.f32 %v108, %v109
  %281 = vadd.xlane.f32.xlu0 %v280
  %v282 = vpop.xlane.xlu0 %281
  %v283 = vadd.f32 %v110, %v111
  %284 = vadd.xlane.f32.xlu0 %v283
  %v285 = vpop.xlane.xlu0 %284
  %v286 = vadd.f32 %v112, %v113
  %287 = vadd.xlane.f32.xlu0 %v286
  %v288 = vpop.xlane.xlu0 %287
  %v289 = vadd.f32 %v114, %v115
  %290 = vadd.xlane.f32.xlu0 %v289
  %v291 = vpop.xlane.xlu0 %290
  %v292 = vadd.f32 %v116, %v117
  %293 = vadd.xlane.f32.xlu0 %v292
  %v294 = vpop.xlane.xlu0 %293
  %v295 = vadd.f32 %v118, %v119
  %296 = vadd.xlane.f32.xlu0 %v295
  %v297 = vpop.xlane.xlu0 %296
  %v298 = vadd.f32 %v120, %v121
  %299 = vadd.xlane.f32.xlu0 %v298
  %v300 = vpop.xlane.xlu0 %299
  %v301 = vadd.f32 %v122, %v123
  %302 = vadd.xlane.f32.xlu0 %v301
  %v303 = vpop.xlane.xlu0 %302
  %v304 = vadd.f32 %v124, %v125
  %305 = vadd.xlane.f32.xlu0 %v304
  %v306 = vpop.xlane.xlu0 %305
  %v307 = vadd.f32 %v126, %v127
  %308 = vadd.xlane.f32.xlu0 %v307
  %v309 = vpop.xlane.xlu0 %308
  %v310 = vadd.f32 %v128, %v129
  %311 = vadd.xlane.f32.xlu0 %v310
  %v312 = vpop.xlane.xlu0 %311
  %v313 = vadd.f32 %v130, %v131
  %314 = vadd.xlane.f32.xlu0 %v313
  %v315 = vpop.xlane.xlu0 %314
  %v316 = vadd.f32 %v132, %v133
  %317 = vadd.xlane.f32.xlu0 %v316
  %v318 = vpop.xlane.xlu0 %317
  %v319 = vadd.f32 %v134, %v135
  %320 = vadd.xlane.f32.xlu0 %v319
  %v321 = vpop.xlane.xlu0 %320
  %v322 = vadd.f32 %v136, %v137
  %323 = vadd.xlane.f32.xlu0 %v322
  %v324 = vpop.xlane.xlu0 %323
  %v325 = vadd.f32 %v138, %v139
  %326 = vadd.xlane.f32.xlu0 %v325
  %v327 = vpop.xlane.xlu0 %326
  %v328 = vadd.f32 %v140, %v141
  %329 = vadd.xlane.f32.xlu0 %v328
  %v330 = vpop.xlane.xlu0 %329
  %v331 = vadd.f32 %v142, %v143
  %332 = vadd.xlane.f32.xlu0 %v331
  %v333 = vpop.xlane.xlu0 %332
  %v334 = vadd.f32 %v144, %v145
  %335 = vadd.xlane.f32.xlu0 %v334
  %v336 = vpop.xlane.xlu0 %335
  %v337 = vadd.f32 %v146, %v147
  %338 = vadd.xlane.f32.xlu0 %v337
  %v339 = vpop.xlane.xlu0 %338
  %v405 = vunpack.c.l.s4 269488144
  %v406 = vunpack.c.0.s8 %v405
  %v407 = vlaneseq
  %v408 = vshrl.u32 %v407, 7
  %v409 = vsub.s32 %v406, %v408
  %v410 = vrot.slane %v150, %v409
  %v412 = vunpack.c.l.s4 842150450
  %v413 = vunpack.c.0.s8 %v412
  %v414 = vlaneseq
  %v415 = vshrl.u32 %v414, 7
  %v416 = vsub.s32 %v413, %v415
  %v417 = vrot.slane %v150, %v416
  %v419 = vunpack.c.l.s4 1414812756
  %v420 = vunpack.c.0.s8 %v419
  %v421 = vlaneseq
  %v422 = vshrl.u32 %v421, 7
  %v423 = vsub.s32 %v420, %v422
  %v424 = vrot.slane %v150, %v423
  %v426 = vunpack.c.l.s4 1987475062
  %v427 = vunpack.c.0.s8 %v426
  %v428 = vlaneseq
  %v429 = vshrl.u32 %v428, 7
  %v430 = vsub.s32 %v427, %v429
  %v431 = vrot.slane %v150, %v430
  %v433 = vunpack.c.l.s4 269488144
  %v434 = vunpack.c.0.s8 %v433
  %v435 = vlaneseq
  %v436 = vshrl.u32 %v435, 7
  %v437 = vsub.s32 %v434, %v436
  %v438 = vrot.slane %v153, %v437
  %v440 = vunpack.c.l.s4 842150450
  %v441 = vunpack.c.0.s8 %v440
  %v442 = vlaneseq
  %v443 = vshrl.u32 %v442, 7
  %v444 = vsub.s32 %v441, %v443
  %v445 = vrot.slane %v153, %v444
  %v447 = vunpack.c.l.s4 1414812756
  %v448 = vunpack.c.0.s8 %v447
  %v449 = vlaneseq
  %v450 = vshrl.u32 %v449, 7
  %v451 = vsub.s32 %v448, %v450
  %v452 = vrot.slane %v153, %v451
  %v454 = vunpack.c.l.s4 1987475062
  %v455 = vunpack.c.0.s8 %v454
  %v456 = vlaneseq
  %v457 = vshrl.u32 %v456, 7
  %v458 = vsub.s32 %v455, %v457
  %v459 = vrot.slane %v153, %v458
  %v461 = vunpack.c.l.s4 269488144
  %v462 = vunpack.c.0.s8 %v461
  %v463 = vlaneseq
  %v464 = vshrl.u32 %v463, 7
  %v465 = vsub.s32 %v462, %v464
  %v466 = vrot.slane %v156, %v465
  %v468 = vunpack.c.l.s4 842150450
  %v469 = vunpack.c.0.s8 %v468
  %v470 = vlaneseq
  %v471 = vshrl.u32 %v470, 7
  %v472 = vsub.s32 %v469, %v471
  %v473 = vrot.slane %v156, %v472
  %v475 = vunpack.c.l.s4 1414812756
  %v476 = vunpack.c.0.s8 %v475
  %v477 = vlaneseq
  %v478 = vshrl.u32 %v477, 7
  %v479 = vsub.s32 %v476, %v478
  %v480 = vrot.slane %v156, %v479
  %v482 = vunpack.c.l.s4 1987475062
  %v483 = vunpack.c.0.s8 %v482
  %v484 = vlaneseq
  %v485 = vshrl.u32 %v484, 7
  %v486 = vsub.s32 %v483, %v485
  %v487 = vrot.slane %v156, %v486
  %v489 = vunpack.c.l.s4 269488144
  %v490 = vunpack.c.0.s8 %v489
  %v491 = vlaneseq
  %v492 = vshrl.u32 %v491, 7
  %v493 = vsub.s32 %v490, %v492
  %v494 = vrot.slane %v159, %v493
  %v496 = vunpack.c.l.s4 842150450
  %v497 = vunpack.c.0.s8 %v496
  %v498 = vlaneseq
  %v499 = vshrl.u32 %v498, 7
  %v500 = vsub.s32 %v497, %v499
  %v501 = vrot.slane %v159, %v500
  %v503 = vunpack.c.l.s4 1414812756
  %v504 = vunpack.c.0.s8 %v503
  %v505 = vlaneseq
  %v506 = vshrl.u32 %v505, 7
  %v507 = vsub.s32 %v504, %v506
  %v508 = vrot.slane %v159, %v507
  %v510 = vunpack.c.l.s4 1987475062
  %v511 = vunpack.c.0.s8 %v510
  %v512 = vlaneseq
  %v513 = vshrl.u32 %v512, 7
  %v514 = vsub.s32 %v511, %v513
  %v515 = vrot.slane %v159, %v514
  %v517 = vunpack.c.l.s4 269488144
  %v518 = vunpack.c.0.s8 %v517
  %v519 = vlaneseq
  %v520 = vshrl.u32 %v519, 7
  %v521 = vsub.s32 %v518, %v520
  %v522 = vrot.slane %v162, %v521
  %v524 = vunpack.c.l.s4 842150450
  %v525 = vunpack.c.0.s8 %v524
  %v526 = vlaneseq
  %v527 = vshrl.u32 %v526, 7
  %v528 = vsub.s32 %v525, %v527
  %v529 = vrot.slane %v162, %v528
  %v531 = vunpack.c.l.s4 1414812756
  %v532 = vunpack.c.0.s8 %v531
  %v533 = vlaneseq
  %v534 = vshrl.u32 %v533, 7
  %v535 = vsub.s32 %v532, %v534
  %v536 = vrot.slane %v162, %v535
  %v538 = vunpack.c.l.s4 1987475062
  %v539 = vunpack.c.0.s8 %v538
  %v540 = vlaneseq
  %v541 = vshrl.u32 %v540, 7
  %v542 = vsub.s32 %v539, %v541
  %v543 = vrot.slane %v162, %v542
  %v545 = vunpack.c.l.s4 269488144
  %v546 = vunpack.c.0.s8 %v545
  %v547 = vlaneseq
  %v548 = vshrl.u32 %v547, 7
  %v549 = vsub.s32 %v546, %v548
  %v550 = vrot.slane %v165, %v549
  %v552 = vunpack.c.l.s4 842150450
  %v553 = vunpack.c.0.s8 %v552
  %v554 = vlaneseq
  %v555 = vshrl.u32 %v554, 7
  %v556 = vsub.s32 %v553, %v555
  %v557 = vrot.slane %v165, %v556
  %v559 = vunpack.c.l.s4 1414812756
  %v560 = vunpack.c.0.s8 %v559
  %v561 = vlaneseq
  %v562 = vshrl.u32 %v561, 7
  %v563 = vsub.s32 %v560, %v562
  %v564 = vrot.slane %v165, %v563
  %v566 = vunpack.c.l.s4 1987475062
  %v567 = vunpack.c.0.s8 %v566
  %v568 = vlaneseq
  %v569 = vshrl.u32 %v568, 7
  %v570 = vsub.s32 %v567, %v569
  %v571 = vrot.slane %v165, %v570
  %v573 = vunpack.c.l.s4 269488144
  %v574 = vunpack.c.0.s8 %v573
  %v575 = vlaneseq
  %v576 = vshrl.u32 %v575, 7
  %v577 = vsub.s32 %v574, %v576
  %v578 = vrot.slane %v168, %v577
  %v580 = vunpack.c.l.s4 842150450
  %v581 = vunpack.c.0.s8 %v580
  %v582 = vlaneseq
  %v583 = vshrl.u32 %v582, 7
  %v584 = vsub.s32 %v581, %v583
  %v585 = vrot.slane %v168, %v584
  %v587 = vunpack.c.l.s4 1414812756
  %v588 = vunpack.c.0.s8 %v587
  %v589 = vlaneseq
  %v590 = vshrl.u32 %v589, 7
  %v591 = vsub.s32 %v588, %v590
  %v592 = vrot.slane %v168, %v591
  %v594 = vunpack.c.l.s4 1987475062
  %v595 = vunpack.c.0.s8 %v594
  %v596 = vlaneseq
  %v597 = vshrl.u32 %v596, 7
  %v598 = vsub.s32 %v595, %v597
  %v599 = vrot.slane %v168, %v598
  %v601 = vunpack.c.l.s4 269488144
  %v602 = vunpack.c.0.s8 %v601
  %v603 = vlaneseq
  %v604 = vshrl.u32 %v603, 7
  %v605 = vsub.s32 %v602, %v604
  %v606 = vrot.slane %v171, %v605
  %v608 = vunpack.c.l.s4 842150450
  %v609 = vunpack.c.0.s8 %v608
  %v610 = vlaneseq
  %v611 = vshrl.u32 %v610, 7
  %v612 = vsub.s32 %v609, %v611
  %v613 = vrot.slane %v171, %v612
  %v615 = vunpack.c.l.s4 1414812756
  %v616 = vunpack.c.0.s8 %v615
  %v617 = vlaneseq
  %v618 = vshrl.u32 %v617, 7
  %v619 = vsub.s32 %v616, %v618
  %v620 = vrot.slane %v171, %v619
  %v622 = vunpack.c.l.s4 1987475062
  %v623 = vunpack.c.0.s8 %v622
  %v624 = vlaneseq
  %v625 = vshrl.u32 %v624, 7
  %v626 = vsub.s32 %v623, %v625
  %v627 = vrot.slane %v171, %v626
  %v629 = vunpack.c.l.s4 269488144
  %v630 = vunpack.c.0.s8 %v629
  %v631 = vlaneseq
  %v632 = vshrl.u32 %v631, 7
  %v633 = vsub.s32 %v630, %v632
  %v634 = vrot.slane %v174, %v633
  %v636 = vunpack.c.l.s4 842150450
  %v637 = vunpack.c.0.s8 %v636
  %v638 = vlaneseq
  %v639 = vshrl.u32 %v638, 7
  %v640 = vsub.s32 %v637, %v639
  %v641 = vrot.slane %v174, %v640
  %v643 = vunpack.c.l.s4 1414812756
  %v644 = vunpack.c.0.s8 %v643
  %v645 = vlaneseq
  %v646 = vshrl.u32 %v645, 7
  %v647 = vsub.s32 %v644, %v646
  %v648 = vrot.slane %v174, %v647
  %v650 = vunpack.c.l.s4 1987475062
  %v651 = vunpack.c.0.s8 %v650
  %v652 = vlaneseq
  %v653 = vshrl.u32 %v652, 7
  %v654 = vsub.s32 %v651, %v653
  %v655 = vrot.slane %v174, %v654
  %v657 = vunpack.c.l.s4 269488144
  %v658 = vunpack.c.0.s8 %v657
  %v659 = vlaneseq
  %v660 = vshrl.u32 %v659, 7
  %v661 = vsub.s32 %v658, %v660
  %v662 = vrot.slane %v177, %v661
  %v664 = vunpack.c.l.s4 842150450
  %v665 = vunpack.c.0.s8 %v664
  %v666 = vlaneseq
  %v667 = vshrl.u32 %v666, 7
  %v668 = vsub.s32 %v665, %v667
  %v669 = vrot.slane %v177, %v668
  %v671 = vunpack.c.l.s4 1414812756
  %v672 = vunpack.c.0.s8 %v671
  %v673 = vlaneseq
  %v674 = vshrl.u32 %v673, 7
  %v675 = vsub.s32 %v672, %v674
  %v676 = vrot.slane %v177, %v675
  %v678 = vunpack.c.l.s4 1987475062
  %v679 = vunpack.c.0.s8 %v678
  %v680 = vlaneseq
  %v681 = vshrl.u32 %v680, 7
  %v682 = vsub.s32 %v679, %v681
  %v683 = vrot.slane %v177, %v682
  %v685 = vunpack.c.l.s4 269488144
  %v686 = vunpack.c.0.s8 %v685
  %v687 = vlaneseq
  %v688 = vshrl.u32 %v687, 7
  %v689 = vsub.s32 %v686, %v688
  %v690 = vrot.slane %v180, %v689
  %v692 = vunpack.c.l.s4 842150450
  %v693 = vunpack.c.0.s8 %v692
  %v694 = vlaneseq
  %v695 = vshrl.u32 %v694, 7
  %v696 = vsub.s32 %v693, %v695
  %v697 = vrot.slane %v180, %v696
  %v699 = vunpack.c.l.s4 1414812756
  %v700 = vunpack.c.0.s8 %v699
  %v701 = vlaneseq
  %v702 = vshrl.u32 %v701, 7
  %v703 = vsub.s32 %v700, %v702
  %v704 = vrot.slane %v180, %v703
  %v706 = vunpack.c.l.s4 1987475062
  %v707 = vunpack.c.0.s8 %v706
  %v708 = vlaneseq
  %v709 = vshrl.u32 %v708, 7
  %v710 = vsub.s32 %v707, %v709
  %v711 = vrot.slane %v180, %v710
  %v713 = vunpack.c.l.s4 269488144
  %v714 = vunpack.c.0.s8 %v713
  %v715 = vlaneseq
  %v716 = vshrl.u32 %v715, 7
  %v717 = vsub.s32 %v714, %v716
  %v718 = vrot.slane %v183, %v717
  %v720 = vunpack.c.l.s4 842150450
  %v721 = vunpack.c.0.s8 %v720
  %v722 = vlaneseq
  %v723 = vshrl.u32 %v722, 7
  %v724 = vsub.s32 %v721, %v723
  %v725 = vrot.slane %v183, %v724
  %v727 = vunpack.c.l.s4 1414812756
  %v728 = vunpack.c.0.s8 %v727
  %v729 = vlaneseq
  %v730 = vshrl.u32 %v729, 7
  %v731 = vsub.s32 %v728, %v730
  %v732 = vrot.slane %v183, %v731
  %v734 = vunpack.c.l.s4 1987475062
  %v735 = vunpack.c.0.s8 %v734
  %v736 = vlaneseq
  %v737 = vshrl.u32 %v736, 7
  %v738 = vsub.s32 %v735, %v737
  %v739 = vrot.slane %v183, %v738
  %v741 = vunpack.c.l.s4 269488144
  %v742 = vunpack.c.0.s8 %v741
  %v743 = vlaneseq
  %v744 = vshrl.u32 %v743, 7
  %v745 = vsub.s32 %v742, %v744
  %v746 = vrot.slane %v186, %v745
  %v748 = vunpack.c.l.s4 842150450
  %v749 = vunpack.c.0.s8 %v748
  %v750 = vlaneseq
  %v751 = vshrl.u32 %v750, 7
  %v752 = vsub.s32 %v749, %v751
  %v753 = vrot.slane %v186, %v752
  %v755 = vunpack.c.l.s4 1414812756
  %v756 = vunpack.c.0.s8 %v755
  %v757 = vlaneseq
  %v758 = vshrl.u32 %v757, 7
  %v759 = vsub.s32 %v756, %v758
  %v760 = vrot.slane %v186, %v759
  %v762 = vunpack.c.l.s4 1987475062
  %v763 = vunpack.c.0.s8 %v762
  %v764 = vlaneseq
  %v765 = vshrl.u32 %v764, 7
  %v766 = vsub.s32 %v763, %v765
  %v767 = vrot.slane %v186, %v766
  %v769 = vunpack.c.l.s4 269488144
  %v770 = vunpack.c.0.s8 %v769
  %v771 = vlaneseq
  %v772 = vshrl.u32 %v771, 7
  %v773 = vsub.s32 %v770, %v772
  %v774 = vrot.slane %v189, %v773
  %v776 = vunpack.c.l.s4 842150450
  %v777 = vunpack.c.0.s8 %v776
  %v778 = vlaneseq
  %v779 = vshrl.u32 %v778, 7
  %v780 = vsub.s32 %v777, %v779
  %v781 = vrot.slane %v189, %v780
  %v783 = vunpack.c.l.s4 1414812756
  %v784 = vunpack.c.0.s8 %v783
  %v785 = vlaneseq
  %v786 = vshrl.u32 %v785, 7
  %v787 = vsub.s32 %v784, %v786
  %v788 = vrot.slane %v189, %v787
  %v790 = vunpack.c.l.s4 1987475062
  %v791 = vunpack.c.0.s8 %v790
  %v792 = vlaneseq
  %v793 = vshrl.u32 %v792, 7
  %v794 = vsub.s32 %v791, %v793
  %v795 = vrot.slane %v189, %v794
  %v797 = vunpack.c.l.s4 269488144
  %v798 = vunpack.c.0.s8 %v797
  %v799 = vlaneseq
  %v800 = vshrl.u32 %v799, 7
  %v801 = vsub.s32 %v798, %v800
  %v802 = vrot.slane %v192, %v801
  %v804 = vunpack.c.l.s4 842150450
  %v805 = vunpack.c.0.s8 %v804
  %v806 = vlaneseq
  %v807 = vshrl.u32 %v806, 7
  %v808 = vsub.s32 %v805, %v807
  %v809 = vrot.slane %v192, %v808
  %v811 = vunpack.c.l.s4 1414812756
  %v812 = vunpack.c.0.s8 %v811
  %v813 = vlaneseq
  %v814 = vshrl.u32 %v813, 7
  %v815 = vsub.s32 %v812, %v814
  %v816 = vrot.slane %v192, %v815
  %v818 = vunpack.c.l.s4 1987475062
  %v819 = vunpack.c.0.s8 %v818
  %v820 = vlaneseq
  %v821 = vshrl.u32 %v820, 7
  %v822 = vsub.s32 %v819, %v821
  %v823 = vrot.slane %v192, %v822
  %v825 = vunpack.c.l.s4 269488144
  %v826 = vunpack.c.0.s8 %v825
  %v827 = vlaneseq
  %v828 = vshrl.u32 %v827, 7
  %v829 = vsub.s32 %v826, %v828
  %v830 = vrot.slane %v195, %v829
  %v832 = vunpack.c.l.s4 842150450
  %v833 = vunpack.c.0.s8 %v832
  %v834 = vlaneseq
  %v835 = vshrl.u32 %v834, 7
  %v836 = vsub.s32 %v833, %v835
  %v837 = vrot.slane %v195, %v836
  %v839 = vunpack.c.l.s4 1414812756
  %v840 = vunpack.c.0.s8 %v839
  %v841 = vlaneseq
  %v842 = vshrl.u32 %v841, 7
  %v843 = vsub.s32 %v840, %v842
  %v844 = vrot.slane %v195, %v843
  %v846 = vunpack.c.l.s4 1987475062
  %v847 = vunpack.c.0.s8 %v846
  %v848 = vlaneseq
  %v849 = vshrl.u32 %v848, 7
  %v850 = vsub.s32 %v847, %v849
  %v851 = vrot.slane %v195, %v850
  %v853 = vunpack.c.l.s4 269488144
  %v854 = vunpack.c.0.s8 %v853
  %v855 = vlaneseq
  %v856 = vshrl.u32 %v855, 7
  %v857 = vsub.s32 %v854, %v856
  %v858 = vrot.slane %v198, %v857
  %v860 = vunpack.c.l.s4 842150450
  %v861 = vunpack.c.0.s8 %v860
  %v862 = vlaneseq
  %v863 = vshrl.u32 %v862, 7
  %v864 = vsub.s32 %v861, %v863
  %v865 = vrot.slane %v198, %v864
  %v867 = vunpack.c.l.s4 1414812756
  %v868 = vunpack.c.0.s8 %v867
  %v869 = vlaneseq
  %v870 = vshrl.u32 %v869, 7
  %v871 = vsub.s32 %v868, %v870
  %v872 = vrot.slane %v198, %v871
  %v874 = vunpack.c.l.s4 1987475062
  %v875 = vunpack.c.0.s8 %v874
  %v876 = vlaneseq
  %v877 = vshrl.u32 %v876, 7
  %v878 = vsub.s32 %v875, %v877
  %v879 = vrot.slane %v198, %v878
  %v881 = vunpack.c.l.s4 269488144
  %v882 = vunpack.c.0.s8 %v881
  %v883 = vlaneseq
  %v884 = vshrl.u32 %v883, 7
  %v885 = vsub.s32 %v882, %v884
  %v886 = vrot.slane %v201, %v885
  %v888 = vunpack.c.l.s4 842150450
  %v889 = vunpack.c.0.s8 %v888
  %v890 = vlaneseq
  %v891 = vshrl.u32 %v890, 7
  %v892 = vsub.s32 %v889, %v891
  %v893 = vrot.slane %v201, %v892
  %v895 = vunpack.c.l.s4 1414812756
  %v896 = vunpack.c.0.s8 %v895
  %v897 = vlaneseq
  %v898 = vshrl.u32 %v897, 7
  %v899 = vsub.s32 %v896, %v898
  %v900 = vrot.slane %v201, %v899
  %v902 = vunpack.c.l.s4 1987475062
  %v903 = vunpack.c.0.s8 %v902
  %v904 = vlaneseq
  %v905 = vshrl.u32 %v904, 7
  %v906 = vsub.s32 %v903, %v905
  %v907 = vrot.slane %v201, %v906
  %v909 = vunpack.c.l.s4 269488144
  %v910 = vunpack.c.0.s8 %v909
  %v911 = vlaneseq
  %v912 = vshrl.u32 %v911, 7
  %v913 = vsub.s32 %v910, %v912
  %v914 = vrot.slane %v204, %v913
  %v916 = vunpack.c.l.s4 842150450
  %v917 = vunpack.c.0.s8 %v916
  %v918 = vlaneseq
  %v919 = vshrl.u32 %v918, 7
  %v920 = vsub.s32 %v917, %v919
  %v921 = vrot.slane %v204, %v920
  %v923 = vunpack.c.l.s4 1414812756
  %v924 = vunpack.c.0.s8 %v923
  %v925 = vlaneseq
  %v926 = vshrl.u32 %v925, 7
  %v927 = vsub.s32 %v924, %v926
  %v928 = vrot.slane %v204, %v927
  %v930 = vunpack.c.l.s4 1987475062
  %v931 = vunpack.c.0.s8 %v930
  %v932 = vlaneseq
  %v933 = vshrl.u32 %v932, 7
  %v934 = vsub.s32 %v931, %v933
  %v935 = vrot.slane %v204, %v934
  %v937 = vunpack.c.l.s4 269488144
  %v938 = vunpack.c.0.s8 %v937
  %v939 = vlaneseq
  %v940 = vshrl.u32 %v939, 7
  %v941 = vsub.s32 %v938, %v940
  %v942 = vrot.slane %v207, %v941
  %v944 = vunpack.c.l.s4 842150450
  %v945 = vunpack.c.0.s8 %v944
  %v946 = vlaneseq
  %v947 = vshrl.u32 %v946, 7
  %v948 = vsub.s32 %v945, %v947
  %v949 = vrot.slane %v207, %v948
  %v951 = vunpack.c.l.s4 1414812756
  %v952 = vunpack.c.0.s8 %v951
  %v953 = vlaneseq
  %v954 = vshrl.u32 %v953, 7
  %v955 = vsub.s32 %v952, %v954
  %v956 = vrot.slane %v207, %v955
  %v958 = vunpack.c.l.s4 1987475062
  %v959 = vunpack.c.0.s8 %v958
  %v960 = vlaneseq
  %v961 = vshrl.u32 %v960, 7
  %v962 = vsub.s32 %v959, %v961
  %v963 = vrot.slane %v207, %v962
  %v965 = vunpack.c.l.s4 269488144
  %v966 = vunpack.c.0.s8 %v965
  %v967 = vlaneseq
  %v968 = vshrl.u32 %v967, 7
  %v969 = vsub.s32 %v966, %v968
  %v970 = vrot.slane %v210, %v969
  %v972 = vunpack.c.l.s4 842150450
  %v973 = vunpack.c.0.s8 %v972
  %v974 = vlaneseq
  %v975 = vshrl.u32 %v974, 7
  %v976 = vsub.s32 %v973, %v975
  %v977 = vrot.slane %v210, %v976
  %v979 = vunpack.c.l.s4 1414812756
  %v980 = vunpack.c.0.s8 %v979
  %v981 = vlaneseq
  %v982 = vshrl.u32 %v981, 7
  %v983 = vsub.s32 %v980, %v982
  %v984 = vrot.slane %v210, %v983
  %v986 = vunpack.c.l.s4 1987475062
  %v987 = vunpack.c.0.s8 %v986
  %v988 = vlaneseq
  %v989 = vshrl.u32 %v988, 7
  %v990 = vsub.s32 %v987, %v989
  %v991 = vrot.slane %v210, %v990
  %v993 = vunpack.c.l.s4 269488144
  %v994 = vunpack.c.0.s8 %v993
  %v995 = vlaneseq
  %v996 = vshrl.u32 %v995, 7
  %v997 = vsub.s32 %v994, %v996
  %v998 = vrot.slane %v213, %v997
  %v1000 = vunpack.c.l.s4 842150450
  %v1001 = vunpack.c.0.s8 %v1000
  %v1002 = vlaneseq
  %v1003 = vshrl.u32 %v1002, 7
  %v1004 = vsub.s32 %v1001, %v1003
  %v1005 = vrot.slane %v213, %v1004
  %v1007 = vunpack.c.l.s4 1414812756
  %v1008 = vunpack.c.0.s8 %v1007
  %v1009 = vlaneseq
  %v1010 = vshrl.u32 %v1009, 7
  %v1011 = vsub.s32 %v1008, %v1010
  %v1012 = vrot.slane %v213, %v1011
  %v1014 = vunpack.c.l.s4 1987475062
  %v1015 = vunpack.c.0.s8 %v1014
  %v1016 = vlaneseq
  %v1017 = vshrl.u32 %v1016, 7
  %v1018 = vsub.s32 %v1015, %v1017
  %v1019 = vrot.slane %v213, %v1018
  %v1021 = vunpack.c.l.s4 269488144
  %v1022 = vunpack.c.0.s8 %v1021
  %v1023 = vlaneseq
  %v1024 = vshrl.u32 %v1023, 7
  %v1025 = vsub.s32 %v1022, %v1024
  %v1026 = vrot.slane %v216, %v1025
  %v1028 = vunpack.c.l.s4 842150450
  %v1029 = vunpack.c.0.s8 %v1028
  %v1030 = vlaneseq
  %v1031 = vshrl.u32 %v1030, 7
  %v1032 = vsub.s32 %v1029, %v1031
  %v1033 = vrot.slane %v216, %v1032
  %v1035 = vunpack.c.l.s4 1414812756
  %v1036 = vunpack.c.0.s8 %v1035
  %v1037 = vlaneseq
  %v1038 = vshrl.u32 %v1037, 7
  %v1039 = vsub.s32 %v1036, %v1038
  %v1040 = vrot.slane %v216, %v1039
  %v1042 = vunpack.c.l.s4 1987475062
  %v1043 = vunpack.c.0.s8 %v1042
  %v1044 = vlaneseq
  %v1045 = vshrl.u32 %v1044, 7
  %v1046 = vsub.s32 %v1043, %v1045
  %v1047 = vrot.slane %v216, %v1046
  %v1049 = vunpack.c.l.s4 269488144
  %v1050 = vunpack.c.0.s8 %v1049
  %v1051 = vlaneseq
  %v1052 = vshrl.u32 %v1051, 7
  %v1053 = vsub.s32 %v1050, %v1052
  %v1054 = vrot.slane %v219, %v1053
  %v1056 = vunpack.c.l.s4 842150450
  %v1057 = vunpack.c.0.s8 %v1056
  %v1058 = vlaneseq
  %v1059 = vshrl.u32 %v1058, 7
  %v1060 = vsub.s32 %v1057, %v1059
  %v1061 = vrot.slane %v219, %v1060
  %v1063 = vunpack.c.l.s4 1414812756
  %v1064 = vunpack.c.0.s8 %v1063
  %v1065 = vlaneseq
  %v1066 = vshrl.u32 %v1065, 7
  %v1067 = vsub.s32 %v1064, %v1066
  %v1068 = vrot.slane %v219, %v1067
  %v1070 = vunpack.c.l.s4 1987475062
  %v1071 = vunpack.c.0.s8 %v1070
  %v1072 = vlaneseq
  %v1073 = vshrl.u32 %v1072, 7
  %v1074 = vsub.s32 %v1071, %v1073
  %v1075 = vrot.slane %v219, %v1074
  %v1077 = vunpack.c.l.s4 269488144
  %v1078 = vunpack.c.0.s8 %v1077
  %v1079 = vlaneseq
  %v1080 = vshrl.u32 %v1079, 7
  %v1081 = vsub.s32 %v1078, %v1080
  %v1082 = vrot.slane %v222, %v1081
  %v1084 = vunpack.c.l.s4 842150450
  %v1085 = vunpack.c.0.s8 %v1084
  %v1086 = vlaneseq
  %v1087 = vshrl.u32 %v1086, 7
  %v1088 = vsub.s32 %v1085, %v1087
  %v1089 = vrot.slane %v222, %v1088
  %v1091 = vunpack.c.l.s4 1414812756
  %v1092 = vunpack.c.0.s8 %v1091
  %v1093 = vlaneseq
  %v1094 = vshrl.u32 %v1093, 7
  %v1095 = vsub.s32 %v1092, %v1094
  %v1096 = vrot.slane %v222, %v1095
  %v1098 = vunpack.c.l.s4 1987475062
  %v1099 = vunpack.c.0.s8 %v1098
  %v1100 = vlaneseq
  %v1101 = vshrl.u32 %v1100, 7
  %v1102 = vsub.s32 %v1099, %v1101
  %v1103 = vrot.slane %v222, %v1102
  %v1105 = vunpack.c.l.s4 269488144
  %v1106 = vunpack.c.0.s8 %v1105
  %v1107 = vlaneseq
  %v1108 = vshrl.u32 %v1107, 7
  %v1109 = vsub.s32 %v1106, %v1108
  %v1110 = vrot.slane %v225, %v1109
  %v1112 = vunpack.c.l.s4 842150450
  %v1113 = vunpack.c.0.s8 %v1112
  %v1114 = vlaneseq
  %v1115 = vshrl.u32 %v1114, 7
  %v1116 = vsub.s32 %v1113, %v1115
  %v1117 = vrot.slane %v225, %v1116
  %v1119 = vunpack.c.l.s4 1414812756
  %v1120 = vunpack.c.0.s8 %v1119
  %v1121 = vlaneseq
  %v1122 = vshrl.u32 %v1121, 7
  %v1123 = vsub.s32 %v1120, %v1122
  %v1124 = vrot.slane %v225, %v1123
  %v1126 = vunpack.c.l.s4 1987475062
  %v1127 = vunpack.c.0.s8 %v1126
  %v1128 = vlaneseq
  %v1129 = vshrl.u32 %v1128, 7
  %v1130 = vsub.s32 %v1127, %v1129
  %v1131 = vrot.slane %v225, %v1130
  %v1133 = vunpack.c.l.s4 269488144
  %v1134 = vunpack.c.0.s8 %v1133
  %v1135 = vlaneseq
  %v1136 = vshrl.u32 %v1135, 7
  %v1137 = vsub.s32 %v1134, %v1136
  %v1138 = vrot.slane %v228, %v1137
  %v1140 = vunpack.c.l.s4 842150450
  %v1141 = vunpack.c.0.s8 %v1140
  %v1142 = vlaneseq
  %v1143 = vshrl.u32 %v1142, 7
  %v1144 = vsub.s32 %v1141, %v1143
  %v1145 = vrot.slane %v228, %v1144
  %v1147 = vunpack.c.l.s4 1414812756
  %v1148 = vunpack.c.0.s8 %v1147
  %v1149 = vlaneseq
  %v1150 = vshrl.u32 %v1149, 7
  %v1151 = vsub.s32 %v1148, %v1150
  %v1152 = vrot.slane %v228, %v1151
  %v1154 = vunpack.c.l.s4 1987475062
  %v1155 = vunpack.c.0.s8 %v1154
  %v1156 = vlaneseq
  %v1157 = vshrl.u32 %v1156, 7
  %v1158 = vsub.s32 %v1155, %v1157
  %v1159 = vrot.slane %v228, %v1158
  %v1161 = vunpack.c.l.s4 269488144
  %v1162 = vunpack.c.0.s8 %v1161
  %v1163 = vlaneseq
  %v1164 = vshrl.u32 %v1163, 7
  %v1165 = vsub.s32 %v1162, %v1164
  %v1166 = vrot.slane %v231, %v1165
  %v1168 = vunpack.c.l.s4 842150450
  %v1169 = vunpack.c.0.s8 %v1168
  %v1170 = vlaneseq
  %v1171 = vshrl.u32 %v1170, 7
  %v1172 = vsub.s32 %v1169, %v1171
  %v1173 = vrot.slane %v231, %v1172
  %v1175 = vunpack.c.l.s4 1414812756
  %v1176 = vunpack.c.0.s8 %v1175
  %v1177 = vlaneseq
  %v1178 = vshrl.u32 %v1177, 7
  %v1179 = vsub.s32 %v1176, %v1178
  %v1180 = vrot.slane %v231, %v1179
  %v1182 = vunpack.c.l.s4 1987475062
  %v1183 = vunpack.c.0.s8 %v1182
  %v1184 = vlaneseq
  %v1185 = vshrl.u32 %v1184, 7
  %v1186 = vsub.s32 %v1183, %v1185
  %v1187 = vrot.slane %v231, %v1186
  %v1189 = vunpack.c.l.s4 269488144
  %v1190 = vunpack.c.0.s8 %v1189
  %v1191 = vlaneseq
  %v1192 = vshrl.u32 %v1191, 7
  %v1193 = vsub.s32 %v1190, %v1192
  %v1194 = vrot.slane %v234, %v1193
  %v1196 = vunpack.c.l.s4 842150450
  %v1197 = vunpack.c.0.s8 %v1196
  %v1198 = vlaneseq
  %v1199 = vshrl.u32 %v1198, 7
  %v1200 = vsub.s32 %v1197, %v1199
  %v1201 = vrot.slane %v234, %v1200
  %v1203 = vunpack.c.l.s4 1414812756
  %v1204 = vunpack.c.0.s8 %v1203
  %v1205 = vlaneseq
  %v1206 = vshrl.u32 %v1205, 7
  %v1207 = vsub.s32 %v1204, %v1206
  %v1208 = vrot.slane %v234, %v1207
  %v1210 = vunpack.c.l.s4 1987475062
  %v1211 = vunpack.c.0.s8 %v1210
  %v1212 = vlaneseq
  %v1213 = vshrl.u32 %v1212, 7
  %v1214 = vsub.s32 %v1211, %v1213
  %v1215 = vrot.slane %v234, %v1214
  %v1217 = vunpack.c.l.s4 269488144
  %v1218 = vunpack.c.0.s8 %v1217
  %v1219 = vlaneseq
  %v1220 = vshrl.u32 %v1219, 7
  %v1221 = vsub.s32 %v1218, %v1220
  %v1222 = vrot.slane %v237, %v1221
  %v1224 = vunpack.c.l.s4 842150450
  %v1225 = vunpack.c.0.s8 %v1224
  %v1226 = vlaneseq
  %v1227 = vshrl.u32 %v1226, 7
  %v1228 = vsub.s32 %v1225, %v1227
  %v1229 = vrot.slane %v237, %v1228
  %v1231 = vunpack.c.l.s4 1414812756
  %v1232 = vunpack.c.0.s8 %v1231
  %v1233 = vlaneseq
  %v1234 = vshrl.u32 %v1233, 7
  %v1235 = vsub.s32 %v1232, %v1234
  %v1236 = vrot.slane %v237, %v1235
  %v1238 = vunpack.c.l.s4 1987475062
  %v1239 = vunpack.c.0.s8 %v1238
  %v1240 = vlaneseq
  %v1241 = vshrl.u32 %v1240, 7
  %v1242 = vsub.s32 %v1239, %v1241
  %v1243 = vrot.slane %v237, %v1242
  %v1245 = vunpack.c.l.s4 269488144
  %v1246 = vunpack.c.0.s8 %v1245
  %v1247 = vlaneseq
  %v1248 = vshrl.u32 %v1247, 7
  %v1249 = vsub.s32 %v1246, %v1248
  %v1250 = vrot.slane %v240, %v1249
  %v1252 = vunpack.c.l.s4 842150450
  %v1253 = vunpack.c.0.s8 %v1252
  %v1254 = vlaneseq
  %v1255 = vshrl.u32 %v1254, 7
  %v1256 = vsub.s32 %v1253, %v1255
  %v1257 = vrot.slane %v240, %v1256
  %v1259 = vunpack.c.l.s4 1414812756
  %v1260 = vunpack.c.0.s8 %v1259
  %v1261 = vlaneseq
  %v1262 = vshrl.u32 %v1261, 7
  %v1263 = vsub.s32 %v1260, %v1262
  %v1264 = vrot.slane %v240, %v1263
  %v1266 = vunpack.c.l.s4 1987475062
  %v1267 = vunpack.c.0.s8 %v1266
  %v1268 = vlaneseq
  %v1269 = vshrl.u32 %v1268, 7
  %v1270 = vsub.s32 %v1267, %v1269
  %v1271 = vrot.slane %v240, %v1270
  %v1273 = vunpack.c.l.s4 269488144
  %v1274 = vunpack.c.0.s8 %v1273
  %v1275 = vlaneseq
  %v1276 = vshrl.u32 %v1275, 7
  %v1277 = vsub.s32 %v1274, %v1276
  %v1278 = vrot.slane %v243, %v1277
  %v1280 = vunpack.c.l.s4 842150450
  %v1281 = vunpack.c.0.s8 %v1280
  %v1282 = vlaneseq
  %v1283 = vshrl.u32 %v1282, 7
  %v1284 = vsub.s32 %v1281, %v1283
  %v1285 = vrot.slane %v243, %v1284
  %v1287 = vunpack.c.l.s4 1414812756
  %v1288 = vunpack.c.0.s8 %v1287
  %v1289 = vlaneseq
  %v1290 = vshrl.u32 %v1289, 7
  %v1291 = vsub.s32 %v1288, %v1290
  %v1292 = vrot.slane %v243, %v1291
  %v1294 = vunpack.c.l.s4 1987475062
  %v1295 = vunpack.c.0.s8 %v1294
  %v1296 = vlaneseq
  %v1297 = vshrl.u32 %v1296, 7
  %v1298 = vsub.s32 %v1295, %v1297
  %v1299 = vrot.slane %v243, %v1298
  %v1301 = vunpack.c.l.s4 269488144
  %v1302 = vunpack.c.0.s8 %v1301
  %v1303 = vlaneseq
  %v1304 = vshrl.u32 %v1303, 7
  %v1305 = vsub.s32 %v1302, %v1304
  %v1306 = vrot.slane %v246, %v1305
  %v1308 = vunpack.c.l.s4 842150450
  %v1309 = vunpack.c.0.s8 %v1308
  %v1310 = vlaneseq
  %v1311 = vshrl.u32 %v1310, 7
  %v1312 = vsub.s32 %v1309, %v1311
  %v1313 = vrot.slane %v246, %v1312
  %v1315 = vunpack.c.l.s4 1414812756
  %v1316 = vunpack.c.0.s8 %v1315
  %v1317 = vlaneseq
  %v1318 = vshrl.u32 %v1317, 7
  %v1319 = vsub.s32 %v1316, %v1318
  %v1320 = vrot.slane %v246, %v1319
  %v1322 = vunpack.c.l.s4 1987475062
  %v1323 = vunpack.c.0.s8 %v1322
  %v1324 = vlaneseq
  %v1325 = vshrl.u32 %v1324, 7
  %v1326 = vsub.s32 %v1323, %v1325
  %v1327 = vrot.slane %v246, %v1326
  %v1329 = vunpack.c.l.s4 269488144
  %v1330 = vunpack.c.0.s8 %v1329
  %v1331 = vlaneseq
  %v1332 = vshrl.u32 %v1331, 7
  %v1333 = vsub.s32 %v1330, %v1332
  %v1334 = vrot.slane %v249, %v1333
  %v1336 = vunpack.c.l.s4 842150450
  %v1337 = vunpack.c.0.s8 %v1336
  %v1338 = vlaneseq
  %v1339 = vshrl.u32 %v1338, 7
  %v1340 = vsub.s32 %v1337, %v1339
  %v1341 = vrot.slane %v249, %v1340
  %v1343 = vunpack.c.l.s4 1414812756
  %v1344 = vunpack.c.0.s8 %v1343
  %v1345 = vlaneseq
  %v1346 = vshrl.u32 %v1345, 7
  %v1347 = vsub.s32 %v1344, %v1346
  %v1348 = vrot.slane %v249, %v1347
  %v1350 = vunpack.c.l.s4 1987475062
  %v1351 = vunpack.c.0.s8 %v1350
  %v1352 = vlaneseq
  %v1353 = vshrl.u32 %v1352, 7
  %v1354 = vsub.s32 %v1351, %v1353
  %v1355 = vrot.slane %v249, %v1354
  %v1357 = vunpack.c.l.s4 269488144
  %v1358 = vunpack.c.0.s8 %v1357
  %v1359 = vlaneseq
  %v1360 = vshrl.u32 %v1359, 7
  %v1361 = vsub.s32 %v1358, %v1360
  %v1362 = vrot.slane %v252, %v1361
  %v1364 = vunpack.c.l.s4 842150450
  %v1365 = vunpack.c.0.s8 %v1364
  %v1366 = vlaneseq
  %v1367 = vshrl.u32 %v1366, 7
  %v1368 = vsub.s32 %v1365, %v1367
  %v1369 = vrot.slane %v252, %v1368
  %v1371 = vunpack.c.l.s4 1414812756
  %v1372 = vunpack.c.0.s8 %v1371
  %v1373 = vlaneseq
  %v1374 = vshrl.u32 %v1373, 7
  %v1375 = vsub.s32 %v1372, %v1374
  %v1376 = vrot.slane %v252, %v1375
  %v1378 = vunpack.c.l.s4 1987475062
  %v1379 = vunpack.c.0.s8 %v1378
  %v1380 = vlaneseq
  %v1381 = vshrl.u32 %v1380, 7
  %v1382 = vsub.s32 %v1379, %v1381
  %v1383 = vrot.slane %v252, %v1382
  %v1385 = vunpack.c.l.s4 269488144
  %v1386 = vunpack.c.0.s8 %v1385
  %v1387 = vlaneseq
  %v1388 = vshrl.u32 %v1387, 7
  %v1389 = vsub.s32 %v1386, %v1388
  %v1390 = vrot.slane %v255, %v1389
  %v1392 = vunpack.c.l.s4 842150450
  %v1393 = vunpack.c.0.s8 %v1392
  %v1394 = vlaneseq
  %v1395 = vshrl.u32 %v1394, 7
  %v1396 = vsub.s32 %v1393, %v1395
  %v1397 = vrot.slane %v255, %v1396
  %v1399 = vunpack.c.l.s4 1414812756
  %v1400 = vunpack.c.0.s8 %v1399
  %v1401 = vlaneseq
  %v1402 = vshrl.u32 %v1401, 7
  %v1403 = vsub.s32 %v1400, %v1402
  %v1404 = vrot.slane %v255, %v1403
  %v1406 = vunpack.c.l.s4 1987475062
  %v1407 = vunpack.c.0.s8 %v1406
  %v1408 = vlaneseq
  %v1409 = vshrl.u32 %v1408, 7
  %v1410 = vsub.s32 %v1407, %v1409
  %v1411 = vrot.slane %v255, %v1410
  %v1413 = vunpack.c.l.s4 269488144
  %v1414 = vunpack.c.0.s8 %v1413
  %v1415 = vlaneseq
  %v1416 = vshrl.u32 %v1415, 7
  %v1417 = vsub.s32 %v1414, %v1416
  %v1418 = vrot.slane %v258, %v1417
  %v1420 = vunpack.c.l.s4 842150450
  %v1421 = vunpack.c.0.s8 %v1420
  %v1422 = vlaneseq
  %v1423 = vshrl.u32 %v1422, 7
  %v1424 = vsub.s32 %v1421, %v1423
  %v1425 = vrot.slane %v258, %v1424
  %v1427 = vunpack.c.l.s4 1414812756
  %v1428 = vunpack.c.0.s8 %v1427
  %v1429 = vlaneseq
  %v1430 = vshrl.u32 %v1429, 7
  %v1431 = vsub.s32 %v1428, %v1430
  %v1432 = vrot.slane %v258, %v1431
  %v1434 = vunpack.c.l.s4 1987475062
  %v1435 = vunpack.c.0.s8 %v1434
  %v1436 = vlaneseq
  %v1437 = vshrl.u32 %v1436, 7
  %v1438 = vsub.s32 %v1435, %v1437
  %v1439 = vrot.slane %v258, %v1438
  %v1441 = vunpack.c.l.s4 269488144
  %v1442 = vunpack.c.0.s8 %v1441
  %v1443 = vlaneseq
  %v1444 = vshrl.u32 %v1443, 7
  %v1445 = vsub.s32 %v1442, %v1444
  %v1446 = vrot.slane %v261, %v1445
  %v1448 = vunpack.c.l.s4 842150450
  %v1449 = vunpack.c.0.s8 %v1448
  %v1450 = vlaneseq
  %v1451 = vshrl.u32 %v1450, 7
  %v1452 = vsub.s32 %v1449, %v1451
  %v1453 = vrot.slane %v261, %v1452
  %v1455 = vunpack.c.l.s4 1414812756
  %v1456 = vunpack.c.0.s8 %v1455
  %v1457 = vlaneseq
  %v1458 = vshrl.u32 %v1457, 7
  %v1459 = vsub.s32 %v1456, %v1458
  %v1460 = vrot.slane %v261, %v1459
  %v1462 = vunpack.c.l.s4 1987475062
  %v1463 = vunpack.c.0.s8 %v1462
  %v1464 = vlaneseq
  %v1465 = vshrl.u32 %v1464, 7
  %v1466 = vsub.s32 %v1463, %v1465
  %v1467 = vrot.slane %v261, %v1466
  %v1469 = vunpack.c.l.s4 269488144
  %v1470 = vunpack.c.0.s8 %v1469
  %v1471 = vlaneseq
  %v1472 = vshrl.u32 %v1471, 7
  %v1473 = vsub.s32 %v1470, %v1472
  %v1474 = vrot.slane %v264, %v1473
  %v1476 = vunpack.c.l.s4 842150450
  %v1477 = vunpack.c.0.s8 %v1476
  %v1478 = vlaneseq
  %v1479 = vshrl.u32 %v1478, 7
  %v1480 = vsub.s32 %v1477, %v1479
  %v1481 = vrot.slane %v264, %v1480
  %v1483 = vunpack.c.l.s4 1414812756
  %v1484 = vunpack.c.0.s8 %v1483
  %v1485 = vlaneseq
  %v1486 = vshrl.u32 %v1485, 7
  %v1487 = vsub.s32 %v1484, %v1486
  %v1488 = vrot.slane %v264, %v1487
  %v1490 = vunpack.c.l.s4 1987475062
  %v1491 = vunpack.c.0.s8 %v1490
  %v1492 = vlaneseq
  %v1493 = vshrl.u32 %v1492, 7
  %v1494 = vsub.s32 %v1491, %v1493
  %v1495 = vrot.slane %v264, %v1494
  %v1497 = vunpack.c.l.s4 269488144
  %v1498 = vunpack.c.0.s8 %v1497
  %v1499 = vlaneseq
  %v1500 = vshrl.u32 %v1499, 7
  %v1501 = vsub.s32 %v1498, %v1500
  %v1502 = vrot.slane %v267, %v1501
  %v1504 = vunpack.c.l.s4 842150450
  %v1505 = vunpack.c.0.s8 %v1504
  %v1506 = vlaneseq
  %v1507 = vshrl.u32 %v1506, 7
  %v1508 = vsub.s32 %v1505, %v1507
  %v1509 = vrot.slane %v267, %v1508
  %v1511 = vunpack.c.l.s4 1414812756
  %v1512 = vunpack.c.0.s8 %v1511
  %v1513 = vlaneseq
  %v1514 = vshrl.u32 %v1513, 7
  %v1515 = vsub.s32 %v1512, %v1514
  %v1516 = vrot.slane %v267, %v1515
  %v1518 = vunpack.c.l.s4 1987475062
  %v1519 = vunpack.c.0.s8 %v1518
  %v1520 = vlaneseq
  %v1521 = vshrl.u32 %v1520, 7
  %v1522 = vsub.s32 %v1519, %v1521
  %v1523 = vrot.slane %v267, %v1522
  %v1525 = vunpack.c.l.s4 269488144
  %v1526 = vunpack.c.0.s8 %v1525
  %v1527 = vlaneseq
  %v1528 = vshrl.u32 %v1527, 7
  %v1529 = vsub.s32 %v1526, %v1528
  %v1530 = vrot.slane %v270, %v1529
  %v1532 = vunpack.c.l.s4 842150450
  %v1533 = vunpack.c.0.s8 %v1532
  %v1534 = vlaneseq
  %v1535 = vshrl.u32 %v1534, 7
  %v1536 = vsub.s32 %v1533, %v1535
  %v1537 = vrot.slane %v270, %v1536
  %v1539 = vunpack.c.l.s4 1414812756
  %v1540 = vunpack.c.0.s8 %v1539
  %v1541 = vlaneseq
  %v1542 = vshrl.u32 %v1541, 7
  %v1543 = vsub.s32 %v1540, %v1542
  %v1544 = vrot.slane %v270, %v1543
  %v1546 = vunpack.c.l.s4 1987475062
  %v1547 = vunpack.c.0.s8 %v1546
  %v1548 = vlaneseq
  %v1549 = vshrl.u32 %v1548, 7
  %v1550 = vsub.s32 %v1547, %v1549
  %v1551 = vrot.slane %v270, %v1550
  %v1553 = vunpack.c.l.s4 269488144
  %v1554 = vunpack.c.0.s8 %v1553
  %v1555 = vlaneseq
  %v1556 = vshrl.u32 %v1555, 7
  %v1557 = vsub.s32 %v1554, %v1556
  %v1558 = vrot.slane %v273, %v1557
  %v1560 = vunpack.c.l.s4 842150450
  %v1561 = vunpack.c.0.s8 %v1560
  %v1562 = vlaneseq
  %v1563 = vshrl.u32 %v1562, 7
  %v1564 = vsub.s32 %v1561, %v1563
  %v1565 = vrot.slane %v273, %v1564
  %v1567 = vunpack.c.l.s4 1414812756
  %v1568 = vunpack.c.0.s8 %v1567
  %v1569 = vlaneseq
  %v1570 = vshrl.u32 %v1569, 7
  %v1571 = vsub.s32 %v1568, %v1570
  %v1572 = vrot.slane %v273, %v1571
  %v1574 = vunpack.c.l.s4 1987475062
  %v1575 = vunpack.c.0.s8 %v1574
  %v1576 = vlaneseq
  %v1577 = vshrl.u32 %v1576, 7
  %v1578 = vsub.s32 %v1575, %v1577
  %v1579 = vrot.slane %v273, %v1578
  %v1581 = vunpack.c.l.s4 269488144
  %v1582 = vunpack.c.0.s8 %v1581
  %v1583 = vlaneseq
  %v1584 = vshrl.u32 %v1583, 7
  %v1585 = vsub.s32 %v1582, %v1584
  %v1586 = vrot.slane %v276, %v1585
  %v1588 = vunpack.c.l.s4 842150450
  %v1589 = vunpack.c.0.s8 %v1588
  %v1590 = vlaneseq
  %v1591 = vshrl.u32 %v1590, 7
  %v1592 = vsub.s32 %v1589, %v1591
  %v1593 = vrot.slane %v276, %v1592
  %v1595 = vunpack.c.l.s4 1414812756
  %v1596 = vunpack.c.0.s8 %v1595
  %v1597 = vlaneseq
  %v1598 = vshrl.u32 %v1597, 7
  %v1599 = vsub.s32 %v1596, %v1598
  %v1600 = vrot.slane %v276, %v1599
  %v1602 = vunpack.c.l.s4 1987475062
  %v1603 = vunpack.c.0.s8 %v1602
  %v1604 = vlaneseq
  %v1605 = vshrl.u32 %v1604, 7
  %v1606 = vsub.s32 %v1603, %v1605
  %v1607 = vrot.slane %v276, %v1606
  %v1609 = vunpack.c.l.s4 269488144
  %v1610 = vunpack.c.0.s8 %v1609
  %v1611 = vlaneseq
  %v1612 = vshrl.u32 %v1611, 7
  %v1613 = vsub.s32 %v1610, %v1612
  %v1614 = vrot.slane %v279, %v1613
  %v1616 = vunpack.c.l.s4 842150450
  %v1617 = vunpack.c.0.s8 %v1616
  %v1618 = vlaneseq
  %v1619 = vshrl.u32 %v1618, 7
  %v1620 = vsub.s32 %v1617, %v1619
  %v1621 = vrot.slane %v279, %v1620
  %v1623 = vunpack.c.l.s4 1414812756
  %v1624 = vunpack.c.0.s8 %v1623
  %v1625 = vlaneseq
  %v1626 = vshrl.u32 %v1625, 7
  %v1627 = vsub.s32 %v1624, %v1626
  %v1628 = vrot.slane %v279, %v1627
  %v1630 = vunpack.c.l.s4 1987475062
  %v1631 = vunpack.c.0.s8 %v1630
  %v1632 = vlaneseq
  %v1633 = vshrl.u32 %v1632, 7
  %v1634 = vsub.s32 %v1631, %v1633
  %v1635 = vrot.slane %v279, %v1634
  %v1637 = vunpack.c.l.s4 269488144
  %v1638 = vunpack.c.0.s8 %v1637
  %v1639 = vlaneseq
  %v1640 = vshrl.u32 %v1639, 7
  %v1641 = vsub.s32 %v1638, %v1640
  %v1642 = vrot.slane %v282, %v1641
  %v1644 = vunpack.c.l.s4 842150450
  %v1645 = vunpack.c.0.s8 %v1644
  %v1646 = vlaneseq
  %v1647 = vshrl.u32 %v1646, 7
  %v1648 = vsub.s32 %v1645, %v1647
  %v1649 = vrot.slane %v282, %v1648
  %v1651 = vunpack.c.l.s4 1414812756
  %v1652 = vunpack.c.0.s8 %v1651
  %v1653 = vlaneseq
  %v1654 = vshrl.u32 %v1653, 7
  %v1655 = vsub.s32 %v1652, %v1654
  %v1656 = vrot.slane %v282, %v1655
  %v1658 = vunpack.c.l.s4 1987475062
  %v1659 = vunpack.c.0.s8 %v1658
  %v1660 = vlaneseq
  %v1661 = vshrl.u32 %v1660, 7
  %v1662 = vsub.s32 %v1659, %v1661
  %v1663 = vrot.slane %v282, %v1662
  %v1665 = vunpack.c.l.s4 269488144
  %v1666 = vunpack.c.0.s8 %v1665
  %v1667 = vlaneseq
  %v1668 = vshrl.u32 %v1667, 7
  %v1669 = vsub.s32 %v1666, %v1668
  %v1670 = vrot.slane %v285, %v1669
  %v1672 = vunpack.c.l.s4 842150450
  %v1673 = vunpack.c.0.s8 %v1672
  %v1674 = vlaneseq
  %v1675 = vshrl.u32 %v1674, 7
  %v1676 = vsub.s32 %v1673, %v1675
  %v1677 = vrot.slane %v285, %v1676
  %v1679 = vunpack.c.l.s4 1414812756
  %v1680 = vunpack.c.0.s8 %v1679
  %v1681 = vlaneseq
  %v1682 = vshrl.u32 %v1681, 7
  %v1683 = vsub.s32 %v1680, %v1682
  %v1684 = vrot.slane %v285, %v1683
  %v1686 = vunpack.c.l.s4 1987475062
  %v1687 = vunpack.c.0.s8 %v1686
  %v1688 = vlaneseq
  %v1689 = vshrl.u32 %v1688, 7
  %v1690 = vsub.s32 %v1687, %v1689
  %v1691 = vrot.slane %v285, %v1690
  %v1693 = vunpack.c.l.s4 269488144
  %v1694 = vunpack.c.0.s8 %v1693
  %v1695 = vlaneseq
  %v1696 = vshrl.u32 %v1695, 7
  %v1697 = vsub.s32 %v1694, %v1696
  %v1698 = vrot.slane %v288, %v1697
  %v1700 = vunpack.c.l.s4 842150450
  %v1701 = vunpack.c.0.s8 %v1700
  %v1702 = vlaneseq
  %v1703 = vshrl.u32 %v1702, 7
  %v1704 = vsub.s32 %v1701, %v1703
  %v1705 = vrot.slane %v288, %v1704
  %v1707 = vunpack.c.l.s4 1414812756
  %v1708 = vunpack.c.0.s8 %v1707
  %v1709 = vlaneseq
  %v1710 = vshrl.u32 %v1709, 7
  %v1711 = vsub.s32 %v1708, %v1710
  %v1712 = vrot.slane %v288, %v1711
  %v1714 = vunpack.c.l.s4 1987475062
  %v1715 = vunpack.c.0.s8 %v1714
  %v1716 = vlaneseq
  %v1717 = vshrl.u32 %v1716, 7
  %v1718 = vsub.s32 %v1715, %v1717
  %v1719 = vrot.slane %v288, %v1718
  %v1721 = vunpack.c.l.s4 269488144
  %v1722 = vunpack.c.0.s8 %v1721
  %v1723 = vlaneseq
  %v1724 = vshrl.u32 %v1723, 7
  %v1725 = vsub.s32 %v1722, %v1724
  %v1726 = vrot.slane %v291, %v1725
  %v1728 = vunpack.c.l.s4 842150450
  %v1729 = vunpack.c.0.s8 %v1728
  %v1730 = vlaneseq
  %v1731 = vshrl.u32 %v1730, 7
  %v1732 = vsub.s32 %v1729, %v1731
  %v1733 = vrot.slane %v291, %v1732
  %v1735 = vunpack.c.l.s4 1414812756
  %v1736 = vunpack.c.0.s8 %v1735
  %v1737 = vlaneseq
  %v1738 = vshrl.u32 %v1737, 7
  %v1739 = vsub.s32 %v1736, %v1738
  %v1740 = vrot.slane %v291, %v1739
  %v1742 = vunpack.c.l.s4 1987475062
  %v1743 = vunpack.c.0.s8 %v1742
  %v1744 = vlaneseq
  %v1745 = vshrl.u32 %v1744, 7
  %v1746 = vsub.s32 %v1743, %v1745
  %v1747 = vrot.slane %v291, %v1746
  %v1749 = vunpack.c.l.s4 269488144
  %v1750 = vunpack.c.0.s8 %v1749
  %v1751 = vlaneseq
  %v1752 = vshrl.u32 %v1751, 7
  %v1753 = vsub.s32 %v1750, %v1752
  %v1754 = vrot.slane %v294, %v1753
  %v1756 = vunpack.c.l.s4 842150450
  %v1757 = vunpack.c.0.s8 %v1756
  %v1758 = vlaneseq
  %v1759 = vshrl.u32 %v1758, 7
  %v1760 = vsub.s32 %v1757, %v1759
  %v1761 = vrot.slane %v294, %v1760
  %v1763 = vunpack.c.l.s4 1414812756
  %v1764 = vunpack.c.0.s8 %v1763
  %v1765 = vlaneseq
  %v1766 = vshrl.u32 %v1765, 7
  %v1767 = vsub.s32 %v1764, %v1766
  %v1768 = vrot.slane %v294, %v1767
  %v1770 = vunpack.c.l.s4 1987475062
  %v1771 = vunpack.c.0.s8 %v1770
  %v1772 = vlaneseq
  %v1773 = vshrl.u32 %v1772, 7
  %v1774 = vsub.s32 %v1771, %v1773
  %v1775 = vrot.slane %v294, %v1774
  %v1777 = vunpack.c.l.s4 269488144
  %v1778 = vunpack.c.0.s8 %v1777
  %v1779 = vlaneseq
  %v1780 = vshrl.u32 %v1779, 7
  %v1781 = vsub.s32 %v1778, %v1780
  %v1782 = vrot.slane %v297, %v1781
  %v1784 = vunpack.c.l.s4 842150450
  %v1785 = vunpack.c.0.s8 %v1784
  %v1786 = vlaneseq
  %v1787 = vshrl.u32 %v1786, 7
  %v1788 = vsub.s32 %v1785, %v1787
  %v1789 = vrot.slane %v297, %v1788
  %v1791 = vunpack.c.l.s4 1414812756
  %v1792 = vunpack.c.0.s8 %v1791
  %v1793 = vlaneseq
  %v1794 = vshrl.u32 %v1793, 7
  %v1795 = vsub.s32 %v1792, %v1794
  %v1796 = vrot.slane %v297, %v1795
  %v1798 = vunpack.c.l.s4 1987475062
  %v1799 = vunpack.c.0.s8 %v1798
  %v1800 = vlaneseq
  %v1801 = vshrl.u32 %v1800, 7
  %v1802 = vsub.s32 %v1799, %v1801
  %v1803 = vrot.slane %v297, %v1802
  %v1805 = vunpack.c.l.s4 269488144
  %v1806 = vunpack.c.0.s8 %v1805
  %v1807 = vlaneseq
  %v1808 = vshrl.u32 %v1807, 7
  %v1809 = vsub.s32 %v1806, %v1808
  %v1810 = vrot.slane %v300, %v1809
  %v1812 = vunpack.c.l.s4 842150450
  %v1813 = vunpack.c.0.s8 %v1812
  %v1814 = vlaneseq
  %v1815 = vshrl.u32 %v1814, 7
  %v1816 = vsub.s32 %v1813, %v1815
  %v1817 = vrot.slane %v300, %v1816
  %v1819 = vunpack.c.l.s4 1414812756
  %v1820 = vunpack.c.0.s8 %v1819
  %v1821 = vlaneseq
  %v1822 = vshrl.u32 %v1821, 7
  %v1823 = vsub.s32 %v1820, %v1822
  %v1824 = vrot.slane %v300, %v1823
  %v1826 = vunpack.c.l.s4 1987475062
  %v1827 = vunpack.c.0.s8 %v1826
  %v1828 = vlaneseq
  %v1829 = vshrl.u32 %v1828, 7
  %v1830 = vsub.s32 %v1827, %v1829
  %v1831 = vrot.slane %v300, %v1830
  %v1833 = vunpack.c.l.s4 269488144
  %v1834 = vunpack.c.0.s8 %v1833
  %v1835 = vlaneseq
  %v1836 = vshrl.u32 %v1835, 7
  %v1837 = vsub.s32 %v1834, %v1836
  %v1838 = vrot.slane %v303, %v1837
  %v1840 = vunpack.c.l.s4 842150450
  %v1841 = vunpack.c.0.s8 %v1840
  %v1842 = vlaneseq
  %v1843 = vshrl.u32 %v1842, 7
  %v1844 = vsub.s32 %v1841, %v1843
  %v1845 = vrot.slane %v303, %v1844
  %v1847 = vunpack.c.l.s4 1414812756
  %v1848 = vunpack.c.0.s8 %v1847
  %v1849 = vlaneseq
  %v1850 = vshrl.u32 %v1849, 7
  %v1851 = vsub.s32 %v1848, %v1850
  %v1852 = vrot.slane %v303, %v1851
  %v1854 = vunpack.c.l.s4 1987475062
  %v1855 = vunpack.c.0.s8 %v1854
  %v1856 = vlaneseq
  %v1857 = vshrl.u32 %v1856, 7
  %v1858 = vsub.s32 %v1855, %v1857
  %v1859 = vrot.slane %v303, %v1858
  %v1861 = vunpack.c.l.s4 269488144
  %v1862 = vunpack.c.0.s8 %v1861
  %v1863 = vlaneseq
  %v1864 = vshrl.u32 %v1863, 7
  %v1865 = vsub.s32 %v1862, %v1864
  %v1866 = vrot.slane %v306, %v1865
  %v1868 = vunpack.c.l.s4 842150450
  %v1869 = vunpack.c.0.s8 %v1868
  %v1870 = vlaneseq
  %v1871 = vshrl.u32 %v1870, 7
  %v1872 = vsub.s32 %v1869, %v1871
  %v1873 = vrot.slane %v306, %v1872
  %v1875 = vunpack.c.l.s4 1414812756
  %v1876 = vunpack.c.0.s8 %v1875
  %v1877 = vlaneseq
  %v1878 = vshrl.u32 %v1877, 7
  %v1879 = vsub.s32 %v1876, %v1878
  %v1880 = vrot.slane %v306, %v1879
  %v1882 = vunpack.c.l.s4 1987475062
  %v1883 = vunpack.c.0.s8 %v1882
  %v1884 = vlaneseq
  %v1885 = vshrl.u32 %v1884, 7
  %v1886 = vsub.s32 %v1883, %v1885
  %v1887 = vrot.slane %v306, %v1886
  %v1889 = vunpack.c.l.s4 269488144
  %v1890 = vunpack.c.0.s8 %v1889
  %v1891 = vlaneseq
  %v1892 = vshrl.u32 %v1891, 7
  %v1893 = vsub.s32 %v1890, %v1892
  %v1894 = vrot.slane %v309, %v1893
  %v1896 = vunpack.c.l.s4 842150450
  %v1897 = vunpack.c.0.s8 %v1896
  %v1898 = vlaneseq
  %v1899 = vshrl.u32 %v1898, 7
  %v1900 = vsub.s32 %v1897, %v1899
  %v1901 = vrot.slane %v309, %v1900
  %v1903 = vunpack.c.l.s4 1414812756
  %v1904 = vunpack.c.0.s8 %v1903
  %v1905 = vlaneseq
  %v1906 = vshrl.u32 %v1905, 7
  %v1907 = vsub.s32 %v1904, %v1906
  %v1908 = vrot.slane %v309, %v1907
  %v1910 = vunpack.c.l.s4 1987475062
  %v1911 = vunpack.c.0.s8 %v1910
  %v1912 = vlaneseq
  %v1913 = vshrl.u32 %v1912, 7
  %v1914 = vsub.s32 %v1911, %v1913
  %v1915 = vrot.slane %v309, %v1914
  %v1917 = vunpack.c.l.s4 269488144
  %v1918 = vunpack.c.0.s8 %v1917
  %v1919 = vlaneseq
  %v1920 = vshrl.u32 %v1919, 7
  %v1921 = vsub.s32 %v1918, %v1920
  %v1922 = vrot.slane %v312, %v1921
  %v1924 = vunpack.c.l.s4 842150450
  %v1925 = vunpack.c.0.s8 %v1924
  %v1926 = vlaneseq
  %v1927 = vshrl.u32 %v1926, 7
  %v1928 = vsub.s32 %v1925, %v1927
  %v1929 = vrot.slane %v312, %v1928
  %v1931 = vunpack.c.l.s4 1414812756
  %v1932 = vunpack.c.0.s8 %v1931
  %v1933 = vlaneseq
  %v1934 = vshrl.u32 %v1933, 7
  %v1935 = vsub.s32 %v1932, %v1934
  %v1936 = vrot.slane %v312, %v1935
  %v1938 = vunpack.c.l.s4 1987475062
  %v1939 = vunpack.c.0.s8 %v1938
  %v1940 = vlaneseq
  %v1941 = vshrl.u32 %v1940, 7
  %v1942 = vsub.s32 %v1939, %v1941
  %v1943 = vrot.slane %v312, %v1942
  %v1945 = vunpack.c.l.s4 269488144
  %v1946 = vunpack.c.0.s8 %v1945
  %v1947 = vlaneseq
  %v1948 = vshrl.u32 %v1947, 7
  %v1949 = vsub.s32 %v1946, %v1948
  %v1950 = vrot.slane %v315, %v1949
  %v1952 = vunpack.c.l.s4 842150450
  %v1953 = vunpack.c.0.s8 %v1952
  %v1954 = vlaneseq
  %v1955 = vshrl.u32 %v1954, 7
  %v1956 = vsub.s32 %v1953, %v1955
  %v1957 = vrot.slane %v315, %v1956
  %v1959 = vunpack.c.l.s4 1414812756
  %v1960 = vunpack.c.0.s8 %v1959
  %v1961 = vlaneseq
  %v1962 = vshrl.u32 %v1961, 7
  %v1963 = vsub.s32 %v1960, %v1962
  %v1964 = vrot.slane %v315, %v1963
  %v1966 = vunpack.c.l.s4 1987475062
  %v1967 = vunpack.c.0.s8 %v1966
  %v1968 = vlaneseq
  %v1969 = vshrl.u32 %v1968, 7
  %v1970 = vsub.s32 %v1967, %v1969
  %v1971 = vrot.slane %v315, %v1970
  %v1973 = vunpack.c.l.s4 269488144
  %v1974 = vunpack.c.0.s8 %v1973
  %v1975 = vlaneseq
  %v1976 = vshrl.u32 %v1975, 7
  %v1977 = vsub.s32 %v1974, %v1976
  %v1978 = vrot.slane %v318, %v1977
  %v1980 = vunpack.c.l.s4 842150450
  %v1981 = vunpack.c.0.s8 %v1980
  %v1982 = vlaneseq
  %v1983 = vshrl.u32 %v1982, 7
  %v1984 = vsub.s32 %v1981, %v1983
  %v1985 = vrot.slane %v318, %v1984
  %v1987 = vunpack.c.l.s4 1414812756
  %v1988 = vunpack.c.0.s8 %v1987
  %v1989 = vlaneseq
  %v1990 = vshrl.u32 %v1989, 7
  %v1991 = vsub.s32 %v1988, %v1990
  %v1992 = vrot.slane %v318, %v1991
  %v1994 = vunpack.c.l.s4 1987475062
  %v1995 = vunpack.c.0.s8 %v1994
  %v1996 = vlaneseq
  %v1997 = vshrl.u32 %v1996, 7
  %v1998 = vsub.s32 %v1995, %v1997
  %v1999 = vrot.slane %v318, %v1998
  %v2001 = vunpack.c.l.s4 269488144
  %v2002 = vunpack.c.0.s8 %v2001
  %v2003 = vlaneseq
  %v2004 = vshrl.u32 %v2003, 7
  %v2005 = vsub.s32 %v2002, %v2004
  %v2006 = vrot.slane %v321, %v2005
  %v2008 = vunpack.c.l.s4 842150450
  %v2009 = vunpack.c.0.s8 %v2008
  %v2010 = vlaneseq
  %v2011 = vshrl.u32 %v2010, 7
  %v2012 = vsub.s32 %v2009, %v2011
  %v2013 = vrot.slane %v321, %v2012
  %v2015 = vunpack.c.l.s4 1414812756
  %v2016 = vunpack.c.0.s8 %v2015
  %v2017 = vlaneseq
  %v2018 = vshrl.u32 %v2017, 7
  %v2019 = vsub.s32 %v2016, %v2018
  %v2020 = vrot.slane %v321, %v2019
  %v2022 = vunpack.c.l.s4 1987475062
  %v2023 = vunpack.c.0.s8 %v2022
  %v2024 = vlaneseq
  %v2025 = vshrl.u32 %v2024, 7
  %v2026 = vsub.s32 %v2023, %v2025
  %v2027 = vrot.slane %v321, %v2026
  %v2029 = vunpack.c.l.s4 269488144
  %v2030 = vunpack.c.0.s8 %v2029
  %v2031 = vlaneseq
  %v2032 = vshrl.u32 %v2031, 7
  %v2033 = vsub.s32 %v2030, %v2032
  %v2034 = vrot.slane %v324, %v2033
  %v2036 = vunpack.c.l.s4 842150450
  %v2037 = vunpack.c.0.s8 %v2036
  %v2038 = vlaneseq
  %v2039 = vshrl.u32 %v2038, 7
  %v2040 = vsub.s32 %v2037, %v2039
  %v2041 = vrot.slane %v324, %v2040
  %v2043 = vunpack.c.l.s4 1414812756
  %v2044 = vunpack.c.0.s8 %v2043
  %v2045 = vlaneseq
  %v2046 = vshrl.u32 %v2045, 7
  %v2047 = vsub.s32 %v2044, %v2046
  %v2048 = vrot.slane %v324, %v2047
  %v2050 = vunpack.c.l.s4 1987475062
  %v2051 = vunpack.c.0.s8 %v2050
  %v2052 = vlaneseq
  %v2053 = vshrl.u32 %v2052, 7
  %v2054 = vsub.s32 %v2051, %v2053
  %v2055 = vrot.slane %v324, %v2054
  %v2057 = vunpack.c.l.s4 269488144
  %v2058 = vunpack.c.0.s8 %v2057
  %v2059 = vlaneseq
  %v2060 = vshrl.u32 %v2059, 7
  %v2061 = vsub.s32 %v2058, %v2060
  %v2062 = vrot.slane %v327, %v2061
  %v2064 = vunpack.c.l.s4 842150450
  %v2065 = vunpack.c.0.s8 %v2064
  %v2066 = vlaneseq
  %v2067 = vshrl.u32 %v2066, 7
  %v2068 = vsub.s32 %v2065, %v2067
  %v2069 = vrot.slane %v327, %v2068
  %v2071 = vunpack.c.l.s4 1414812756
  %v2072 = vunpack.c.0.s8 %v2071
  %v2073 = vlaneseq
  %v2074 = vshrl.u32 %v2073, 7
  %v2075 = vsub.s32 %v2072, %v2074
  %v2076 = vrot.slane %v327, %v2075
  %v2078 = vunpack.c.l.s4 1987475062
  %v2079 = vunpack.c.0.s8 %v2078
  %v2080 = vlaneseq
  %v2081 = vshrl.u32 %v2080, 7
  %v2082 = vsub.s32 %v2079, %v2081
  %v2083 = vrot.slane %v327, %v2082
  %v2085 = vunpack.c.l.s4 269488144
  %v2086 = vunpack.c.0.s8 %v2085
  %v2087 = vlaneseq
  %v2088 = vshrl.u32 %v2087, 7
  %v2089 = vsub.s32 %v2086, %v2088
  %v2090 = vrot.slane %v330, %v2089
  %v2092 = vunpack.c.l.s4 842150450
  %v2093 = vunpack.c.0.s8 %v2092
  %v2094 = vlaneseq
  %v2095 = vshrl.u32 %v2094, 7
  %v2096 = vsub.s32 %v2093, %v2095
  %v2097 = vrot.slane %v330, %v2096
  %v2099 = vunpack.c.l.s4 1414812756
  %v2100 = vunpack.c.0.s8 %v2099
  %v2101 = vlaneseq
  %v2102 = vshrl.u32 %v2101, 7
  %v2103 = vsub.s32 %v2100, %v2102
  %v2104 = vrot.slane %v330, %v2103
  %v2106 = vunpack.c.l.s4 1987475062
  %v2107 = vunpack.c.0.s8 %v2106
  %v2108 = vlaneseq
  %v2109 = vshrl.u32 %v2108, 7
  %v2110 = vsub.s32 %v2107, %v2109
  %v2111 = vrot.slane %v330, %v2110
  %v2113 = vunpack.c.l.s4 269488144
  %v2114 = vunpack.c.0.s8 %v2113
  %v2115 = vlaneseq
  %v2116 = vshrl.u32 %v2115, 7
  %v2117 = vsub.s32 %v2114, %v2116
  %v2118 = vrot.slane %v333, %v2117
  %v2120 = vunpack.c.l.s4 842150450
  %v2121 = vunpack.c.0.s8 %v2120
  %v2122 = vlaneseq
  %v2123 = vshrl.u32 %v2122, 7
  %v2124 = vsub.s32 %v2121, %v2123
  %v2125 = vrot.slane %v333, %v2124
  %v2127 = vunpack.c.l.s4 1414812756
  %v2128 = vunpack.c.0.s8 %v2127
  %v2129 = vlaneseq
  %v2130 = vshrl.u32 %v2129, 7
  %v2131 = vsub.s32 %v2128, %v2130
  %v2132 = vrot.slane %v333, %v2131
  %v2134 = vunpack.c.l.s4 1987475062
  %v2135 = vunpack.c.0.s8 %v2134
  %v2136 = vlaneseq
  %v2137 = vshrl.u32 %v2136, 7
  %v2138 = vsub.s32 %v2135, %v2137
  %v2139 = vrot.slane %v333, %v2138
  %v2141 = vunpack.c.l.s4 269488144
  %v2142 = vunpack.c.0.s8 %v2141
  %v2143 = vlaneseq
  %v2144 = vshrl.u32 %v2143, 7
  %v2145 = vsub.s32 %v2142, %v2144
  %v2146 = vrot.slane %v336, %v2145
  %v2148 = vunpack.c.l.s4 842150450
  %v2149 = vunpack.c.0.s8 %v2148
  %v2150 = vlaneseq
  %v2151 = vshrl.u32 %v2150, 7
  %v2152 = vsub.s32 %v2149, %v2151
  %v2153 = vrot.slane %v336, %v2152
  %v2155 = vunpack.c.l.s4 1414812756
  %v2156 = vunpack.c.0.s8 %v2155
  %v2157 = vlaneseq
  %v2158 = vshrl.u32 %v2157, 7
  %v2159 = vsub.s32 %v2156, %v2158
  %v2160 = vrot.slane %v336, %v2159
  %v2162 = vunpack.c.l.s4 1987475062
  %v2163 = vunpack.c.0.s8 %v2162
  %v2164 = vlaneseq
  %v2165 = vshrl.u32 %v2164, 7
  %v2166 = vsub.s32 %v2163, %v2165
  %v2167 = vrot.slane %v336, %v2166
  %v2169 = vunpack.c.l.s4 269488144
  %v2170 = vunpack.c.0.s8 %v2169
  %v2171 = vlaneseq
  %v2172 = vshrl.u32 %v2171, 7
  %v2173 = vsub.s32 %v2170, %v2172
  %v2174 = vrot.slane %v339, %v2173
  %v2176 = vunpack.c.l.s4 842150450
  %v2177 = vunpack.c.0.s8 %v2176
  %v2178 = vlaneseq
  %v2179 = vshrl.u32 %v2178, 7
  %v2180 = vsub.s32 %v2177, %v2179
  %v2181 = vrot.slane %v339, %v2180
  %v2183 = vunpack.c.l.s4 1414812756
  %v2184 = vunpack.c.0.s8 %v2183
  %v2185 = vlaneseq
  %v2186 = vshrl.u32 %v2185, 7
  %v2187 = vsub.s32 %v2184, %v2186
  %v2188 = vrot.slane %v339, %v2187
  %v2190 = vunpack.c.l.s4 1987475062
  %v2191 = vunpack.c.0.s8 %v2190
  %v2192 = vlaneseq
  %v2193 = vshrl.u32 %v2192, 7
  %v2194 = vsub.s32 %v2191, %v2193
  %v2195 = vrot.slane %v339, %v2194
  %v2196 = vcombine.low %v410, %v417
  %v2197 = vcombine.low %v424, %v431
  %v2199 = vunpack.c.l.s4 1983009808
  %v2200 = vunpack.c.0.s8 %v2199
  %v2201 = vlaneseq
  %v2202 = vshrl.u32 %v2201, 7
  %v2203 = vsub.s32 %v2200, %v2202
  %v2204 = vrot.slane %v2196, %v2203
  %v2206 = vunpack.c.l.s4 1983009808
  %v2207 = vunpack.c.0.s8 %v2206
  %v2208 = vlaneseq
  %v2209 = vshrl.u32 %v2208, 7
  %v2210 = vsub.s32 %v2207, %v2209
  %v2211 = vrot.slane %v2197, %v2210
  %v2212 = vcombine.low %v2204, %v2211
  %v2213 = vcombine.low %v438, %v445
  %v2214 = vcombine.low %v452, %v459
  %v2216 = vunpack.c.l.s4 1983009808
  %v2217 = vunpack.c.0.s8 %v2216
  %v2218 = vlaneseq
  %v2219 = vshrl.u32 %v2218, 7
  %v2220 = vsub.s32 %v2217, %v2219
  %v2221 = vrot.slane %v2213, %v2220
  %v2223 = vunpack.c.l.s4 1983009808
  %v2224 = vunpack.c.0.s8 %v2223
  %v2225 = vlaneseq
  %v2226 = vshrl.u32 %v2225, 7
  %v2227 = vsub.s32 %v2224, %v2226
  %v2228 = vrot.slane %v2214, %v2227
  %v2229 = vcombine.low %v2221, %v2228
  %v2230 = vcombine.low %v466, %v473
  %v2231 = vcombine.low %v480, %v487
  %v2233 = vunpack.c.l.s4 1983009808
  %v2234 = vunpack.c.0.s8 %v2233
  %v2235 = vlaneseq
  %v2236 = vshrl.u32 %v2235, 7
  %v2237 = vsub.s32 %v2234, %v2236
  %v2238 = vrot.slane %v2230, %v2237
  %v2240 = vunpack.c.l.s4 1983009808
  %v2241 = vunpack.c.0.s8 %v2240
  %v2242 = vlaneseq
  %v2243 = vshrl.u32 %v2242, 7
  %v2244 = vsub.s32 %v2241, %v2243
  %v2245 = vrot.slane %v2231, %v2244
  %v2246 = vcombine.low %v2238, %v2245
  %v2247 = vcombine.low %v494, %v501
  %v2248 = vcombine.low %v508, %v515
  %v2250 = vunpack.c.l.s4 1983009808
  %v2251 = vunpack.c.0.s8 %v2250
  %v2252 = vlaneseq
  %v2253 = vshrl.u32 %v2252, 7
  %v2254 = vsub.s32 %v2251, %v2253
  %v2255 = vrot.slane %v2247, %v2254
  %v2257 = vunpack.c.l.s4 1983009808
  %v2258 = vunpack.c.0.s8 %v2257
  %v2259 = vlaneseq
  %v2260 = vshrl.u32 %v2259, 7
  %v2261 = vsub.s32 %v2258, %v2260
  %v2262 = vrot.slane %v2248, %v2261
  %v2263 = vcombine.low %v2255, %v2262
  %v2264 = vcombine.low %v522, %v529
  %v2265 = vcombine.low %v536, %v543
  %v2267 = vunpack.c.l.s4 1983009808
  %v2268 = vunpack.c.0.s8 %v2267
  %v2269 = vlaneseq
  %v2270 = vshrl.u32 %v2269, 7
  %v2271 = vsub.s32 %v2268, %v2270
  %v2272 = vrot.slane %v2264, %v2271
  %v2274 = vunpack.c.l.s4 1983009808
  %v2275 = vunpack.c.0.s8 %v2274
  %v2276 = vlaneseq
  %v2277 = vshrl.u32 %v2276, 7
  %v2278 = vsub.s32 %v2275, %v2277
  %v2279 = vrot.slane %v2265, %v2278
  %v2280 = vcombine.low %v2272, %v2279
  %v2281 = vcombine.low %v550, %v557
  %v2282 = vcombine.low %v564, %v571
  %v2284 = vunpack.c.l.s4 1983009808
  %v2285 = vunpack.c.0.s8 %v2284
  %v2286 = vlaneseq
  %v2287 = vshrl.u32 %v2286, 7
  %v2288 = vsub.s32 %v2285, %v2287
  %v2289 = vrot.slane %v2281, %v2288
  %v2291 = vunpack.c.l.s4 1983009808
  %v2292 = vunpack.c.0.s8 %v2291
  %v2293 = vlaneseq
  %v2294 = vshrl.u32 %v2293, 7
  %v2295 = vsub.s32 %v2292, %v2294
  %v2296 = vrot.slane %v2282, %v2295
  %v2297 = vcombine.low %v2289, %v2296
  %v2298 = vcombine.low %v578, %v585
  %v2299 = vcombine.low %v592, %v599
  %v2301 = vunpack.c.l.s4 1983009808
  %v2302 = vunpack.c.0.s8 %v2301
  %v2303 = vlaneseq
  %v2304 = vshrl.u32 %v2303, 7
  %v2305 = vsub.s32 %v2302, %v2304
  %v2306 = vrot.slane %v2298, %v2305
  %v2308 = vunpack.c.l.s4 1983009808
  %v2309 = vunpack.c.0.s8 %v2308
  %v2310 = vlaneseq
  %v2311 = vshrl.u32 %v2310, 7
  %v2312 = vsub.s32 %v2309, %v2311
  %v2313 = vrot.slane %v2299, %v2312
  %v2314 = vcombine.low %v2306, %v2313
  %v2315 = vcombine.low %v606, %v613
  %v2316 = vcombine.low %v620, %v627
  %v2318 = vunpack.c.l.s4 1983009808
  %v2319 = vunpack.c.0.s8 %v2318
  %v2320 = vlaneseq
  %v2321 = vshrl.u32 %v2320, 7
  %v2322 = vsub.s32 %v2319, %v2321
  %v2323 = vrot.slane %v2315, %v2322
  %v2325 = vunpack.c.l.s4 1983009808
  %v2326 = vunpack.c.0.s8 %v2325
  %v2327 = vlaneseq
  %v2328 = vshrl.u32 %v2327, 7
  %v2329 = vsub.s32 %v2326, %v2328
  %v2330 = vrot.slane %v2316, %v2329
  %v2331 = vcombine.low %v2323, %v2330
  %v2332 = vcombine.low %v634, %v641
  %v2333 = vcombine.low %v648, %v655
  %v2335 = vunpack.c.l.s4 1983009808
  %v2336 = vunpack.c.0.s8 %v2335
  %v2337 = vlaneseq
  %v2338 = vshrl.u32 %v2337, 7
  %v2339 = vsub.s32 %v2336, %v2338
  %v2340 = vrot.slane %v2332, %v2339
  %v2342 = vunpack.c.l.s4 1983009808
  %v2343 = vunpack.c.0.s8 %v2342
  %v2344 = vlaneseq
  %v2345 = vshrl.u32 %v2344, 7
  %v2346 = vsub.s32 %v2343, %v2345
  %v2347 = vrot.slane %v2333, %v2346
  %v2348 = vcombine.low %v2340, %v2347
  %v2349 = vcombine.low %v662, %v669
  %v2350 = vcombine.low %v676, %v683
  %v2352 = vunpack.c.l.s4 1983009808
  %v2353 = vunpack.c.0.s8 %v2352
  %v2354 = vlaneseq
  %v2355 = vshrl.u32 %v2354, 7
  %v2356 = vsub.s32 %v2353, %v2355
  %v2357 = vrot.slane %v2349, %v2356
  %v2359 = vunpack.c.l.s4 1983009808
  %v2360 = vunpack.c.0.s8 %v2359
  %v2361 = vlaneseq
  %v2362 = vshrl.u32 %v2361, 7
  %v2363 = vsub.s32 %v2360, %v2362
  %v2364 = vrot.slane %v2350, %v2363
  %v2365 = vcombine.low %v2357, %v2364
  %v2366 = vcombine.low %v690, %v697
  %v2367 = vcombine.low %v704, %v711
  %v2369 = vunpack.c.l.s4 1983009808
  %v2370 = vunpack.c.0.s8 %v2369
  %v2371 = vlaneseq
  %v2372 = vshrl.u32 %v2371, 7
  %v2373 = vsub.s32 %v2370, %v2372
  %v2374 = vrot.slane %v2366, %v2373
  %v2376 = vunpack.c.l.s4 1983009808
  %v2377 = vunpack.c.0.s8 %v2376
  %v2378 = vlaneseq
  %v2379 = vshrl.u32 %v2378, 7
  %v2380 = vsub.s32 %v2377, %v2379
  %v2381 = vrot.slane %v2367, %v2380
  %v2382 = vcombine.low %v2374, %v2381
  %v2383 = vcombine.low %v718, %v725
  %v2384 = vcombine.low %v732, %v739
  %v2386 = vunpack.c.l.s4 1983009808
  %v2387 = vunpack.c.0.s8 %v2386
  %v2388 = vlaneseq
  %v2389 = vshrl.u32 %v2388, 7
  %v2390 = vsub.s32 %v2387, %v2389
  %v2391 = vrot.slane %v2383, %v2390
  %v2393 = vunpack.c.l.s4 1983009808
  %v2394 = vunpack.c.0.s8 %v2393
  %v2395 = vlaneseq
  %v2396 = vshrl.u32 %v2395, 7
  %v2397 = vsub.s32 %v2394, %v2396
  %v2398 = vrot.slane %v2384, %v2397
  %v2399 = vcombine.low %v2391, %v2398
  %v2400 = vcombine.low %v746, %v753
  %v2401 = vcombine.low %v760, %v767
  %v2403 = vunpack.c.l.s4 1983009808
  %v2404 = vunpack.c.0.s8 %v2403
  %v2405 = vlaneseq
  %v2406 = vshrl.u32 %v2405, 7
  %v2407 = vsub.s32 %v2404, %v2406
  %v2408 = vrot.slane %v2400, %v2407
  %v2410 = vunpack.c.l.s4 1983009808
  %v2411 = vunpack.c.0.s8 %v2410
  %v2412 = vlaneseq
  %v2413 = vshrl.u32 %v2412, 7
  %v2414 = vsub.s32 %v2411, %v2413
  %v2415 = vrot.slane %v2401, %v2414
  %v2416 = vcombine.low %v2408, %v2415
  %v2417 = vcombine.low %v774, %v781
  %v2418 = vcombine.low %v788, %v795
  %v2420 = vunpack.c.l.s4 1983009808
  %v2421 = vunpack.c.0.s8 %v2420
  %v2422 = vlaneseq
  %v2423 = vshrl.u32 %v2422, 7
  %v2424 = vsub.s32 %v2421, %v2423
  %v2425 = vrot.slane %v2417, %v2424
  %v2427 = vunpack.c.l.s4 1983009808
  %v2428 = vunpack.c.0.s8 %v2427
  %v2429 = vlaneseq
  %v2430 = vshrl.u32 %v2429, 7
  %v2431 = vsub.s32 %v2428, %v2430
  %v2432 = vrot.slane %v2418, %v2431
  %v2433 = vcombine.low %v2425, %v2432
  %v2434 = vcombine.low %v802, %v809
  %v2435 = vcombine.low %v816, %v823
  %v2437 = vunpack.c.l.s4 1983009808
  %v2438 = vunpack.c.0.s8 %v2437
  %v2439 = vlaneseq
  %v2440 = vshrl.u32 %v2439, 7
  %v2441 = vsub.s32 %v2438, %v2440
  %v2442 = vrot.slane %v2434, %v2441
  %v2444 = vunpack.c.l.s4 1983009808
  %v2445 = vunpack.c.0.s8 %v2444
  %v2446 = vlaneseq
  %v2447 = vshrl.u32 %v2446, 7
  %v2448 = vsub.s32 %v2445, %v2447
  %v2449 = vrot.slane %v2435, %v2448
  %v2450 = vcombine.low %v2442, %v2449
  %v2451 = vcombine.low %v830, %v837
  %v2452 = vcombine.low %v844, %v851
  %v2454 = vunpack.c.l.s4 1983009808
  %v2455 = vunpack.c.0.s8 %v2454
  %v2456 = vlaneseq
  %v2457 = vshrl.u32 %v2456, 7
  %v2458 = vsub.s32 %v2455, %v2457
  %v2459 = vrot.slane %v2451, %v2458
  %v2461 = vunpack.c.l.s4 1983009808
  %v2462 = vunpack.c.0.s8 %v2461
  %v2463 = vlaneseq
  %v2464 = vshrl.u32 %v2463, 7
  %v2465 = vsub.s32 %v2462, %v2464
  %v2466 = vrot.slane %v2452, %v2465
  %v2467 = vcombine.low %v2459, %v2466
  %v2468 = vcombine.low %v858, %v865
  %v2469 = vcombine.low %v872, %v879
  %v2471 = vunpack.c.l.s4 1983009808
  %v2472 = vunpack.c.0.s8 %v2471
  %v2473 = vlaneseq
  %v2474 = vshrl.u32 %v2473, 7
  %v2475 = vsub.s32 %v2472, %v2474
  %v2476 = vrot.slane %v2468, %v2475
  %v2478 = vunpack.c.l.s4 1983009808
  %v2479 = vunpack.c.0.s8 %v2478
  %v2480 = vlaneseq
  %v2481 = vshrl.u32 %v2480, 7
  %v2482 = vsub.s32 %v2479, %v2481
  %v2483 = vrot.slane %v2469, %v2482
  %v2484 = vcombine.low %v2476, %v2483
  %v2485 = vcombine.low %v886, %v893
  %v2486 = vcombine.low %v900, %v907
  %v2488 = vunpack.c.l.s4 1983009808
  %v2489 = vunpack.c.0.s8 %v2488
  %v2490 = vlaneseq
  %v2491 = vshrl.u32 %v2490, 7
  %v2492 = vsub.s32 %v2489, %v2491
  %v2493 = vrot.slane %v2485, %v2492
  %v2495 = vunpack.c.l.s4 1983009808
  %v2496 = vunpack.c.0.s8 %v2495
  %v2497 = vlaneseq
  %v2498 = vshrl.u32 %v2497, 7
  %v2499 = vsub.s32 %v2496, %v2498
  %v2500 = vrot.slane %v2486, %v2499
  %v2501 = vcombine.low %v2493, %v2500
  %v2502 = vcombine.low %v914, %v921
  %v2503 = vcombine.low %v928, %v935
  %v2505 = vunpack.c.l.s4 1983009808
  %v2506 = vunpack.c.0.s8 %v2505
  %v2507 = vlaneseq
  %v2508 = vshrl.u32 %v2507, 7
  %v2509 = vsub.s32 %v2506, %v2508
  %v2510 = vrot.slane %v2502, %v2509
  %v2512 = vunpack.c.l.s4 1983009808
  %v2513 = vunpack.c.0.s8 %v2512
  %v2514 = vlaneseq
  %v2515 = vshrl.u32 %v2514, 7
  %v2516 = vsub.s32 %v2513, %v2515
  %v2517 = vrot.slane %v2503, %v2516
  %v2518 = vcombine.low %v2510, %v2517
  %v2519 = vcombine.low %v942, %v949
  %v2520 = vcombine.low %v956, %v963
  %v2522 = vunpack.c.l.s4 1983009808
  %v2523 = vunpack.c.0.s8 %v2522
  %v2524 = vlaneseq
  %v2525 = vshrl.u32 %v2524, 7
  %v2526 = vsub.s32 %v2523, %v2525
  %v2527 = vrot.slane %v2519, %v2526
  %v2529 = vunpack.c.l.s4 1983009808
  %v2530 = vunpack.c.0.s8 %v2529
  %v2531 = vlaneseq
  %v2532 = vshrl.u32 %v2531, 7
  %v2533 = vsub.s32 %v2530, %v2532
  %v2534 = vrot.slane %v2520, %v2533
  %v2535 = vcombine.low %v2527, %v2534
  %v2536 = vcombine.low %v970, %v977
  %v2537 = vcombine.low %v984, %v991
  %v2539 = vunpack.c.l.s4 1983009808
  %v2540 = vunpack.c.0.s8 %v2539
  %v2541 = vlaneseq
  %v2542 = vshrl.u32 %v2541, 7
  %v2543 = vsub.s32 %v2540, %v2542
  %v2544 = vrot.slane %v2536, %v2543
  %v2546 = vunpack.c.l.s4 1983009808
  %v2547 = vunpack.c.0.s8 %v2546
  %v2548 = vlaneseq
  %v2549 = vshrl.u32 %v2548, 7
  %v2550 = vsub.s32 %v2547, %v2549
  %v2551 = vrot.slane %v2537, %v2550
  %v2552 = vcombine.low %v2544, %v2551
  %v2553 = vcombine.low %v998, %v1005
  %v2554 = vcombine.low %v1012, %v1019
  %v2556 = vunpack.c.l.s4 1983009808
  %v2557 = vunpack.c.0.s8 %v2556
  %v2558 = vlaneseq
  %v2559 = vshrl.u32 %v2558, 7
  %v2560 = vsub.s32 %v2557, %v2559
  %v2561 = vrot.slane %v2553, %v2560
  %v2563 = vunpack.c.l.s4 1983009808
  %v2564 = vunpack.c.0.s8 %v2563
  %v2565 = vlaneseq
  %v2566 = vshrl.u32 %v2565, 7
  %v2567 = vsub.s32 %v2564, %v2566
  %v2568 = vrot.slane %v2554, %v2567
  %v2569 = vcombine.low %v2561, %v2568
  %v2570 = vcombine.low %v1026, %v1033
  %v2571 = vcombine.low %v1040, %v1047
  %v2573 = vunpack.c.l.s4 1983009808
  %v2574 = vunpack.c.0.s8 %v2573
  %v2575 = vlaneseq
  %v2576 = vshrl.u32 %v2575, 7
  %v2577 = vsub.s32 %v2574, %v2576
  %v2578 = vrot.slane %v2570, %v2577
  %v2580 = vunpack.c.l.s4 1983009808
  %v2581 = vunpack.c.0.s8 %v2580
  %v2582 = vlaneseq
  %v2583 = vshrl.u32 %v2582, 7
  %v2584 = vsub.s32 %v2581, %v2583
  %v2585 = vrot.slane %v2571, %v2584
  %v2586 = vcombine.low %v2578, %v2585
  %v2587 = vcombine.low %v1054, %v1061
  %v2588 = vcombine.low %v1068, %v1075
  %v2590 = vunpack.c.l.s4 1983009808
  %v2591 = vunpack.c.0.s8 %v2590
  %v2592 = vlaneseq
  %v2593 = vshrl.u32 %v2592, 7
  %v2594 = vsub.s32 %v2591, %v2593
  %v2595 = vrot.slane %v2587, %v2594
  %v2597 = vunpack.c.l.s4 1983009808
  %v2598 = vunpack.c.0.s8 %v2597
  %v2599 = vlaneseq
  %v2600 = vshrl.u32 %v2599, 7
  %v2601 = vsub.s32 %v2598, %v2600
  %v2602 = vrot.slane %v2588, %v2601
  %v2603 = vcombine.low %v2595, %v2602
  %v2604 = vcombine.low %v1082, %v1089
  %v2605 = vcombine.low %v1096, %v1103
  %v2607 = vunpack.c.l.s4 1983009808
  %v2608 = vunpack.c.0.s8 %v2607
  %v2609 = vlaneseq
  %v2610 = vshrl.u32 %v2609, 7
  %v2611 = vsub.s32 %v2608, %v2610
  %v2612 = vrot.slane %v2604, %v2611
  %v2614 = vunpack.c.l.s4 1983009808
  %v2615 = vunpack.c.0.s8 %v2614
  %v2616 = vlaneseq
  %v2617 = vshrl.u32 %v2616, 7
  %v2618 = vsub.s32 %v2615, %v2617
  %v2619 = vrot.slane %v2605, %v2618
  %v2620 = vcombine.low %v2612, %v2619
  %v2621 = vcombine.low %v1110, %v1117
  %v2622 = vcombine.low %v1124, %v1131
  %v2624 = vunpack.c.l.s4 1983009808
  %v2625 = vunpack.c.0.s8 %v2624
  %v2626 = vlaneseq
  %v2627 = vshrl.u32 %v2626, 7
  %v2628 = vsub.s32 %v2625, %v2627
  %v2629 = vrot.slane %v2621, %v2628
  %v2631 = vunpack.c.l.s4 1983009808
  %v2632 = vunpack.c.0.s8 %v2631
  %v2633 = vlaneseq
  %v2634 = vshrl.u32 %v2633, 7
  %v2635 = vsub.s32 %v2632, %v2634
  %v2636 = vrot.slane %v2622, %v2635
  %v2637 = vcombine.low %v2629, %v2636
  %v2638 = vcombine.low %v1138, %v1145
  %v2639 = vcombine.low %v1152, %v1159
  %v2641 = vunpack.c.l.s4 1983009808
  %v2642 = vunpack.c.0.s8 %v2641
  %v2643 = vlaneseq
  %v2644 = vshrl.u32 %v2643, 7
  %v2645 = vsub.s32 %v2642, %v2644
  %v2646 = vrot.slane %v2638, %v2645
  %v2648 = vunpack.c.l.s4 1983009808
  %v2649 = vunpack.c.0.s8 %v2648
  %v2650 = vlaneseq
  %v2651 = vshrl.u32 %v2650, 7
  %v2652 = vsub.s32 %v2649, %v2651
  %v2653 = vrot.slane %v2639, %v2652
  %v2654 = vcombine.low %v2646, %v2653
  %v2655 = vcombine.low %v1166, %v1173
  %v2656 = vcombine.low %v1180, %v1187
  %v2658 = vunpack.c.l.s4 1983009808
  %v2659 = vunpack.c.0.s8 %v2658
  %v2660 = vlaneseq
  %v2661 = vshrl.u32 %v2660, 7
  %v2662 = vsub.s32 %v2659, %v2661
  %v2663 = vrot.slane %v2655, %v2662
  %v2665 = vunpack.c.l.s4 1983009808
  %v2666 = vunpack.c.0.s8 %v2665
  %v2667 = vlaneseq
  %v2668 = vshrl.u32 %v2667, 7
  %v2669 = vsub.s32 %v2666, %v2668
  %v2670 = vrot.slane %v2656, %v2669
  %v2671 = vcombine.low %v2663, %v2670
  %v2672 = vcombine.low %v1194, %v1201
  %v2673 = vcombine.low %v1208, %v1215
  %v2675 = vunpack.c.l.s4 1983009808
  %v2676 = vunpack.c.0.s8 %v2675
  %v2677 = vlaneseq
  %v2678 = vshrl.u32 %v2677, 7
  %v2679 = vsub.s32 %v2676, %v2678
  %v2680 = vrot.slane %v2672, %v2679
  %v2682 = vunpack.c.l.s4 1983009808
  %v2683 = vunpack.c.0.s8 %v2682
  %v2684 = vlaneseq
  %v2685 = vshrl.u32 %v2684, 7
  %v2686 = vsub.s32 %v2683, %v2685
  %v2687 = vrot.slane %v2673, %v2686
  %v2688 = vcombine.low %v2680, %v2687
  %v2689 = vcombine.low %v1222, %v1229
  %v2690 = vcombine.low %v1236, %v1243
  %v2692 = vunpack.c.l.s4 1983009808
  %v2693 = vunpack.c.0.s8 %v2692
  %v2694 = vlaneseq
  %v2695 = vshrl.u32 %v2694, 7
  %v2696 = vsub.s32 %v2693, %v2695
  %v2697 = vrot.slane %v2689, %v2696
  %v2699 = vunpack.c.l.s4 1983009808
  %v2700 = vunpack.c.0.s8 %v2699
  %v2701 = vlaneseq
  %v2702 = vshrl.u32 %v2701, 7
  %v2703 = vsub.s32 %v2700, %v2702
  %v2704 = vrot.slane %v2690, %v2703
  %v2705 = vcombine.low %v2697, %v2704
  %v2706 = vcombine.low %v1250, %v1257
  %v2707 = vcombine.low %v1264, %v1271
  %v2709 = vunpack.c.l.s4 1983009808
  %v2710 = vunpack.c.0.s8 %v2709
  %v2711 = vlaneseq
  %v2712 = vshrl.u32 %v2711, 7
  %v2713 = vsub.s32 %v2710, %v2712
  %v2714 = vrot.slane %v2706, %v2713
  %v2716 = vunpack.c.l.s4 1983009808
  %v2717 = vunpack.c.0.s8 %v2716
  %v2718 = vlaneseq
  %v2719 = vshrl.u32 %v2718, 7
  %v2720 = vsub.s32 %v2717, %v2719
  %v2721 = vrot.slane %v2707, %v2720
  %v2722 = vcombine.low %v2714, %v2721
  %v2723 = vcombine.low %v1278, %v1285
  %v2724 = vcombine.low %v1292, %v1299
  %v2726 = vunpack.c.l.s4 1983009808
  %v2727 = vunpack.c.0.s8 %v2726
  %v2728 = vlaneseq
  %v2729 = vshrl.u32 %v2728, 7
  %v2730 = vsub.s32 %v2727, %v2729
  %v2731 = vrot.slane %v2723, %v2730
  %v2733 = vunpack.c.l.s4 1983009808
  %v2734 = vunpack.c.0.s8 %v2733
  %v2735 = vlaneseq
  %v2736 = vshrl.u32 %v2735, 7
  %v2737 = vsub.s32 %v2734, %v2736
  %v2738 = vrot.slane %v2724, %v2737
  %v2739 = vcombine.low %v2731, %v2738
  %v2740 = vcombine.low %v1306, %v1313
  %v2741 = vcombine.low %v1320, %v1327
  %v2743 = vunpack.c.l.s4 1983009808
  %v2744 = vunpack.c.0.s8 %v2743
  %v2745 = vlaneseq
  %v2746 = vshrl.u32 %v2745, 7
  %v2747 = vsub.s32 %v2744, %v2746
  %v2748 = vrot.slane %v2740, %v2747
  %v2750 = vunpack.c.l.s4 1983009808
  %v2751 = vunpack.c.0.s8 %v2750
  %v2752 = vlaneseq
  %v2753 = vshrl.u32 %v2752, 7
  %v2754 = vsub.s32 %v2751, %v2753
  %v2755 = vrot.slane %v2741, %v2754
  %v2756 = vcombine.low %v2748, %v2755
  %v2757 = vcombine.low %v1334, %v1341
  %v2758 = vcombine.low %v1348, %v1355
  %v2760 = vunpack.c.l.s4 1983009808
  %v2761 = vunpack.c.0.s8 %v2760
  %v2762 = vlaneseq
  %v2763 = vshrl.u32 %v2762, 7
  %v2764 = vsub.s32 %v2761, %v2763
  %v2765 = vrot.slane %v2757, %v2764
  %v2767 = vunpack.c.l.s4 1983009808
  %v2768 = vunpack.c.0.s8 %v2767
  %v2769 = vlaneseq
  %v2770 = vshrl.u32 %v2769, 7
  %v2771 = vsub.s32 %v2768, %v2770
  %v2772 = vrot.slane %v2758, %v2771
  %v2773 = vcombine.low %v2765, %v2772
  %v2774 = vcombine.low %v1362, %v1369
  %v2775 = vcombine.low %v1376, %v1383
  %v2777 = vunpack.c.l.s4 1983009808
  %v2778 = vunpack.c.0.s8 %v2777
  %v2779 = vlaneseq
  %v2780 = vshrl.u32 %v2779, 7
  %v2781 = vsub.s32 %v2778, %v2780
  %v2782 = vrot.slane %v2774, %v2781
  %v2784 = vunpack.c.l.s4 1983009808
  %v2785 = vunpack.c.0.s8 %v2784
  %v2786 = vlaneseq
  %v2787 = vshrl.u32 %v2786, 7
  %v2788 = vsub.s32 %v2785, %v2787
  %v2789 = vrot.slane %v2775, %v2788
  %v2790 = vcombine.low %v2782, %v2789
  %v2791 = vcombine.low %v1390, %v1397
  %v2792 = vcombine.low %v1404, %v1411
  %v2794 = vunpack.c.l.s4 1983009808
  %v2795 = vunpack.c.0.s8 %v2794
  %v2796 = vlaneseq
  %v2797 = vshrl.u32 %v2796, 7
  %v2798 = vsub.s32 %v2795, %v2797
  %v2799 = vrot.slane %v2791, %v2798
  %v2801 = vunpack.c.l.s4 1983009808
  %v2802 = vunpack.c.0.s8 %v2801
  %v2803 = vlaneseq
  %v2804 = vshrl.u32 %v2803, 7
  %v2805 = vsub.s32 %v2802, %v2804
  %v2806 = vrot.slane %v2792, %v2805
  %v2807 = vcombine.low %v2799, %v2806
  %v2808 = vcombine.low %v1418, %v1425
  %v2809 = vcombine.low %v1432, %v1439
  %v2811 = vunpack.c.l.s4 1983009808
  %v2812 = vunpack.c.0.s8 %v2811
  %v2813 = vlaneseq
  %v2814 = vshrl.u32 %v2813, 7
  %v2815 = vsub.s32 %v2812, %v2814
  %v2816 = vrot.slane %v2808, %v2815
  %v2818 = vunpack.c.l.s4 1983009808
  %v2819 = vunpack.c.0.s8 %v2818
  %v2820 = vlaneseq
  %v2821 = vshrl.u32 %v2820, 7
  %v2822 = vsub.s32 %v2819, %v2821
  %v2823 = vrot.slane %v2809, %v2822
  %v2824 = vcombine.low %v2816, %v2823
  %v2825 = vcombine.low %v1446, %v1453
  %v2826 = vcombine.low %v1460, %v1467
  %v2828 = vunpack.c.l.s4 1983009808
  %v2829 = vunpack.c.0.s8 %v2828
  %v2830 = vlaneseq
  %v2831 = vshrl.u32 %v2830, 7
  %v2832 = vsub.s32 %v2829, %v2831
  %v2833 = vrot.slane %v2825, %v2832
  %v2835 = vunpack.c.l.s4 1983009808
  %v2836 = vunpack.c.0.s8 %v2835
  %v2837 = vlaneseq
  %v2838 = vshrl.u32 %v2837, 7
  %v2839 = vsub.s32 %v2836, %v2838
  %v2840 = vrot.slane %v2826, %v2839
  %v2841 = vcombine.low %v2833, %v2840
  %v2842 = vcombine.low %v1474, %v1481
  %v2843 = vcombine.low %v1488, %v1495
  %v2845 = vunpack.c.l.s4 1983009808
  %v2846 = vunpack.c.0.s8 %v2845
  %v2847 = vlaneseq
  %v2848 = vshrl.u32 %v2847, 7
  %v2849 = vsub.s32 %v2846, %v2848
  %v2850 = vrot.slane %v2842, %v2849
  %v2852 = vunpack.c.l.s4 1983009808
  %v2853 = vunpack.c.0.s8 %v2852
  %v2854 = vlaneseq
  %v2855 = vshrl.u32 %v2854, 7
  %v2856 = vsub.s32 %v2853, %v2855
  %v2857 = vrot.slane %v2843, %v2856
  %v2858 = vcombine.low %v2850, %v2857
  %v2859 = vcombine.low %v1502, %v1509
  %v2860 = vcombine.low %v1516, %v1523
  %v2862 = vunpack.c.l.s4 1983009808
  %v2863 = vunpack.c.0.s8 %v2862
  %v2864 = vlaneseq
  %v2865 = vshrl.u32 %v2864, 7
  %v2866 = vsub.s32 %v2863, %v2865
  %v2867 = vrot.slane %v2859, %v2866
  %v2869 = vunpack.c.l.s4 1983009808
  %v2870 = vunpack.c.0.s8 %v2869
  %v2871 = vlaneseq
  %v2872 = vshrl.u32 %v2871, 7
  %v2873 = vsub.s32 %v2870, %v2872
  %v2874 = vrot.slane %v2860, %v2873
  %v2875 = vcombine.low %v2867, %v2874
  %v2876 = vcombine.low %v1530, %v1537
  %v2877 = vcombine.low %v1544, %v1551
  %v2879 = vunpack.c.l.s4 1983009808
  %v2880 = vunpack.c.0.s8 %v2879
  %v2881 = vlaneseq
  %v2882 = vshrl.u32 %v2881, 7
  %v2883 = vsub.s32 %v2880, %v2882
  %v2884 = vrot.slane %v2876, %v2883
  %v2886 = vunpack.c.l.s4 1983009808
  %v2887 = vunpack.c.0.s8 %v2886
  %v2888 = vlaneseq
  %v2889 = vshrl.u32 %v2888, 7
  %v2890 = vsub.s32 %v2887, %v2889
  %v2891 = vrot.slane %v2877, %v2890
  %v2892 = vcombine.low %v2884, %v2891
  %v2893 = vcombine.low %v1558, %v1565
  %v2894 = vcombine.low %v1572, %v1579
  %v2896 = vunpack.c.l.s4 1983009808
  %v2897 = vunpack.c.0.s8 %v2896
  %v2898 = vlaneseq
  %v2899 = vshrl.u32 %v2898, 7
  %v2900 = vsub.s32 %v2897, %v2899
  %v2901 = vrot.slane %v2893, %v2900
  %v2903 = vunpack.c.l.s4 1983009808
  %v2904 = vunpack.c.0.s8 %v2903
  %v2905 = vlaneseq
  %v2906 = vshrl.u32 %v2905, 7
  %v2907 = vsub.s32 %v2904, %v2906
  %v2908 = vrot.slane %v2894, %v2907
  %v2909 = vcombine.low %v2901, %v2908
  %v2910 = vcombine.low %v1586, %v1593
  %v2911 = vcombine.low %v1600, %v1607
  %v2913 = vunpack.c.l.s4 1983009808
  %v2914 = vunpack.c.0.s8 %v2913
  %v2915 = vlaneseq
  %v2916 = vshrl.u32 %v2915, 7
  %v2917 = vsub.s32 %v2914, %v2916
  %v2918 = vrot.slane %v2910, %v2917
  %v2920 = vunpack.c.l.s4 1983009808
  %v2921 = vunpack.c.0.s8 %v2920
  %v2922 = vlaneseq
  %v2923 = vshrl.u32 %v2922, 7
  %v2924 = vsub.s32 %v2921, %v2923
  %v2925 = vrot.slane %v2911, %v2924
  %v2926 = vcombine.low %v2918, %v2925
  %v2927 = vcombine.low %v1614, %v1621
  %v2928 = vcombine.low %v1628, %v1635
  %v2930 = vunpack.c.l.s4 1983009808
  %v2931 = vunpack.c.0.s8 %v2930
  %v2932 = vlaneseq
  %v2933 = vshrl.u32 %v2932, 7
  %v2934 = vsub.s32 %v2931, %v2933
  %v2935 = vrot.slane %v2927, %v2934
  %v2937 = vunpack.c.l.s4 1983009808
  %v2938 = vunpack.c.0.s8 %v2937
  %v2939 = vlaneseq
  %v2940 = vshrl.u32 %v2939, 7
  %v2941 = vsub.s32 %v2938, %v2940
  %v2942 = vrot.slane %v2928, %v2941
  %v2943 = vcombine.low %v2935, %v2942
  %v2944 = vcombine.low %v1642, %v1649
  %v2945 = vcombine.low %v1656, %v1663
  %v2947 = vunpack.c.l.s4 1983009808
  %v2948 = vunpack.c.0.s8 %v2947
  %v2949 = vlaneseq
  %v2950 = vshrl.u32 %v2949, 7
  %v2951 = vsub.s32 %v2948, %v2950
  %v2952 = vrot.slane %v2944, %v2951
  %v2954 = vunpack.c.l.s4 1983009808
  %v2955 = vunpack.c.0.s8 %v2954
  %v2956 = vlaneseq
  %v2957 = vshrl.u32 %v2956, 7
  %v2958 = vsub.s32 %v2955, %v2957
  %v2959 = vrot.slane %v2945, %v2958
  %v2960 = vcombine.low %v2952, %v2959
  %v2961 = vcombine.low %v1670, %v1677
  %v2962 = vcombine.low %v1684, %v1691
  %v2964 = vunpack.c.l.s4 1983009808
  %v2965 = vunpack.c.0.s8 %v2964
  %v2966 = vlaneseq
  %v2967 = vshrl.u32 %v2966, 7
  %v2968 = vsub.s32 %v2965, %v2967
  %v2969 = vrot.slane %v2961, %v2968
  %v2971 = vunpack.c.l.s4 1983009808
  %v2972 = vunpack.c.0.s8 %v2971
  %v2973 = vlaneseq
  %v2974 = vshrl.u32 %v2973, 7
  %v2975 = vsub.s32 %v2972, %v2974
  %v2976 = vrot.slane %v2962, %v2975
  %v2977 = vcombine.low %v2969, %v2976
  %v2978 = vcombine.low %v1698, %v1705
  %v2979 = vcombine.low %v1712, %v1719
  %v2981 = vunpack.c.l.s4 1983009808
  %v2982 = vunpack.c.0.s8 %v2981
  %v2983 = vlaneseq
  %v2984 = vshrl.u32 %v2983, 7
  %v2985 = vsub.s32 %v2982, %v2984
  %v2986 = vrot.slane %v2978, %v2985
  %v2988 = vunpack.c.l.s4 1983009808
  %v2989 = vunpack.c.0.s8 %v2988
  %v2990 = vlaneseq
  %v2991 = vshrl.u32 %v2990, 7
  %v2992 = vsub.s32 %v2989, %v2991
  %v2993 = vrot.slane %v2979, %v2992
  %v2994 = vcombine.low %v2986, %v2993
  %v2995 = vcombine.low %v1726, %v1733
  %v2996 = vcombine.low %v1740, %v1747
  %v2998 = vunpack.c.l.s4 1983009808
  %v2999 = vunpack.c.0.s8 %v2998
  %v3000 = vlaneseq
  %v3001 = vshrl.u32 %v3000, 7
  %v3002 = vsub.s32 %v2999, %v3001
  %v3003 = vrot.slane %v2995, %v3002
  %v3005 = vunpack.c.l.s4 1983009808
  %v3006 = vunpack.c.0.s8 %v3005
  %v3007 = vlaneseq
  %v3008 = vshrl.u32 %v3007, 7
  %v3009 = vsub.s32 %v3006, %v3008
  %v3010 = vrot.slane %v2996, %v3009
  %v3011 = vcombine.low %v3003, %v3010
  %v3012 = vcombine.low %v1754, %v1761
  %v3013 = vcombine.low %v1768, %v1775
  %v3015 = vunpack.c.l.s4 1983009808
  %v3016 = vunpack.c.0.s8 %v3015
  %v3017 = vlaneseq
  %v3018 = vshrl.u32 %v3017, 7
  %v3019 = vsub.s32 %v3016, %v3018
  %v3020 = vrot.slane %v3012, %v3019
  %v3022 = vunpack.c.l.s4 1983009808
  %v3023 = vunpack.c.0.s8 %v3022
  %v3024 = vlaneseq
  %v3025 = vshrl.u32 %v3024, 7
  %v3026 = vsub.s32 %v3023, %v3025
  %v3027 = vrot.slane %v3013, %v3026
  %v3028 = vcombine.low %v3020, %v3027
  %v3029 = vcombine.low %v1782, %v1789
  %v3030 = vcombine.low %v1796, %v1803
  %v3032 = vunpack.c.l.s4 1983009808
  %v3033 = vunpack.c.0.s8 %v3032
  %v3034 = vlaneseq
  %v3035 = vshrl.u32 %v3034, 7
  %v3036 = vsub.s32 %v3033, %v3035
  %v3037 = vrot.slane %v3029, %v3036
  %v3039 = vunpack.c.l.s4 1983009808
  %v3040 = vunpack.c.0.s8 %v3039
  %v3041 = vlaneseq
  %v3042 = vshrl.u32 %v3041, 7
  %v3043 = vsub.s32 %v3040, %v3042
  %v3044 = vrot.slane %v3030, %v3043
  %v3045 = vcombine.low %v3037, %v3044
  %v3046 = vcombine.low %v1810, %v1817
  %v3047 = vcombine.low %v1824, %v1831
  %v3049 = vunpack.c.l.s4 1983009808
  %v3050 = vunpack.c.0.s8 %v3049
  %v3051 = vlaneseq
  %v3052 = vshrl.u32 %v3051, 7
  %v3053 = vsub.s32 %v3050, %v3052
  %v3054 = vrot.slane %v3046, %v3053
  %v3056 = vunpack.c.l.s4 1983009808
  %v3057 = vunpack.c.0.s8 %v3056
  %v3058 = vlaneseq
  %v3059 = vshrl.u32 %v3058, 7
  %v3060 = vsub.s32 %v3057, %v3059
  %v3061 = vrot.slane %v3047, %v3060
  %v3062 = vcombine.low %v3054, %v3061
  %v3063 = vcombine.low %v1838, %v1845
  %v3064 = vcombine.low %v1852, %v1859
  %v3066 = vunpack.c.l.s4 1983009808
  %v3067 = vunpack.c.0.s8 %v3066
  %v3068 = vlaneseq
  %v3069 = vshrl.u32 %v3068, 7
  %v3070 = vsub.s32 %v3067, %v3069
  %v3071 = vrot.slane %v3063, %v3070
  %v3073 = vunpack.c.l.s4 1983009808
  %v3074 = vunpack.c.0.s8 %v3073
  %v3075 = vlaneseq
  %v3076 = vshrl.u32 %v3075, 7
  %v3077 = vsub.s32 %v3074, %v3076
  %v3078 = vrot.slane %v3064, %v3077
  %v3079 = vcombine.low %v3071, %v3078
  %v3080 = vcombine.low %v1866, %v1873
  %v3081 = vcombine.low %v1880, %v1887
  %v3083 = vunpack.c.l.s4 1983009808
  %v3084 = vunpack.c.0.s8 %v3083
  %v3085 = vlaneseq
  %v3086 = vshrl.u32 %v3085, 7
  %v3087 = vsub.s32 %v3084, %v3086
  %v3088 = vrot.slane %v3080, %v3087
  %v3090 = vunpack.c.l.s4 1983009808
  %v3091 = vunpack.c.0.s8 %v3090
  %v3092 = vlaneseq
  %v3093 = vshrl.u32 %v3092, 7
  %v3094 = vsub.s32 %v3091, %v3093
  %v3095 = vrot.slane %v3081, %v3094
  %v3096 = vcombine.low %v3088, %v3095
  %v3097 = vcombine.low %v1894, %v1901
  %v3098 = vcombine.low %v1908, %v1915
  %v3100 = vunpack.c.l.s4 1983009808
  %v3101 = vunpack.c.0.s8 %v3100
  %v3102 = vlaneseq
  %v3103 = vshrl.u32 %v3102, 7
  %v3104 = vsub.s32 %v3101, %v3103
  %v3105 = vrot.slane %v3097, %v3104
  %v3107 = vunpack.c.l.s4 1983009808
  %v3108 = vunpack.c.0.s8 %v3107
  %v3109 = vlaneseq
  %v3110 = vshrl.u32 %v3109, 7
  %v3111 = vsub.s32 %v3108, %v3110
  %v3112 = vrot.slane %v3098, %v3111
  %v3113 = vcombine.low %v3105, %v3112
  %v3114 = vcombine.low %v1922, %v1929
  %v3115 = vcombine.low %v1936, %v1943
  %v3117 = vunpack.c.l.s4 1983009808
  %v3118 = vunpack.c.0.s8 %v3117
  %v3119 = vlaneseq
  %v3120 = vshrl.u32 %v3119, 7
  %v3121 = vsub.s32 %v3118, %v3120
  %v3122 = vrot.slane %v3114, %v3121
  %v3124 = vunpack.c.l.s4 1983009808
  %v3125 = vunpack.c.0.s8 %v3124
  %v3126 = vlaneseq
  %v3127 = vshrl.u32 %v3126, 7
  %v3128 = vsub.s32 %v3125, %v3127
  %v3129 = vrot.slane %v3115, %v3128
  %v3130 = vcombine.low %v3122, %v3129
  %v3131 = vcombine.low %v1950, %v1957
  %v3132 = vcombine.low %v1964, %v1971
  %v3134 = vunpack.c.l.s4 1983009808
  %v3135 = vunpack.c.0.s8 %v3134
  %v3136 = vlaneseq
  %v3137 = vshrl.u32 %v3136, 7
  %v3138 = vsub.s32 %v3135, %v3137
  %v3139 = vrot.slane %v3131, %v3138
  %v3141 = vunpack.c.l.s4 1983009808
  %v3142 = vunpack.c.0.s8 %v3141
  %v3143 = vlaneseq
  %v3144 = vshrl.u32 %v3143, 7
  %v3145 = vsub.s32 %v3142, %v3144
  %v3146 = vrot.slane %v3132, %v3145
  %v3147 = vcombine.low %v3139, %v3146
  %v3148 = vcombine.low %v1978, %v1985
  %v3149 = vcombine.low %v1992, %v1999
  %v3151 = vunpack.c.l.s4 1983009808
  %v3152 = vunpack.c.0.s8 %v3151
  %v3153 = vlaneseq
  %v3154 = vshrl.u32 %v3153, 7
  %v3155 = vsub.s32 %v3152, %v3154
  %v3156 = vrot.slane %v3148, %v3155
  %v3158 = vunpack.c.l.s4 1983009808
  %v3159 = vunpack.c.0.s8 %v3158
  %v3160 = vlaneseq
  %v3161 = vshrl.u32 %v3160, 7
  %v3162 = vsub.s32 %v3159, %v3161
  %v3163 = vrot.slane %v3149, %v3162
  %v3164 = vcombine.low %v3156, %v3163
  %v3165 = vcombine.low %v2006, %v2013
  %v3166 = vcombine.low %v2020, %v2027
  %v3168 = vunpack.c.l.s4 1983009808
  %v3169 = vunpack.c.0.s8 %v3168
  %v3170 = vlaneseq
  %v3171 = vshrl.u32 %v3170, 7
  %v3172 = vsub.s32 %v3169, %v3171
  %v3173 = vrot.slane %v3165, %v3172
  %v3175 = vunpack.c.l.s4 1983009808
  %v3176 = vunpack.c.0.s8 %v3175
  %v3177 = vlaneseq
  %v3178 = vshrl.u32 %v3177, 7
  %v3179 = vsub.s32 %v3176, %v3178
  %v3180 = vrot.slane %v3166, %v3179
  %v3181 = vcombine.low %v3173, %v3180
  %v3182 = vcombine.low %v2034, %v2041
  %v3183 = vcombine.low %v2048, %v2055
  %v3185 = vunpack.c.l.s4 1983009808
  %v3186 = vunpack.c.0.s8 %v3185
  %v3187 = vlaneseq
  %v3188 = vshrl.u32 %v3187, 7
  %v3189 = vsub.s32 %v3186, %v3188
  %v3190 = vrot.slane %v3182, %v3189
  %v3192 = vunpack.c.l.s4 1983009808
  %v3193 = vunpack.c.0.s8 %v3192
  %v3194 = vlaneseq
  %v3195 = vshrl.u32 %v3194, 7
  %v3196 = vsub.s32 %v3193, %v3195
  %v3197 = vrot.slane %v3183, %v3196
  %v3198 = vcombine.low %v3190, %v3197
  %v3199 = vcombine.low %v2062, %v2069
  %v3200 = vcombine.low %v2076, %v2083
  %v3202 = vunpack.c.l.s4 1983009808
  %v3203 = vunpack.c.0.s8 %v3202
  %v3204 = vlaneseq
  %v3205 = vshrl.u32 %v3204, 7
  %v3206 = vsub.s32 %v3203, %v3205
  %v3207 = vrot.slane %v3199, %v3206
  %v3209 = vunpack.c.l.s4 1983009808
  %v3210 = vunpack.c.0.s8 %v3209
  %v3211 = vlaneseq
  %v3212 = vshrl.u32 %v3211, 7
  %v3213 = vsub.s32 %v3210, %v3212
  %v3214 = vrot.slane %v3200, %v3213
  %v3215 = vcombine.low %v3207, %v3214
  %v3216 = vcombine.low %v2090, %v2097
  %v3217 = vcombine.low %v2104, %v2111
  %v3219 = vunpack.c.l.s4 1983009808
  %v3220 = vunpack.c.0.s8 %v3219
  %v3221 = vlaneseq
  %v3222 = vshrl.u32 %v3221, 7
  %v3223 = vsub.s32 %v3220, %v3222
  %v3224 = vrot.slane %v3216, %v3223
  %v3226 = vunpack.c.l.s4 1983009808
  %v3227 = vunpack.c.0.s8 %v3226
  %v3228 = vlaneseq
  %v3229 = vshrl.u32 %v3228, 7
  %v3230 = vsub.s32 %v3227, %v3229
  %v3231 = vrot.slane %v3217, %v3230
  %v3232 = vcombine.low %v3224, %v3231
  %v3233 = vcombine.low %v2118, %v2125
  %v3234 = vcombine.low %v2132, %v2139
  %v3236 = vunpack.c.l.s4 1983009808
  %v3237 = vunpack.c.0.s8 %v3236
  %v3238 = vlaneseq
  %v3239 = vshrl.u32 %v3238, 7
  %v3240 = vsub.s32 %v3237, %v3239
  %v3241 = vrot.slane %v3233, %v3240
  %v3243 = vunpack.c.l.s4 1983009808
  %v3244 = vunpack.c.0.s8 %v3243
  %v3245 = vlaneseq
  %v3246 = vshrl.u32 %v3245, 7
  %v3247 = vsub.s32 %v3244, %v3246
  %v3248 = vrot.slane %v3234, %v3247
  %v3249 = vcombine.low %v3241, %v3248
  %v3250 = vcombine.low %v2146, %v2153
  %v3251 = vcombine.low %v2160, %v2167
  %v3253 = vunpack.c.l.s4 1983009808
  %v3254 = vunpack.c.0.s8 %v3253
  %v3255 = vlaneseq
  %v3256 = vshrl.u32 %v3255, 7
  %v3257 = vsub.s32 %v3254, %v3256
  %v3258 = vrot.slane %v3250, %v3257
  %v3260 = vunpack.c.l.s4 1983009808
  %v3261 = vunpack.c.0.s8 %v3260
  %v3262 = vlaneseq
  %v3263 = vshrl.u32 %v3262, 7
  %v3264 = vsub.s32 %v3261, %v3263
  %v3265 = vrot.slane %v3251, %v3264
  %v3266 = vcombine.low %v3258, %v3265
  %v3267 = vcombine.low %v2174, %v2181
  %v3268 = vcombine.low %v2188, %v2195
  %v3270 = vunpack.c.l.s4 1983009808
  %v3271 = vunpack.c.0.s8 %v3270
  %v3272 = vlaneseq
  %v3273 = vshrl.u32 %v3272, 7
  %v3274 = vsub.s32 %v3271, %v3273
  %v3275 = vrot.slane %v3267, %v3274
  %v3277 = vunpack.c.l.s4 1983009808
  %v3278 = vunpack.c.0.s8 %v3277
  %v3279 = vlaneseq
  %v3280 = vshrl.u32 %v3279, 7
  %v3281 = vsub.s32 %v3278, %v3280
  %v3282 = vrot.slane %v3268, %v3281
  %v3283 = vcombine.low %v3275, %v3282
  %3284 = vset.pattern.permute.xlu0 0
  %3285 = vperm.xlu0 %3284, %v2212
  %v3286 = vpop.permute.xlu0 %3285
  %3287 = vset.pattern.permute.xlu0 0
  %3288 = vperm.xlu0 %3287, %v2229
  %v3289 = vpop.permute.xlu0 %3288
  %3290 = vset.pattern.permute.xlu0 0
  %3291 = vperm.xlu0 %3290, %v2246
  %v3292 = vpop.permute.xlu0 %3291
  %3293 = vset.pattern.permute.xlu0 0
  %3294 = vperm.xlu0 %3293, %v2263
  %v3295 = vpop.permute.xlu0 %3294
  %3296 = vset.pattern.permute.xlu0 0
  %3297 = vperm.xlu0 %3296, %v2280
  %v3298 = vpop.permute.xlu0 %3297
  %3299 = vset.pattern.permute.xlu0 0
  %3300 = vperm.xlu0 %3299, %v2297
  %v3301 = vpop.permute.xlu0 %3300
  %3302 = vset.pattern.permute.xlu0 0
  %3303 = vperm.xlu0 %3302, %v2314
  %v3304 = vpop.permute.xlu0 %3303
  %3305 = vset.pattern.permute.xlu0 0
  %3306 = vperm.xlu0 %3305, %v2331
  %v3307 = vpop.permute.xlu0 %3306
  %3308 = vset.pattern.permute.xlu0 0
  %3309 = vperm.xlu0 %3308, %v2348
  %v3310 = vpop.permute.xlu0 %3309
  %3311 = vset.pattern.permute.xlu0 0
  %3312 = vperm.xlu0 %3311, %v2365
  %v3313 = vpop.permute.xlu0 %3312
  %3314 = vset.pattern.permute.xlu0 0
  %3315 = vperm.xlu0 %3314, %v2382
  %v3316 = vpop.permute.xlu0 %3315
  %3317 = vset.pattern.permute.xlu0 0
  %3318 = vperm.xlu0 %3317, %v2399
  %v3319 = vpop.permute.xlu0 %3318
  %3320 = vset.pattern.permute.xlu0 0
  %3321 = vperm.xlu0 %3320, %v2416
  %v3322 = vpop.permute.xlu0 %3321
  %3323 = vset.pattern.permute.xlu0 0
  %3324 = vperm.xlu0 %3323, %v2433
  %v3325 = vpop.permute.xlu0 %3324
  %3326 = vset.pattern.permute.xlu0 0
  %3327 = vperm.xlu0 %3326, %v2450
  %v3328 = vpop.permute.xlu0 %3327
  %3329 = vset.pattern.permute.xlu0 0
  %3330 = vperm.xlu0 %3329, %v2467
  %v3331 = vpop.permute.xlu0 %3330
  %3332 = vset.pattern.permute.xlu0 0
  %3333 = vperm.xlu0 %3332, %v2484
  %v3334 = vpop.permute.xlu0 %3333
  %3335 = vset.pattern.permute.xlu0 0
  %3336 = vperm.xlu0 %3335, %v2501
  %v3337 = vpop.permute.xlu0 %3336
  %3338 = vset.pattern.permute.xlu0 0
  %3339 = vperm.xlu0 %3338, %v2518
  %v3340 = vpop.permute.xlu0 %3339
  %3341 = vset.pattern.permute.xlu0 0
  %3342 = vperm.xlu0 %3341, %v2535
  %v3343 = vpop.permute.xlu0 %3342
  %3344 = vset.pattern.permute.xlu0 0
  %3345 = vperm.xlu0 %3344, %v2552
  %v3346 = vpop.permute.xlu0 %3345
  %3347 = vset.pattern.permute.xlu0 0
  %3348 = vperm.xlu0 %3347, %v2569
  %v3349 = vpop.permute.xlu0 %3348
  %3350 = vset.pattern.permute.xlu0 0
  %3351 = vperm.xlu0 %3350, %v2586
  %v3352 = vpop.permute.xlu0 %3351
  %3353 = vset.pattern.permute.xlu0 0
  %3354 = vperm.xlu0 %3353, %v2603
  %v3355 = vpop.permute.xlu0 %3354
  %3356 = vset.pattern.permute.xlu0 0
  %3357 = vperm.xlu0 %3356, %v2620
  %v3358 = vpop.permute.xlu0 %3357
  %3359 = vset.pattern.permute.xlu0 0
  %3360 = vperm.xlu0 %3359, %v2637
  %v3361 = vpop.permute.xlu0 %3360
  %3362 = vset.pattern.permute.xlu0 0
  %3363 = vperm.xlu0 %3362, %v2654
  %v3364 = vpop.permute.xlu0 %3363
  %3365 = vset.pattern.permute.xlu0 0
  %3366 = vperm.xlu0 %3365, %v2671
  %v3367 = vpop.permute.xlu0 %3366
  %3368 = vset.pattern.permute.xlu0 0
  %3369 = vperm.xlu0 %3368, %v2688
  %v3370 = vpop.permute.xlu0 %3369
  %3371 = vset.pattern.permute.xlu0 0
  %3372 = vperm.xlu0 %3371, %v2705
  %v3373 = vpop.permute.xlu0 %3372
  %3374 = vset.pattern.permute.xlu0 0
  %3375 = vperm.xlu0 %3374, %v2722
  %v3376 = vpop.permute.xlu0 %3375
  %3377 = vset.pattern.permute.xlu0 0
  %3378 = vperm.xlu0 %3377, %v2739
  %v3379 = vpop.permute.xlu0 %3378
  %3380 = vset.pattern.permute.xlu0 0
  %3381 = vperm.xlu0 %3380, %v2756
  %v3382 = vpop.permute.xlu0 %3381
  %3383 = vset.pattern.permute.xlu0 0
  %3384 = vperm.xlu0 %3383, %v2773
  %v3385 = vpop.permute.xlu0 %3384
  %3386 = vset.pattern.permute.xlu0 0
  %3387 = vperm.xlu0 %3386, %v2790
  %v3388 = vpop.permute.xlu0 %3387
  %3389 = vset.pattern.permute.xlu0 0
  %3390 = vperm.xlu0 %3389, %v2807
  %v3391 = vpop.permute.xlu0 %3390
  %3392 = vset.pattern.permute.xlu0 0
  %3393 = vperm.xlu0 %3392, %v2824
  %v3394 = vpop.permute.xlu0 %3393
  %3395 = vset.pattern.permute.xlu0 0
  %3396 = vperm.xlu0 %3395, %v2841
  %v3397 = vpop.permute.xlu0 %3396
  %3398 = vset.pattern.permute.xlu0 0
  %3399 = vperm.xlu0 %3398, %v2858
  %v3400 = vpop.permute.xlu0 %3399
  %3401 = vset.pattern.permute.xlu0 0
  %3402 = vperm.xlu0 %3401, %v2875
  %v3403 = vpop.permute.xlu0 %3402
  %3404 = vset.pattern.permute.xlu0 0
  %3405 = vperm.xlu0 %3404, %v2892
  %v3406 = vpop.permute.xlu0 %3405
  %3407 = vset.pattern.permute.xlu0 0
  %3408 = vperm.xlu0 %3407, %v2909
  %v3409 = vpop.permute.xlu0 %3408
  %3410 = vset.pattern.permute.xlu0 0
  %3411 = vperm.xlu0 %3410, %v2926
  %v3412 = vpop.permute.xlu0 %3411
  %3413 = vset.pattern.permute.xlu0 0
  %3414 = vperm.xlu0 %3413, %v2943
  %v3415 = vpop.permute.xlu0 %3414
  %3416 = vset.pattern.permute.xlu0 0
  %3417 = vperm.xlu0 %3416, %v2960
  %v3418 = vpop.permute.xlu0 %3417
  %3419 = vset.pattern.permute.xlu0 0
  %3420 = vperm.xlu0 %3419, %v2977
  %v3421 = vpop.permute.xlu0 %3420
  %3422 = vset.pattern.permute.xlu0 0
  %3423 = vperm.xlu0 %3422, %v2994
  %v3424 = vpop.permute.xlu0 %3423
  %3425 = vset.pattern.permute.xlu0 0
  %3426 = vperm.xlu0 %3425, %v3011
  %v3427 = vpop.permute.xlu0 %3426
  %3428 = vset.pattern.permute.xlu0 0
  %3429 = vperm.xlu0 %3428, %v3028
  %v3430 = vpop.permute.xlu0 %3429
  %3431 = vset.pattern.permute.xlu0 0
  %3432 = vperm.xlu0 %3431, %v3045
  %v3433 = vpop.permute.xlu0 %3432
  %3434 = vset.pattern.permute.xlu0 0
  %3435 = vperm.xlu0 %3434, %v3062
  %v3436 = vpop.permute.xlu0 %3435
  %3437 = vset.pattern.permute.xlu0 0
  %3438 = vperm.xlu0 %3437, %v3079
  %v3439 = vpop.permute.xlu0 %3438
  %3440 = vset.pattern.permute.xlu0 0
  %3441 = vperm.xlu0 %3440, %v3096
  %v3442 = vpop.permute.xlu0 %3441
  %3443 = vset.pattern.permute.xlu0 0
  %3444 = vperm.xlu0 %3443, %v3113
  %v3445 = vpop.permute.xlu0 %3444
  %3446 = vset.pattern.permute.xlu0 0
  %3447 = vperm.xlu0 %3446, %v3130
  %v3448 = vpop.permute.xlu0 %3447
  %3449 = vset.pattern.permute.xlu0 0
  %3450 = vperm.xlu0 %3449, %v3147
  %v3451 = vpop.permute.xlu0 %3450
  %3452 = vset.pattern.permute.xlu0 0
  %3453 = vperm.xlu0 %3452, %v3164
  %v3454 = vpop.permute.xlu0 %3453
  %3455 = vset.pattern.permute.xlu0 0
  %3456 = vperm.xlu0 %3455, %v3181
  %v3457 = vpop.permute.xlu0 %3456
  %3458 = vset.pattern.permute.xlu0 0
  %3459 = vperm.xlu0 %3458, %v3198
  %v3460 = vpop.permute.xlu0 %3459
  %3461 = vset.pattern.permute.xlu0 0
  %3462 = vperm.xlu0 %3461, %v3215
  %v3463 = vpop.permute.xlu0 %3462
  %3464 = vset.pattern.permute.xlu0 0
  %3465 = vperm.xlu0 %3464, %v3232
  %v3466 = vpop.permute.xlu0 %3465
  %3467 = vset.pattern.permute.xlu0 0
  %3468 = vperm.xlu0 %3467, %v3249
  %v3469 = vpop.permute.xlu0 %3468
  %3470 = vset.pattern.permute.xlu0 0
  %3471 = vperm.xlu0 %3470, %v3266
  %v3472 = vpop.permute.xlu0 %3471
  %3473 = vset.pattern.permute.xlu0 0
  %3474 = vperm.xlu0 %3473, %v3283
  %v3475 = vpop.permute.xlu0 %3474
  %v3476 = vlaneseq
  %v3477 = vand.u32 %v3476, 127
  %v3478 = vlaneseq
  %v3479 = vshrl.u32 %v3478, 7
  %v3480 = vsub.s32 %v3477, %v3479
  %v3481 = vrot.slane %v3286, %v3480
  %v3482 = vadd.s32 %v3477, 4294967288
  %v3483 = vlaneseq
  %v3484 = vshrl.u32 %v3483, 7
  %v3485 = vsub.s32 %v3482, %v3484
  %v3486 = vrot.slane %v3289, %v3485
  %vm3487 = vcmask 130112
  %v3488 = vsel %vm3487, %v3486, %v3481
  %v3489 = vadd.s32 %v3477, 4294967280
  %v3490 = vlaneseq
  %v3491 = vshrl.u32 %v3490, 7
  %v3492 = vsub.s32 %v3489, %v3491
  %v3493 = vrot.slane %v3292, %v3492
  %vm3494 = vcmask 195712
  %v3495 = vsel %vm3494, %v3493, %v3488
  %v3496 = vadd.s32 %v3477, 4294967272
  %v3497 = vlaneseq
  %v3498 = vshrl.u32 %v3497, 7
  %v3499 = vsub.s32 %v3496, %v3498
  %v3500 = vrot.slane %v3295, %v3499
  %vm3501 = vcmask 261312
  %v3502 = vsel %vm3501, %v3500, %v3495
  %v3503 = vadd.s32 %v3477, 4294967264
  %v3504 = vlaneseq
  %v3505 = vshrl.u32 %v3504, 7
  %v3506 = vsub.s32 %v3503, %v3505
  %v3507 = vrot.slane %v3298, %v3506
  %vm3508 = vcmask 326912
  %v3509 = vsel %vm3508, %v3507, %v3502
  %v3510 = vadd.s32 %v3477, 4294967256
  %v3511 = vlaneseq
  %v3512 = vshrl.u32 %v3511, 7
  %v3513 = vsub.s32 %v3510, %v3512
  %v3514 = vrot.slane %v3301, %v3513
  %vm3515 = vcmask 392512
  %v3516 = vsel %vm3515, %v3514, %v3509
  %v3517 = vadd.s32 %v3477, 4294967248
  %v3518 = vlaneseq
  %v3519 = vshrl.u32 %v3518, 7
  %v3520 = vsub.s32 %v3517, %v3519
  %v3521 = vrot.slane %v3304, %v3520
  %vm3522 = vcmask 458112
  %v3523 = vsel %vm3522, %v3521, %v3516
  %v3524 = vadd.s32 %v3477, 4294967240
  %v3525 = vlaneseq
  %v3526 = vshrl.u32 %v3525, 7
  %v3527 = vsub.s32 %v3524, %v3526
  %v3528 = vrot.slane %v3307, %v3527
  %vm3529 = vcmask 523712
  %v3530 = vsel %vm3529, %v3528, %v3523
  %v3531 = vadd.s32 %v3477, 4294967232
  %v3532 = vlaneseq
  %v3533 = vshrl.u32 %v3532, 7
  %v3534 = vsub.s32 %v3531, %v3533
  %v3535 = vrot.slane %v3310, %v3534
  %vm3536 = vcmask 589312
  %v3537 = vsel %vm3536, %v3535, %v3530
  %v3538 = vadd.s32 %v3477, 4294967224
  %v3539 = vlaneseq
  %v3540 = vshrl.u32 %v3539, 7
  %v3541 = vsub.s32 %v3538, %v3540
  %v3542 = vrot.slane %v3313, %v3541
  %vm3543 = vcmask 654912
  %v3544 = vsel %vm3543, %v3542, %v3537
  %v3545 = vadd.s32 %v3477, 4294967216
  %v3546 = vlaneseq
  %v3547 = vshrl.u32 %v3546, 7
  %v3548 = vsub.s32 %v3545, %v3547
  %v3549 = vrot.slane %v3316, %v3548
  %vm3550 = vcmask 720512
  %v3551 = vsel %vm3550, %v3549, %v3544
  %v3552 = vadd.s32 %v3477, 4294967208
  %v3553 = vlaneseq
  %v3554 = vshrl.u32 %v3553, 7
  %v3555 = vsub.s32 %v3552, %v3554
  %v3556 = vrot.slane %v3319, %v3555
  %vm3557 = vcmask 786112
  %v3558 = vsel %vm3557, %v3556, %v3551
  %v3559 = vadd.s32 %v3477, 4294967200
  %v3560 = vlaneseq
  %v3561 = vshrl.u32 %v3560, 7
  %v3562 = vsub.s32 %v3559, %v3561
  %v3563 = vrot.slane %v3322, %v3562
  %vm3564 = vcmask 851712
  %v3565 = vsel %vm3564, %v3563, %v3558
  %v3566 = vadd.s32 %v3477, 4294967192
  %v3567 = vlaneseq
  %v3568 = vshrl.u32 %v3567, 7
  %v3569 = vsub.s32 %v3566, %v3568
  %v3570 = vrot.slane %v3325, %v3569
  %vm3571 = vcmask 917312
  %v3572 = vsel %vm3571, %v3570, %v3565
  %v3573 = vadd.s32 %v3477, 4294967184
  %v3574 = vlaneseq
  %v3575 = vshrl.u32 %v3574, 7
  %v3576 = vsub.s32 %v3573, %v3575
  %v3577 = vrot.slane %v3328, %v3576
  %vm3578 = vcmask 982912
  %v3579 = vsel %vm3578, %v3577, %v3572
  %v3580 = vadd.s32 %v3477, 4294967176
  %v3581 = vlaneseq
  %v3582 = vshrl.u32 %v3581, 7
  %v3583 = vsub.s32 %v3580, %v3582
  %v3584 = vrot.slane %v3331, %v3583
  %vm3585 = vcmask 1048512
  %v3586 = vsel %vm3585, %v3584, %v3579
  %v3587 = vlaneseq
  %v3588 = vshrl.u32 %v3587, 7
  %v3589 = vsub.s32 %v3477, %v3588
  %v3590 = vrot.slane %v3334, %v3589
  %v3591 = vlaneseq
  %v3592 = vshrl.u32 %v3591, 7
  %v3593 = vsub.s32 %v3482, %v3592
  %v3594 = vrot.slane %v3337, %v3593
  %v3595 = vsel %vm3487, %v3594, %v3590
  %v3596 = vlaneseq
  %v3597 = vshrl.u32 %v3596, 7
  %v3598 = vsub.s32 %v3489, %v3597
  %v3599 = vrot.slane %v3340, %v3598
  %v3600 = vsel %vm3494, %v3599, %v3595
  %v3601 = vlaneseq
  %v3602 = vshrl.u32 %v3601, 7
  %v3603 = vsub.s32 %v3496, %v3602
  %v3604 = vrot.slane %v3343, %v3603
  %v3605 = vsel %vm3501, %v3604, %v3600
  %v3606 = vlaneseq
  %v3607 = vshrl.u32 %v3606, 7
  %v3608 = vsub.s32 %v3503, %v3607
  %v3609 = vrot.slane %v3346, %v3608
  %v3610 = vsel %vm3508, %v3609, %v3605
  %v3611 = vlaneseq
  %v3612 = vshrl.u32 %v3611, 7
  %v3613 = vsub.s32 %v3510, %v3612
  %v3614 = vrot.slane %v3349, %v3613
  %v3615 = vsel %vm3515, %v3614, %v3610
  %v3616 = vlaneseq
  %v3617 = vshrl.u32 %v3616, 7
  %v3618 = vsub.s32 %v3517, %v3617
  %v3619 = vrot.slane %v3352, %v3618
  %v3620 = vsel %vm3522, %v3619, %v3615
  %v3621 = vlaneseq
  %v3622 = vshrl.u32 %v3621, 7
  %v3623 = vsub.s32 %v3524, %v3622
  %v3624 = vrot.slane %v3355, %v3623
  %v3625 = vsel %vm3529, %v3624, %v3620
  %v3626 = vlaneseq
  %v3627 = vshrl.u32 %v3626, 7
  %v3628 = vsub.s32 %v3531, %v3627
  %v3629 = vrot.slane %v3358, %v3628
  %v3630 = vsel %vm3536, %v3629, %v3625
  %v3631 = vlaneseq
  %v3632 = vshrl.u32 %v3631, 7
  %v3633 = vsub.s32 %v3538, %v3632
  %v3634 = vrot.slane %v3361, %v3633
  %v3635 = vsel %vm3543, %v3634, %v3630
  %v3636 = vlaneseq
  %v3637 = vshrl.u32 %v3636, 7
  %v3638 = vsub.s32 %v3545, %v3637
  %v3639 = vrot.slane %v3364, %v3638
  %v3640 = vsel %vm3550, %v3639, %v3635
  %v3641 = vlaneseq
  %v3642 = vshrl.u32 %v3641, 7
  %v3643 = vsub.s32 %v3552, %v3642
  %v3644 = vrot.slane %v3367, %v3643
  %v3645 = vsel %vm3557, %v3644, %v3640
  %v3646 = vlaneseq
  %v3647 = vshrl.u32 %v3646, 7
  %v3648 = vsub.s32 %v3559, %v3647
  %v3649 = vrot.slane %v3370, %v3648
  %v3650 = vsel %vm3564, %v3649, %v3645
  %v3651 = vlaneseq
  %v3652 = vshrl.u32 %v3651, 7
  %v3653 = vsub.s32 %v3566, %v3652
  %v3654 = vrot.slane %v3373, %v3653
  %v3655 = vsel %vm3571, %v3654, %v3650
  %v3656 = vlaneseq
  %v3657 = vshrl.u32 %v3656, 7
  %v3658 = vsub.s32 %v3573, %v3657
  %v3659 = vrot.slane %v3376, %v3658
  %v3660 = vsel %vm3578, %v3659, %v3655
  %v3661 = vlaneseq
  %v3662 = vshrl.u32 %v3661, 7
  %v3663 = vsub.s32 %v3580, %v3662
  %v3664 = vrot.slane %v3379, %v3663
  %v3665 = vsel %vm3585, %v3664, %v3660
  %v3666 = vlaneseq
  %v3667 = vshrl.u32 %v3666, 7
  %v3668 = vsub.s32 %v3477, %v3667
  %v3669 = vrot.slane %v3382, %v3668
  %v3670 = vlaneseq
  %v3671 = vshrl.u32 %v3670, 7
  %v3672 = vsub.s32 %v3482, %v3671
  %v3673 = vrot.slane %v3385, %v3672
  %v3674 = vsel %vm3487, %v3673, %v3669
  %v3675 = vlaneseq
  %v3676 = vshrl.u32 %v3675, 7
  %v3677 = vsub.s32 %v3489, %v3676
  %v3678 = vrot.slane %v3388, %v3677
  %v3679 = vsel %vm3494, %v3678, %v3674
  %v3680 = vlaneseq
  %v3681 = vshrl.u32 %v3680, 7
  %v3682 = vsub.s32 %v3496, %v3681
  %v3683 = vrot.slane %v3391, %v3682
  %v3684 = vsel %vm3501, %v3683, %v3679
  %v3685 = vlaneseq
  %v3686 = vshrl.u32 %v3685, 7
  %v3687 = vsub.s32 %v3503, %v3686
  %v3688 = vrot.slane %v3394, %v3687
  %v3689 = vsel %vm3508, %v3688, %v3684
  %v3690 = vlaneseq
  %v3691 = vshrl.u32 %v3690, 7
  %v3692 = vsub.s32 %v3510, %v3691
  %v3693 = vrot.slane %v3397, %v3692
  %v3694 = vsel %vm3515, %v3693, %v3689
  %v3695 = vlaneseq
  %v3696 = vshrl.u32 %v3695, 7
  %v3697 = vsub.s32 %v3517, %v3696
  %v3698 = vrot.slane %v3400, %v3697
  %v3699 = vsel %vm3522, %v3698, %v3694
  %v3700 = vlaneseq
  %v3701 = vshrl.u32 %v3700, 7
  %v3702 = vsub.s32 %v3524, %v3701
  %v3703 = vrot.slane %v3403, %v3702
  %v3704 = vsel %vm3529, %v3703, %v3699
  %v3705 = vlaneseq
  %v3706 = vshrl.u32 %v3705, 7
  %v3707 = vsub.s32 %v3531, %v3706
  %v3708 = vrot.slane %v3406, %v3707
  %v3709 = vsel %vm3536, %v3708, %v3704
  %v3710 = vlaneseq
  %v3711 = vshrl.u32 %v3710, 7
  %v3712 = vsub.s32 %v3538, %v3711
  %v3713 = vrot.slane %v3409, %v3712
  %v3714 = vsel %vm3543, %v3713, %v3709
  %v3715 = vlaneseq
  %v3716 = vshrl.u32 %v3715, 7
  %v3717 = vsub.s32 %v3545, %v3716
  %v3718 = vrot.slane %v3412, %v3717
  %v3719 = vsel %vm3550, %v3718, %v3714
  %v3720 = vlaneseq
  %v3721 = vshrl.u32 %v3720, 7
  %v3722 = vsub.s32 %v3552, %v3721
  %v3723 = vrot.slane %v3415, %v3722
  %v3724 = vsel %vm3557, %v3723, %v3719
  %v3725 = vlaneseq
  %v3726 = vshrl.u32 %v3725, 7
  %v3727 = vsub.s32 %v3559, %v3726
  %v3728 = vrot.slane %v3418, %v3727
  %v3729 = vsel %vm3564, %v3728, %v3724
  %v3730 = vlaneseq
  %v3731 = vshrl.u32 %v3730, 7
  %v3732 = vsub.s32 %v3566, %v3731
  %v3733 = vrot.slane %v3421, %v3732
  %v3734 = vsel %vm3571, %v3733, %v3729
  %v3735 = vlaneseq
  %v3736 = vshrl.u32 %v3735, 7
  %v3737 = vsub.s32 %v3573, %v3736
  %v3738 = vrot.slane %v3424, %v3737
  %v3739 = vsel %vm3578, %v3738, %v3734
  %v3740 = vlaneseq
  %v3741 = vshrl.u32 %v3740, 7
  %v3742 = vsub.s32 %v3580, %v3741
  %v3743 = vrot.slane %v3427, %v3742
  %v3744 = vsel %vm3585, %v3743, %v3739
  %v3745 = vlaneseq
  %v3746 = vshrl.u32 %v3745, 7
  %v3747 = vsub.s32 %v3477, %v3746
  %v3748 = vrot.slane %v3430, %v3747
  %v3749 = vlaneseq
  %v3750 = vshrl.u32 %v3749, 7
  %v3751 = vsub.s32 %v3482, %v3750
  %v3752 = vrot.slane %v3433, %v3751
  %v3753 = vsel %vm3487, %v3752, %v3748
  %v3754 = vlaneseq
  %v3755 = vshrl.u32 %v3754, 7
  %v3756 = vsub.s32 %v3489, %v3755
  %v3757 = vrot.slane %v3436, %v3756
  %v3758 = vsel %vm3494, %v3757, %v3753
  %v3759 = vlaneseq
  %v3760 = vshrl.u32 %v3759, 7
  %v3761 = vsub.s32 %v3496, %v3760
  %v3762 = vrot.slane %v3439, %v3761
  %v3763 = vsel %vm3501, %v3762, %v3758
  %v3764 = vlaneseq
  %v3765 = vshrl.u32 %v3764, 7
  %v3766 = vsub.s32 %v3503, %v3765
  %v3767 = vrot.slane %v3442, %v3766
  %v3768 = vsel %vm3508, %v3767, %v3763
  %v3769 = vlaneseq
  %v3770 = vshrl.u32 %v3769, 7
  %v3771 = vsub.s32 %v3510, %v3770
  %v3772 = vrot.slane %v3445, %v3771
  %v3773 = vsel %vm3515, %v3772, %v3768
  %v3774 = vlaneseq
  %v3775 = vshrl.u32 %v3774, 7
  %v3776 = vsub.s32 %v3517, %v3775
  %v3777 = vrot.slane %v3448, %v3776
  %v3778 = vsel %vm3522, %v3777, %v3773
  %v3779 = vlaneseq
  %v3780 = vshrl.u32 %v3779, 7
  %v3781 = vsub.s32 %v3524, %v3780
  %v3782 = vrot.slane %v3451, %v3781
  %v3783 = vsel %vm3529, %v3782, %v3778
  %v3784 = vlaneseq
  %v3785 = vshrl.u32 %v3784, 7
  %v3786 = vsub.s32 %v3531, %v3785
  %v3787 = vrot.slane %v3454, %v3786
  %v3788 = vsel %vm3536, %v3787, %v3783
  %v3789 = vlaneseq
  %v3790 = vshrl.u32 %v3789, 7
  %v3791 = vsub.s32 %v3538, %v3790
  %v3792 = vrot.slane %v3457, %v3791
  %v3793 = vsel %vm3543, %v3792, %v3788
  %v3794 = vlaneseq
  %v3795 = vshrl.u32 %v3794, 7
  %v3796 = vsub.s32 %v3545, %v3795
  %v3797 = vrot.slane %v3460, %v3796
  %v3798 = vsel %vm3550, %v3797, %v3793
  %v3799 = vlaneseq
  %v3800 = vshrl.u32 %v3799, 7
  %v3801 = vsub.s32 %v3552, %v3800
  %v3802 = vrot.slane %v3463, %v3801
  %v3803 = vsel %vm3557, %v3802, %v3798
  %v3804 = vlaneseq
  %v3805 = vshrl.u32 %v3804, 7
  %v3806 = vsub.s32 %v3559, %v3805
  %v3807 = vrot.slane %v3466, %v3806
  %v3808 = vsel %vm3564, %v3807, %v3803
  %v3809 = vlaneseq
  %v3810 = vshrl.u32 %v3809, 7
  %v3811 = vsub.s32 %v3566, %v3810
  %v3812 = vrot.slane %v3469, %v3811
  %v3813 = vsel %vm3571, %v3812, %v3808
  %v3814 = vlaneseq
  %v3815 = vshrl.u32 %v3814, 7
  %v3816 = vsub.s32 %v3573, %v3815
  %v3817 = vrot.slane %v3472, %v3816
  %v3818 = vsel %vm3578, %v3817, %v3813
  %v3819 = vlaneseq
  %v3820 = vshrl.u32 %v3819, 7
  %v3821 = vsub.s32 %v3580, %v3820
  %v3822 = vrot.slane %v3475, %v3821
  %v3823 = vsel %vm3585, %v3822, %v3818
  %vm3824 = vcmask 1041409
  %v3825 = vsel %vm3824, %v3744, %v3586
  %v3826 = vsel %vm3824, %v3823, %v3665
  %v3827 = vcombine.low %v3825, %v3826
  %v3829 = vunpack.c.l.s4 1983009808
  %v3830 = vunpack.c.0.s8 %v3829
  %v3831 = vlaneseq
  %v3832 = vshrl.u32 %v3831, 7
  %v3833 = vsub.s32 %v3830, %v3832
  %v3834 = vrot.slane %v3827, %v3833
  %v3836 = vadd.f32 %v19, %v3834
  %3837 = vst [vmem:[#allocation2] sm:$0xf] %v3836
  // Predicated region
  $region18: #{aspp_pooling.1} parent=0 // pred_check
    %p3838 = pneg %p14
  $region19: #{aspp_pooling.1} parent=0 // pred_check_branch
    %3840 = sbr.rel (%p3838) target = $region21
  $region20: #{aspp_pooling.1} parent=0 // pred_region
    %v3841 = vld [vmem:[#allocation2] sm:$0xf]
    %v3842 = vmul.f32 %v3841, 0.00390625
    %v3845 = vunpack.c.l.s4 1983009808
    %v3846 = vunpack.c.0.s8 %v3845
    %v3847 = vlaneseq
    %v3848 = vshrl.u32 %v3847, 7
    %v3849 = vsub.s32 %v3846, %v3848
    %v3850 = vrot.slane %v3842, %v3849
    %v3851 = vcombine.high %v3850, %v3850
    %v3854 = vpack.c.bf16 %v3850, %v3850
    %v3855 = vpack.c.bf16 %v3851, %v3851
    %v3856 = vld [vmem:[%s1] sm:$0xff]
    %v3857 = vld [vmem:[%s1 + $0x8] sm:$0xff]
    %v3858 = vld [vmem:[%s1 + $0x10] sm:$0xff]
    %v3859 = vld [vmem:[%s1 + $0x18] sm:$0xff]
    %v3860 = vld [vmem:[%s1 + $0x20] sm:$0xff]
    %v3861 = vld [vmem:[%s1 + $0x28] sm:$0xff]
    %v3862 = vld [vmem:[%s1 + $0x30] sm:$0xff]
    %v3863 = vld [vmem:[%s1 + $0x38] sm:$0xff]
    %v3864 = vld [vmem:[%s1 + $0x40] sm:$0xff]
    %v3865 = vld [vmem:[%s1 + $0x48] sm:$0xff]
    %v3866 = vld [vmem:[%s1 + $0x50] sm:$0xff]
    %v3867 = vld [vmem:[%s1 + $0x58] sm:$0xff]
    %v3868 = vld [vmem:[%s1 + $0x60] sm:$0xff]
    %v3869 = vld [vmem:[%s1 + $0x68] sm:$0xff]
    %v3870 = vld [vmem:[%s1 + $0x70] sm:$0xff]
    %v3871 = vld [vmem:[%s1 + $0x78] sm:$0xff]
    %v3872 = vld [vmem:[%s1 + $0x80] sm:$0xff]
    %v3873 = vld [vmem:[%s1 + $0x88] sm:$0xff]
    %v3874 = vld [vmem:[%s1 + $0x90] sm:$0xff]
    %v3875 = vld [vmem:[%s1 + $0x98] sm:$0xff]
    %v3876 = vld [vmem:[%s1 + $0xa0] sm:$0xff]
    %v3877 = vld [vmem:[%s1 + $0xa8] sm:$0xff]
    %v3878 = vld [vmem:[%s1 + $0xb0] sm:$0xff]
    %v3879 = vld [vmem:[%s1 + $0xb8] sm:$0xff]
    %v3880 = vld [vmem:[%s1 + $0xc0] sm:$0xff]
    %v3881 = vld [vmem:[%s1 + $0xc8] sm:$0xff]
    %v3882 = vld [vmem:[%s1 + $0xd0] sm:$0xff]
    %v3883 = vld [vmem:[%s1 + $0xd8] sm:$0xff]
    %v3884 = vld [vmem:[%s1 + $0xe0] sm:$0xff]
    %v3885 = vld [vmem:[%s1 + $0xe8] sm:$0xff]
    %v3886 = vld [vmem:[%s1 + $0xf0] sm:$0xff]
    %v3887 = vld [vmem:[%s1 + $0xf8] sm:$0xff]
    %v3888 = vld [vmem:[%s2] sm:$0x3]
    %v3890 = vlaneseq
    %v3891 = vshrl.u32 %v3890, 7
    %v3892 = vsub.s32 0, %v3891
    %v3893 = vrot.slane %v3888, %v3892
    %v3894 = vlaneseq
    %v3895 = vshrl.u32 %v3894, 7
    %v3896 = vsub.s32 1, %v3895
    %v3897 = vrot.slane %v3888, %v3896
    %v3932 = vunpack.c.l.b16 %v3856
    %v3933 = vunpack.c.h.b16 %v3856
    %v3934 = vunpack.c.l.b16 %v3857
    %v3935 = vunpack.c.h.b16 %v3857
    %v3936 = vunpack.c.l.b16 %v3858
    %v3937 = vunpack.c.h.b16 %v3858
    %v3938 = vunpack.c.l.b16 %v3859
    %v3939 = vunpack.c.h.b16 %v3859
    %v3940 = vunpack.c.l.b16 %v3860
    %v3941 = vunpack.c.h.b16 %v3860
    %v3942 = vunpack.c.l.b16 %v3861
    %v3943 = vunpack.c.h.b16 %v3861
    %v3944 = vunpack.c.l.b16 %v3862
    %v3945 = vunpack.c.h.b16 %v3862
    %v3946 = vunpack.c.l.b16 %v3863
    %v3947 = vunpack.c.h.b16 %v3863
    %v3948 = vunpack.c.l.b16 %v3864
    %v3949 = vunpack.c.h.b16 %v3864
    %v3950 = vunpack.c.l.b16 %v3865
    %v3951 = vunpack.c.h.b16 %v3865
    %v3952 = vunpack.c.l.b16 %v3866
    %v3953 = vunpack.c.h.b16 %v3866
    %v3954 = vunpack.c.l.b16 %v3867
    %v3955 = vunpack.c.h.b16 %v3867
    %v3956 = vunpack.c.l.b16 %v3868
    %v3957 = vunpack.c.h.b16 %v3868
    %v3958 = vunpack.c.l.b16 %v3869
    %v3959 = vunpack.c.h.b16 %v3869
    %v3960 = vunpack.c.l.b16 %v3870
    %v3961 = vunpack.c.h.b16 %v3870
    %v3962 = vunpack.c.l.b16 %v3871
    %v3963 = vunpack.c.h.b16 %v3871
    %v3964 = vunpack.c.l.b16 %v3872
    %v3965 = vunpack.c.h.b16 %v3872
    %v3966 = vunpack.c.l.b16 %v3873
    %v3967 = vunpack.c.h.b16 %v3873
    %v3968 = vunpack.c.l.b16 %v3874
    %v3969 = vunpack.c.h.b16 %v3874
    %v3970 = vunpack.c.l.b16 %v3875
    %v3971 = vunpack.c.h.b16 %v3875
    %v3972 = vunpack.c.l.b16 %v3876
    %v3973 = vunpack.c.h.b16 %v3876
    %v3974 = vunpack.c.l.b16 %v3877
    %v3975 = vunpack.c.h.b16 %v3877
    %v3976 = vunpack.c.l.b16 %v3878
    %v3977 = vunpack.c.h.b16 %v3878
    %v3978 = vunpack.c.l.b16 %v3879
    %v3979 = vunpack.c.h.b16 %v3879
    %v3980 = vunpack.c.l.b16 %v3880
    %v3981 = vunpack.c.h.b16 %v3880
    %v3982 = vunpack.c.l.b16 %v3881
    %v3983 = vunpack.c.h.b16 %v3881
    %v3984 = vunpack.c.l.b16 %v3882
    %v3985 = vunpack.c.h.b16 %v3882
    %v3986 = vunpack.c.l.b16 %v3883
    %v3987 = vunpack.c.h.b16 %v3883
    %v3988 = vunpack.c.l.b16 %v3884
    %v3989 = vunpack.c.h.b16 %v3884
    %v3990 = vunpack.c.l.b16 %v3885
    %v3991 = vunpack.c.h.b16 %v3885
    %v3992 = vunpack.c.l.b16 %v3886
    %v3993 = vunpack.c.h.b16 %v3886
    %v3994 = vunpack.c.l.b16 %v3887
    %v3995 = vunpack.c.h.b16 %v3887
    %v3996 = vpack.c.b16 %v3934, %v3932
    %v3997 = vpack.c.b16 %v3935, %v3933
    %v3998 = vpack.c.b16 %v3938, %v3936
    %v3999 = vpack.c.b16 %v3939, %v3937
    %v4000 = vpack.c.b16 %v3942, %v3940
    %v4001 = vpack.c.b16 %v3943, %v3941
    %v4002 = vpack.c.b16 %v3946, %v3944
    %v4003 = vpack.c.b16 %v3947, %v3945
    %v4004 = vpack.c.b16 %v3950, %v3948
    %v4005 = vpack.c.b16 %v3951, %v3949
    %v4006 = vpack.c.b16 %v3954, %v3952
    %v4007 = vpack.c.b16 %v3955, %v3953
    %v4008 = vpack.c.b16 %v3958, %v3956
    %v4009 = vpack.c.b16 %v3959, %v3957
    %v4010 = vpack.c.b16 %v3962, %v3960
    %v4011 = vpack.c.b16 %v3963, %v3961
    %v4012 = vpack.c.b16 %v3966, %v3964
    %v4013 = vpack.c.b16 %v3967, %v3965
    %v4014 = vpack.c.b16 %v3970, %v3968
    %v4015 = vpack.c.b16 %v3971, %v3969
    %v4016 = vpack.c.b16 %v3974, %v3972
    %v4017 = vpack.c.b16 %v3975, %v3973
    %v4018 = vpack.c.b16 %v3978, %v3976
    %v4019 = vpack.c.b16 %v3979, %v3977
    %v4020 = vpack.c.b16 %v3982, %v3980
    %v4021 = vpack.c.b16 %v3983, %v3981
    %v4022 = vpack.c.b16 %v3986, %v3984
    %v4023 = vpack.c.b16 %v3987, %v3985
    %v4024 = vpack.c.b16 %v3990, %v3988
    %v4025 = vpack.c.b16 %v3991, %v3989
    %v4026 = vpack.c.b16 %v3994, %v3992
    %v4027 = vpack.c.b16 %v3995, %v3993
    %4060 = vmatprep.subr.bf16.mxu0 %v4011
    %4061 = vmatpush1.bf16.msra.mxu0 %v4010
    %4062 = vmatprep.subr.bf16.mxu0 %v4009
    %4063 = vmatpush1.bf16.msra.mxu0 %v4008
    %4064 = vmatprep.subr.bf16.mxu0 %v4007
    %4065 = vmatpush1.bf16.msra.mxu0 %v4006
    %4066 = vmatprep.subr.bf16.mxu0 %v4005
    %4067 = vmatpush1.bf16.msra.mxu0 %v4004
    %4068 = vmatprep.subr.bf16.mxu0 %v4003
    %4069 = vmatpush1.bf16.msra.mxu0 %v4002
    %4070 = vmatprep.subr.bf16.mxu0 %v4001
    %4071 = vmatpush1.bf16.msra.mxu0 %v4000
    %4072 = vmatprep.subr.bf16.mxu0 %v3999
    %4073 = vmatpush1.bf16.msra.mxu0 %v3998
    %4074 = vmatprep.subr.bf16.mxu0 %v3997
    %4075 = vmatpush1.bf16.msra.mxu0 %v3996
    %4076 = vmatprep.subr.bf16.mxu0 %v4027
    %4077 = vmatpush2.bf16.msra.mxu0 %v4026
    %4078 = vmatprep.subr.bf16.mxu0 %v4025
    %4079 = vmatpush2.bf16.msra.mxu0 %v4024
    %4080 = vmatprep.subr.bf16.mxu0 %v4023
    %4081 = vmatpush2.bf16.msra.mxu0 %v4022
    %4082 = vmatprep.subr.bf16.mxu0 %v4021
    %4083 = vmatpush2.bf16.msra.mxu0 %v4020
    %4084 = vmatprep.subr.bf16.mxu0 %v4019
    %4085 = vmatpush2.bf16.msra.mxu0 %v4018
    %4086 = vmatprep.subr.bf16.mxu0 %v4017
    %4087 = vmatpush2.bf16.msra.mxu0 %v4016
    %4088 = vmatprep.subr.bf16.mxu0 %v4015
    %4089 = vmatpush2.bf16.msra.mxu0 %v4014
    %4090 = vmatprep.subr.bf16.mxu0 %v4013
    %4091 = vmatpush2.bf16.msra.mxu0 %v4012
    %4092 = vmatprep.mubr.bf16.mxu0 %v3855
    %4093 = vmatmul.mubr.bf16.gmra.mxu0 %v3854
    %v4094 = vpop.f32.mrf.mxu0
    %v4095 = vadd.f32 %v3893, %v4094
    %v4096 = vpop.f32.mrf.mxu0
    %v4097 = vadd.f32 %v3897, %v4096
    %v4098 = vpop.f32.mrf.mxu0
    %v4099 = vpop.f32.mrf.mxu0
    %4100 = vdwg.mxu0
    %v4101 = vmax.f32 %v4095, 0.0
    %v4102 = vmax.f32 %v4097, 0.0
    %v4105 = vcombine.low %v4101, %v4102
    %v4107 = vunpack.c.l.s4 1983009808
    %v4108 = vunpack.c.0.s8 %v4107
    %v4109 = vlaneseq
    %v4110 = vshrl.u32 %v4109, 7
    %v4111 = vsub.s32 %v4108, %v4110
    %v4112 = vrot.slane %v4105, %v4111
    %4114 = vst [vmem:[%s3] sm:$0xf] %v4112
  $region21: #{aspp_pooling.1} parent=0 // pred_fallthru
    _
  // Predicated region
  $region22: #{aspp_pooling.1} parent=0 // pred_check
    _
  $region23: #{aspp_pooling.1} parent=0 // pred_check_branch
    %4116 = sbr.rel (0) target = $region25
  $region24: #{aspp_pooling.1} parent=0 // pred_region
    _
  $region25: #{aspp_pooling.1} parent=0 // pred_fallthru
    _
  // Predicated region
  $region26: #{aspp_pooling.1} parent=0 // pred_check
    _
  $region27: #{aspp_pooling.1} parent=0 // pred_check_branch
    %4118 = sbr.rel (0) target = $region29
  $region28: #{aspp_pooling.1} parent=0 // pred_region
    _
  $region29: #{aspp_pooling.1} parent=0 // pred_fallthru
    _

</llo_original>
